<compile_context>
chip_gen: v5e
topology: v5e:2x2
jax: 0.10.0
libtpu: 0.0.40
codegen_flags: <defaults>
</compile_context>

<pallas_src>
import jax
import jax.numpy as jnp
from jax.experimental import pallas as pl
from jax.experimental.pallas import tpu as pltpu

# ----------------------------- model dims -----------------------------------
X_DIM = 16                         # raw feature dim
H_DIM = 32                         # args.h_dim
G_DIM = 32                         # args.g_dim
Y_REP = X_DIM + H_DIM + G_DIM      # skip '123' -> 80

# ----------------------------- weight-slab layout ---------------------------
# Columns (256 wide): aux block for the small fused Linear, then the two outcome
# heads, each kept inside a single 128-lane vreg tile.
C_AUX = 0                          # 32-wide aux columns (WP1 / WG1 outputs)
C_H0 = 32                          # head-0 (out_t00) columns 32:112   (tile 0)
C_H1 = 128                         # head-1 (out_t10) columns 128:208  (tile 1)
SLAB_COLS = 256

# Rows (all offsets multiples of 16 -> bf16 sublane-tile safe).
P_RX = 0                           # 16 rows: [WP1 | x-rows(out_t00) | x-rows(out_t10)]
P_RPHI = P_RX + X_DIM              # 16: 32 rows: [WG1 | zeros        | phi-rows(out_t10)]
P_RREP = P_RPHI + H_DIM            # 48: 32 rows: [0   | rep-rows(t00)| rep-rows(out_t10)]
P_WP2 = P_RREP + G_DIM             # 80: 32 rows, cols 0:32  (phi_x second Linear)
P_WG2 = P_WP2 + H_DIM              # 112: 32 rows, cols 0:32 (hgnn_more Linear)
P_B1 = 144                         # row: bp1 | bp2 | bg1 | bg2 (cols 0:128)
P_BH = 160                         # row: bt00 in head-0 cols, bt10 in head-1 cols
P_WF0 = 176                        # row: out_t01 weights in head-0 cols (zero elsewhere)
P_WF1 = 192                        # row: out_t11 weights in head-1 cols (zero elsewhere)
P_BF = 208                         # row: bt01 (col 0), bt11 (col 1)
SLAB_ROWS = 224                    # 224x256 bf16 = 112 KB

OUT_W = 40                         # [rep(32) | y0 | y1 | 6 unwritten pad lanes]
MAX_ROW_TILE = 4096                # keeps 256-wide f32 intermediates within VMEM
VMEM_LIMIT_BYTES = 48 * 1024 * 1024


# ----------------------------- kernel ----------------------------------------
def hypersci_kernel(feat_ref, treat_ref, slab_ref, out_ref):
    f32 = jnp.float32
    cdt = slab_ref.dtype                        # MXU operand dtype (f32 or bf16)

    x = feat_ref[...]                           # (TM, 16) f32
    t = treat_ref[...]                          # (TM, 1)  f32, values in {0, 1}

    # Bias / final-head vector rows (elementwise math stays in f32).
    b1 = slab_ref[P_B1:P_B1 + 1, :].astype(f32)             # (1, 256)
    bp1 = b1[:, 0:H_DIM]
    bp2 = b1[:, H_DIM:2 * H_DIM]
    bg1 = b1[:, 2 * H_DIM:2 * H_DIM + G_DIM]
    bg2 = b1[:, 2 * H_DIM + G_DIM:2 * H_DIM + 2 * G_DIM]
    b_heads = slab_ref[P_BH:P_BH + 1, :].astype(f32)        # zero outside head cols
    wf0 = slab_ref[P_WF0:P_WF0 + 1, :].astype(f32)          # out_t01^T in head-0 cols
    wf1 = slab_ref[P_WF1:P_WF1 + 1, :].astype(f32)          # out_t11^T in head-1 cols
    b_fin = slab_ref[P_BF:P_BF + 1, 0:2].astype(f32)        # (1, 2): [bt01, bt11]

    def mm(a, row0, nrows, ncols):
        w = slab_ref[row0:row0 + nrows, 0:ncols]            # static slab slice (no DMA)
        return jnp.dot(a.astype(cdt), w, preferred_element_type=f32)

    # MXU pass 1: x @ [WP1 | x-rows(out_t00) | x-rows(out_t10)]   (K=16, N=256)
    acc = mm(x, P_RX, X_DIM, SLAB_COLS)                     # (TM, 256)
    h1 = jnp.maximum(acc[:, C_AUX:C_AUX + H_DIM] + bp1, 0.0)

    # MXU pass 2: phi_x second Linear                             (K=32, N=32)
    phi = mm(h1, P_WP2, H_DIM, H_DIM) + bp2                 # (TM, 32) == returned 'rep'

    # MXU pass 3: phi @ [WG1 | 0 | phi-rows(out_t10)]             (K=32, N=256)
    res_phi = mm(phi, P_RPHI, H_DIM, SLAB_COLS)
    # Treatment gate folded after the matmul: t*(phi@WG1) == (t*phi)@WG1 for t in {0,1}.
    rep = jnp.maximum(t * res_phi[:, C_AUX:C_AUX + G_DIM] + bg1, 0.0)

    # MXU pass 4: hgnn_more Linear -> ReLU -> dropout(eval)=id    (K=32, N=32)
    rep = jnp.maximum(mm(rep, P_WG2, G_DIM, G_DIM) + bg2, 0.0)

    # MXU pass 5: rep @ [0 | rep-rows(out_t00) | rep-rows(out_t10)] (K=32, N=256)
    acc = acc + res_phi
    acc = acc + mm(rep, P_RREP, G_DIM, SLAB_COLS)
    # Head columns now hold rep_post_0 @ out_t00.W (head-0) and rep_post_1 @ out_t10.W
    # (head-1); aux columns hold finite junk that wf0/wf1 mask to zero below.
    heads = jnp.maximum(acc + b_heads, 0.0)                 # (TM, 256)

    # Final scalar heads off the MXU: VPU multiply + XLU lane reduce, no lane slicing.
    y0 = jnp.sum(heads * wf0, axis=-1, keepdims=True) + b_fin[:, 0:1]
    y1 = jnp.sum(heads * wf1, axis=-1, keepdims=True) + b_fin[:, 1:2]

    # Two stores only. Columns 34..OUT_W are intentionally left unwritten (stale VMEM);
    # the wrapper never reads them.
    out_ref[:, 0:H_DIM] = phi
    out_ref[:, H_DIM:H_DIM + 2] = jnp.concatenate([y0, y1], axis=1)


# ----------------------------- weight packing --------------------------------
def pack_weight_slab(params, dtype):
    (wp1, bp1, wp2, bp2, wg1, bg1, wg2, bg2,
     wt00, bt00, wt10, bt10, wt01, bt01, wt11, bt11) = params
    slab = jnp.zeros((SLAB_ROWS, SLAB_COLS), jnp.float32)
    # Fused RHS for x: [WP1 | x-rows of out_t00 | x-rows of out_t10]
    slab = slab.at[P_RX:P_RX + X_DIM, C_AUX:C_AUX + H_DIM].set(wp1)
    slab = slab.at[P_RX:P_RX + X_DIM, C_H0:C_H0 + Y_REP].set(wt00[0:X_DIM, :])
    slab = slab.at[P_RX:P_RX + X_DIM, C_H1:C_H1 + Y_REP].set(wt10[0:X_DIM, :])
    # Fused RHS for phi: [WG1 | zeros (rep_post_0 zeroes the phi block) | phi-rows of out_t10]
    slab = slab.at[P_RPHI:P_RPHI + H_DIM, C_AUX:C_AUX + G_DIM].set(wg1)
    slab = slab.at[P_RPHI:P_RPHI + H_DIM, C_H1:C_H1 + Y_REP].set(
        wt10[X_DIM:X_DIM + H_DIM, :])
    # RHS for rep: [0 | rep-rows of out_t00 | rep-rows of out_t10]
    slab = slab.at[P_RREP:P_RREP + G_DIM, C_H0:C_H0 + Y_REP].set(wt00[X_DIM + H_DIM:, :])
    slab = slab.at[P_RREP:P_RREP + G_DIM, C_H1:C_H1 + Y_REP].set(wt10[X_DIM + H_DIM:, :])
    # Small square Linears (each at column offset 0 -> cheapest RHS slices).
    slab = slab.at[P_WP2:P_WP2 + H_DIM, 0:H_DIM].set(wp2)
    slab = slab.at[P_WG2:P_WG2 + G_DIM, 0:G_DIM].set(wg2)
    # Bias row.
    slab = slab.at[P_B1, 0:H_DIM].set(bp1[0])
    slab = slab.at[P_B1, H_DIM:2 * H_DIM].set(bp2[0])
    slab = slab.at[P_B1, 2 * H_DIM:2 * H_DIM + G_DIM].set(bg1[0])
    slab = slab.at[P_B1, 2 * H_DIM + G_DIM:2 * H_DIM + 2 * G_DIM].set(bg2[0])
    # Head biases and final scalar-head weights (zero outside their head columns).
    slab = slab.at[P_BH, C_H0:C_H0 + Y_REP].set(bt00[0])
    slab = slab.at[P_BH, C_H1:C_H1 + Y_REP].set(bt10[0])
    slab = slab.at[P_WF0, C_H0:C_H0 + Y_REP].set(wt01[:, 0])
    slab = slab.at[P_WF1, C_H1:C_H1 + Y_REP].set(wt11[:, 0])
    slab = slab.at[P_BF, 0].set(bt01[0, 0])
    slab = slab.at[P_BF, 1].set(bt11[0, 0])
    return slab.astype(dtype)


def _slab_spec(single_buffer):
    index_map = lambda i: (0, 0)
    if single_buffer:
        try:
            # Constant index_map + single buffer: fetch the ~112 KB slab once and keep
            # it resident (drops the redundant second pipeline buffer).
            return pl.BlockSpec((SLAB_ROWS, SLAB_COLS), index_map,
                                pipeline_mode=pl.Buffered(1))
        except Exception:
            pass  # BlockSpec without pipeline_mode support -> plain spec
    return pl.BlockSpec((SLAB_ROWS, SLAB_COLS), index_map)


# ----------------------------- wrapper ----------------------------------------
def hypersci_forward(features, treatments, hyperedge_index, params, *,
                     row_tile=None, compute_dtype=jnp.bfloat16):
    # encoder == 'mlp' -> hyperedge_index unused (matches the PyTorch else-branch).
    # TODO(synk): 'gat'/'gcn' encoder paths (torch_geometric HypergraphConv with scatter
    # over hyperedge_index) are not implemented; only the MLP encoder branch.
    del hyperedge_index
    N, x_dim = features.shape
    assert x_dim == X_DIM

    if row_tile is None:
        # >= 2 "parallel" row tiles keeps both v7x TensorCores busy; the one extra grid
        # step on single-TC v5e/v6e costs ~0.35us and is negligible.
        row_tile = pl.cdiv(N, 2)
    row_tile = int(min(max(8, ((int(row_tile) + 7) // 8) * 8), MAX_ROW_TILE))
    grid_n = pl.cdiv(N, row_tile)
    n_pad = grid_n * row_tile

    # No feat_aug concat: features/treatments go in untouched (casts below are no-ops
    # for f32 inputs, padding only happens when the tile does not divide N).
    feats = features.astype(jnp.float32)
    treat = treatments.reshape(N, 1).astype(jnp.float32)
    if n_pad != N:
        feats = jnp.pad(feats, ((0, n_pad - N), (0, 0)))
        treat = jnp.pad(treat, ((0, n_pad - N), (0, 0)))

    slab = pack_weight_slab(params, compute_dtype)

    feat_spec = pl.BlockSpec((row_tile, X_DIM), lambda i: (i, 0))
    treat_spec = pl.BlockSpec((row_tile, 1), lambda i: (i, 0))
    out_spec = pl.BlockSpec((row_tile, OUT_W), lambda i: (i, 0))

    def run(slab_spec):
        grid_spec = pltpu.PrefetchScalarGridSpec(
            num_scalar_prefetch=0,
            grid=(grid_n,),
            in_specs=[feat_spec, treat_spec, slab_spec],
            out_specs=out_spec,
        )
        return pl.pallas_call(
            hypersci_kernel,
            grid_spec=grid_spec,
            out_shape=jax.ShapeDtypeStruct((n_pad, OUT_W), jnp.float32),
            compiler_params=pltpu.CompilerParams(
                dimension_semantics=("parallel",),
                vmem_limit_bytes=VMEM_LIMIT_BYTES),
        )(feats, treat, slab)

    try:
        out = run(_slab_spec(True))
    except Exception:
        # Fallback: pipeline_mode=pl.Buffered(1) not supported on this JAX/Mosaic build.
        out = run(_slab_spec(False))

    out = out[:N]
    return {
        "y1_pred": out[:, H_DIM + 1],
        "y0_pred": out[:, H_DIM],
        "rep": out[:, 0:H_DIM],
    }


# ----------------------------- reference (pure JAX) ---------------------------
def hypersci_reference(features, treatments, params, compute_dtype=jnp.float32):
    """Matches PyTorch semantics for compute_dtype=f32; for bf16 it applies the same
    MXU-operand rounding the kernel does (accumulation stays f32)."""
    (wp1, bp1, wp2, bp2, wg1, bg1, wg2, bg2,
     wt00, bt00, wt10, bt10, wt01, bt01, wt11, bt11) = params
    f32 = jnp.float32
    c = lambda a: a.astype(compute_dtype)                 # operand rounding
    cf = lambda a: a.astype(compute_dtype).astype(f32)
    mm = lambda a, w: jnp.dot(c(a), c(w), preferred_element_type=f32)

    x = features.astype(f32)
    t = treatments.reshape(-1, 1).astype(f32)
    phi = mm(jnp.maximum(mm(x, wp1) + cf(bp1), 0.0), wp2) + cf(bp2)
    phi_t = t * phi
    rep = jnp.maximum(mm(phi_t, wg1) + cf(bg1), 0.0)
    rep = jnp.maximum(mm(rep, wg2) + cf(bg2), 0.0)
    zeros = jnp.zeros_like(phi)
    post0 = jnp.concatenate([x, zeros, rep], axis=1)
    post1 = jnp.concatenate([x, phi, rep], axis=1)
    y00 = jnp.maximum(mm(post0, wt00) + cf(bt00), 0.0)
    y10 = jnp.maximum(mm(post1, wt10) + cf(bt10), 0.0)
    y0 = jnp.sum(y00 * cf(wt01).T, axis=-1) + cf(bt01)[0, 0]
    y1 = jnp.sum(y10 * cf(wt11).T, axis=-1) + cf(bt11)[0, 0]
    return {"y1_pred": y1, "y0_pred": y0, "rep": phi}


# ----------------------------- main -------------------------------------------
if __name__ == "__main__":
    N_NODES = 256
    key = jax.random.PRNGKey(0)
    keys = jax.random.split(key, 19)

    def init_w(k, shape, fan_in):
        bound = 1.0 / (fan_in ** 0.5)
        return jax.random.uniform(k, shape, jnp.float32, -bound, bound)

    # Linear weights stored as (in, out); biases as (1, out).
    params = (
        init_w(keys[0],  (X_DIM, H_DIM), X_DIM),  init_w(keys[1],  (1, H_DIM), X_DIM),
        init_w(keys[2],  (H_DIM, H_DIM), H_DIM),  init_w(keys[3],  (1, H_DIM), H_DIM),
        init_w(keys[4],  (H_DIM, G_DIM), H_DIM),  init_w(keys[5],  (1, G_DIM), H_DIM),
        init_w(keys[6],  (G_DIM, G_DIM), G_DIM),  init_w(keys[7],  (1, G_DIM), G_DIM),
        init_w(keys[8],  (Y_REP, Y_REP), Y_REP),  init_w(keys[9],  (1, Y_REP), Y_REP),
        init_w(keys[10], (Y_REP, Y_REP), Y_REP),  init_w(keys[11], (1, Y_REP), Y_REP),
        init_w(keys[12], (Y_REP, 1), Y_REP),      init_w(keys[13], (1, 1), Y_REP),
        init_w(keys[14], (Y_REP, 1), Y_REP),      init_w(keys[15], (1, 1), Y_REP),
    )

    features = jax.random.normal(keys[16], (N_NODES, X_DIM), jnp.float32)
    treatments = jax.random.bernoulli(keys[17], 0.5, (N_NODES,)).astype(jnp.float32)
    # Dummy (2, E) hyperedge incidence; unused for encoder='mlp'.
    hyperedge_index = jax.random.randint(keys[18], (2, 64), 0, N_NODES, jnp.int32)

    # Exact f32 path (matches PyTorch forward semantics).
    out = hypersci_forward(features, treatments, hyperedge_index, params,
                           compute_dtype=jnp.float32)
    jax.block_until_ready(out)
    ref = hypersci_reference(features, treatments, params)
    for k in ("y0_pred", "y1_pred", "rep"):
        assert jnp.allclose(out[k], ref[k], atol=1e-4, rtol=1e-4), k

    # Default bf16 MXU-operand path (all generations), checked against a reference that
    # applies the identical operand rounding (accumulation / elementwise stay f32).
    out_bf = hypersci_forward(features, treatments, hyperedge_index, params)
    jax.block_until_ready(out_bf)
    ref_bf = hypersci_reference(features, treatments, params, jnp.bfloat16)
    for k in ("y0_pred", "y1_pred", "rep"):
        assert jnp.allclose(out_bf[k], ref_bf[k], atol=1e-2, rtol=1e-2), k

    print("KERNEL_OK")
</pallas_src>

<mosaic_0001>
module attributes {stable_mosaic.version = 11 : i64} {
  func.func @hypersci_kernel(%arg0: i32, %arg1: memref<128x16xf32, #tpu.memory_space<vmem>>, %arg2: memref<128x1xf32, #tpu.memory_space<vmem>>, %arg3: memref<224x256xf32, #tpu.memory_space<vmem>>, %arg4: memref<128x40xf32, #tpu.memory_space<vmem>>) attributes {dimension_semantics = [#tpu.dimension_semantics<parallel>], iteration_bounds = array<i64: 2>, scalar_prefetch = 0 : i64, scratch_operands = 0 : i64, tpu.core_type = #tpu.core_type<tc>, window_params = [{transform_indices = @transform_0, window_bounds = array<i64: 128, 16>}, {transform_indices = @transform_1, window_bounds = array<i64: 128, 1>}, {pipeline_mode = #tpu.pipeline_mode<synchronous>, transform_indices = @transform_2, window_bounds = array<i64: 224, 256>}, {transform_indices = @transform_3, window_bounds = array<i64: 128, 40>}]} {
    %c0 = arith.constant 0 : index
    %c0_0 = arith.constant 0 : index
    %0 = vector.load %arg1[%c0, %c0_0] : memref<128x16xf32, #tpu.memory_space<vmem>>, vector<128x16xf32>
    %c0_1 = arith.constant 0 : index
    %c0_2 = arith.constant 0 : index
    %1 = vector.load %arg2[%c0_1, %c0_2] : memref<128x1xf32, #tpu.memory_space<vmem>>, vector<128x1xf32>
    %c144 = arith.constant 144 : index
    %c0_3 = arith.constant 0 : index
    %2 = vector.load %arg3[%c144, %c0_3] : memref<224x256xf32, #tpu.memory_space<vmem>>, vector<1x256xf32>
    %3 = vector.extract_strided_slice %2 {offsets = [0, 0], sizes = [1, 32], strides = [1, 1]} : vector<1x256xf32> to vector<1x32xf32>
    %4 = vector.extract_strided_slice %2 {offsets = [0, 32], sizes = [1, 32], strides = [1, 1]} : vector<1x256xf32> to vector<1x32xf32>
    %5 = vector.extract_strided_slice %2 {offsets = [0, 64], sizes = [1, 32], strides = [1, 1]} : vector<1x256xf32> to vector<1x32xf32>
    %6 = vector.extract_strided_slice %2 {offsets = [0, 96], sizes = [1, 32], strides = [1, 1]} : vector<1x256xf32> to vector<1x32xf32>
    %c160 = arith.constant 160 : index
    %c0_4 = arith.constant 0 : index
    %7 = vector.load %arg3[%c160, %c0_4] : memref<224x256xf32, #tpu.memory_space<vmem>>, vector<1x256xf32>
    %c176 = arith.constant 176 : index
    %c0_5 = arith.constant 0 : index
    %8 = vector.load %arg3[%c176, %c0_5] : memref<224x256xf32, #tpu.memory_space<vmem>>, vector<1x256xf32>
    %c192 = arith.constant 192 : index
    %c0_6 = arith.constant 0 : index
    %9 = vector.load %arg3[%c192, %c0_6] : memref<224x256xf32, #tpu.memory_space<vmem>>, vector<1x256xf32>
    %c208 = arith.constant 208 : index
    %c0_7 = arith.constant 0 : index
    %10 = vector.load %arg3[%c208, %c0_7] : memref<224x256xf32, #tpu.memory_space<vmem>>, vector<1x2xf32>
    %c0_8 = arith.constant 0 : index
    %c0_9 = arith.constant 0 : index
    %11 = vector.load %arg3[%c0_8, %c0_9] : memref<224x256xf32, #tpu.memory_space<vmem>>, vector<16x256xf32>
    %cst = arith.constant dense<0.000000e+00> : vector<128x256xf32>
    %12 = tpu.matmul %0, %11, %cst {dimension_numbers = #tpu.dot_dimension_numbers<[1], [0], [0], [1], [0, 0, 1, 1], [], []>} : vector<128x16xf32>, vector<16x256xf32>, vector<128x256xf32> -> vector<128x256xf32>
    %13 = vector.extract_strided_slice %12 {offsets = [0, 0], sizes = [128, 32], strides = [1, 1]} : vector<128x256xf32> to vector<128x32xf32>
    %14 = vector.broadcast %3 : vector<1x32xf32> to vector<128x32xf32>
    %15 = arith.addf %13, %14 : vector<128x32xf32>
    %cst_10 = arith.constant 0.000000e+00 : f32
    %16 = vector.broadcast %cst_10 : f32 to vector<128x32xf32>
    %17 = arith.maximumf %15, %16 : vector<128x32xf32>
    %c80 = arith.constant 80 : index
    %c0_11 = arith.constant 0 : index
    %18 = vector.load %arg3[%c80, %c0_11] : memref<224x256xf32, #tpu.memory_space<vmem>>, vector<32x32xf32>
    %cst_12 = arith.constant dense<0.000000e+00> : vector<128x32xf32>
    %19 = tpu.matmul %17, %18, %cst_12 {dimension_numbers = #tpu.dot_dimension_numbers<[1], [0], [0], [1], [0, 0, 1, 1], [], []>} : vector<128x32xf32>, vector<32x32xf32>, vector<128x32xf32> -> vector<128x32xf32>
    %20 = vector.broadcast %4 : vector<1x32xf32> to vector<128x32xf32>
    %21 = arith.addf %19, %20 : vector<128x32xf32>
    %c16 = arith.constant 16 : index
    %c0_13 = arith.constant 0 : index
    %22 = vector.load %arg3[%c16, %c0_13] : memref<224x256xf32, #tpu.memory_space<vmem>>, vector<32x256xf32>
    %cst_14 = arith.constant dense<0.000000e+00> : vector<128x256xf32>
    %23 = tpu.matmul %21, %22, %cst_14 {dimension_numbers = #tpu.dot_dimension_numbers<[1], [0], [0], [1], [0, 0, 1, 1], [], []>} : vector<128x32xf32>, vector<32x256xf32>, vector<128x256xf32> -> vector<128x256xf32>
    %24 = vector.extract_strided_slice %23 {offsets = [0, 0], sizes = [128, 32], strides = [1, 1]} : vector<128x256xf32> to vector<128x32xf32>
    %25 = vector.broadcast %1 : vector<128x1xf32> to vector<128x32xf32>
    %26 = arith.mulf %25, %24 : vector<128x32xf32>
    %27 = vector.broadcast %5 : vector<1x32xf32> to vector<128x32xf32>
    %28 = arith.addf %26, %27 : vector<128x32xf32>
    %cst_15 = arith.constant 0.000000e+00 : f32
    %29 = vector.broadcast %cst_15 : f32 to vector<128x32xf32>
    %30 = arith.maximumf %28, %29 : vector<128x32xf32>
    %c112 = arith.constant 112 : index
    %c0_16 = arith.constant 0 : index
    %31 = vector.load %arg3[%c112, %c0_16] : memref<224x256xf32, #tpu.memory_space<vmem>>, vector<32x32xf32>
    %cst_17 = arith.constant dense<0.000000e+00> : vector<128x32xf32>
    %32 = tpu.matmul %30, %31, %cst_17 {dimension_numbers = #tpu.dot_dimension_numbers<[1], [0], [0], [1], [0, 0, 1, 1], [], []>} : vector<128x32xf32>, vector<32x32xf32>, vector<128x32xf32> -> vector<128x32xf32>
    %33 = vector.broadcast %6 : vector<1x32xf32> to vector<128x32xf32>
    %34 = arith.addf %32, %33 : vector<128x32xf32>
    %cst_18 = arith.constant 0.000000e+00 : f32
    %35 = vector.broadcast %cst_18 : f32 to vector<128x32xf32>
    %36 = arith.maximumf %34, %35 : vector<128x32xf32>
    %37 = arith.addf %12, %23 : vector<128x256xf32>
    %c48 = arith.constant 48 : index
    %c0_19 = arith.constant 0 : index
    %38 = vector.load %arg3[%c48, %c0_19] : memref<224x256xf32, #tpu.memory_space<vmem>>, vector<32x256xf32>
    %cst_20 = arith.constant dense<0.000000e+00> : vector<128x256xf32>
    %39 = tpu.matmul %36, %38, %cst_20 {dimension_numbers = #tpu.dot_dimension_numbers<[1], [0], [0], [1], [0, 0, 1, 1], [], []>} : vector<128x32xf32>, vector<32x256xf32>, vector<128x256xf32> -> vector<128x256xf32>
    %40 = arith.addf %37, %39 : vector<128x256xf32>
    %41 = vector.broadcast %7 : vector<1x256xf32> to vector<128x256xf32>
    %42 = arith.addf %40, %41 : vector<128x256xf32>
    %cst_21 = arith.constant 0.000000e+00 : f32
    %43 = vector.broadcast %cst_21 : f32 to vector<128x256xf32>
    %44 = arith.maximumf %42, %43 : vector<128x256xf32>
    %45 = vector.broadcast %8 : vector<1x256xf32> to vector<128x256xf32>
    %46 = arith.mulf %44, %45 : vector<128x256xf32>
    %cst_22 = arith.constant dense<0.000000e+00> : vector<128xf32>
    %47 = vector.multi_reduction <add>, %46, %cst_22 [1] : vector<128x256xf32> to vector<128xf32>
    %48 = vector.shape_cast %47 : vector<128xf32> to vector<128x1xf32>
    %49 = vector.extract_strided_slice %10 {offsets = [0, 0], sizes = [1, 1], strides = [1, 1]} : vector<1x2xf32> to vector<1x1xf32>
    %50 = vector.broadcast %49 : vector<1x1xf32> to vector<128x1xf32>
    %51 = arith.addf %48, %50 : vector<128x1xf32>
    %52 = vector.broadcast %9 : vector<1x256xf32> to vector<128x256xf32>
    %53 = arith.mulf %44, %52 : vector<128x256xf32>
    %cst_23 = arith.constant dense<0.000000e+00> : vector<128xf32>
    %54 = vector.multi_reduction <add>, %53, %cst_23 [1] : vector<128x256xf32> to vector<128xf32>
    %55 = vector.shape_cast %54 : vector<128xf32> to vector<128x1xf32>
    %56 = vector.extract_strided_slice %10 {offsets = [0, 1], sizes = [1, 1], strides = [1, 1]} : vector<1x2xf32> to vector<1x1xf32>
    %57 = vector.broadcast %56 : vector<1x1xf32> to vector<128x1xf32>
    %58 = arith.addf %55, %57 : vector<128x1xf32>
    %c0_24 = arith.constant 0 : index
    %c0_25 = arith.constant 0 : index
    %59 = vector.load %arg4[%c0_24, %c0_25] : memref<128x40xf32, #tpu.memory_space<vmem>>, vector<128x32xf32>
    tpu.vector_store %arg4[%c0_24, %c0_25], %21 {strides = array<i32>} : memref<128x40xf32, #tpu.memory_space<vmem>>, vector<128x32xf32>,
    %60 = tpu.concatenate %51, %58 in 1 : vector<128x1xf32>, vector<128x1xf32> -> vector<128x2xf32>
    %c0_26 = arith.constant 0 : index
    %c32 = arith.constant 32 : index
    %61 = vector.load %arg4[%c0_26, %c32] : memref<128x40xf32, #tpu.memory_space<vmem>>, vector<128x2xf32>
    tpu.vector_store %arg4[%c0_26, %c32], %60 {strides = array<i32>} : memref<128x40xf32, #tpu.memory_space<vmem>>, vector<128x2xf32>,
    return
  }
  func.func @transform_0(%arg0: i32) -> (i32, i32) {
    %c0_i32 = arith.constant 0 : i32
    %c0_i32_0 = arith.constant 0 : i32
    return %arg0, %c0_i32 : i32, i32
  }
  func.func @transform_1(%arg0: i32) -> (i32, i32) {
    %c0_i32 = arith.constant 0 : i32
    %c0_i32_0 = arith.constant 0 : i32
    return %arg0, %c0_i32 : i32, i32
  }
  func.func @transform_2(%arg0: i32) -> (i32, i32) {
    %c0_i32 = arith.constant 0 : i32
    %c0_i32_0 = arith.constant 0 : i32
    %c0_i32_1 = arith.constant 0 : i32
    return %c0_i32, %c0_i32_0 : i32, i32
  }
  func.func @transform_3(%arg0: i32) -> (i32, i32) {
    %c0_i32 = arith.constant 0 : i32
    %c0_i32_0 = arith.constant 0 : i32
    return %arg0, %c0_i32 : i32, i32
  }
}

module attributes {stable_mosaic.version = 11 : i64} {
  func.func @hypersci_kernel(%arg0: i32, %arg1: memref<128x16xf32, #tpu.memory_space<vmem>>, %arg2: memref<128x1xf32, #tpu.memory_space<vmem>>, %arg3: memref<224x256xf32, #tpu.memory_space<vmem>>, %arg4: memref<128x40xf32, #tpu.memory_space<vmem>>) attributes {dimension_semantics = [#tpu.dimension_semantics<parallel>], iteration_bounds = array<i64: 2>, scalar_prefetch = 0 : i64, scratch_operands = 0 : i64, tpu.core_type = #tpu.core_type<tc>, window_params = [{transform_indices = @transform_0, window_bounds = array<i64: 128, 16>}, {transform_indices = @transform_1, window_bounds = array<i64: 128, 1>}, {pipeline_mode = #tpu.pipeline_mode<synchronous>, transform_indices = @transform_2, window_bounds = array<i64: 224, 256>}, {transform_indices = @transform_3, window_bounds = array<i64: 128, 40>}]} {
    %c0 = arith.constant 0 : index
    %c0_0 = arith.constant 0 : index
    %0 = vector.load %arg1[%c0, %c0_0] : memref<128x16xf32, #tpu.memory_space<vmem>>, vector<128x16xf32>
    %c0_1 = arith.constant 0 : index
    %c0_2 = arith.constant 0 : index
    %1 = vector.load %arg2[%c0_1, %c0_2] : memref<128x1xf32, #tpu.memory_space<vmem>>, vector<128x1xf32>
    %c144 = arith.constant 144 : index
    %c0_3 = arith.constant 0 : index
    %2 = vector.load %arg3[%c144, %c0_3] : memref<224x256xf32, #tpu.memory_space<vmem>>, vector<1x256xf32>
    %3 = vector.extract_strided_slice %2 {offsets = [0, 0], sizes = [1, 32], strides = [1, 1]} : vector<1x256xf32> to vector<1x32xf32>
    %4 = vector.extract_strided_slice %2 {offsets = [0, 32], sizes = [1, 32], strides = [1, 1]} : vector<1x256xf32> to vector<1x32xf32>
    %5 = vector.extract_strided_slice %2 {offsets = [0, 64], sizes = [1, 32], strides = [1, 1]} : vector<1x256xf32> to vector<1x32xf32>
    %6 = vector.extract_strided_slice %2 {offsets = [0, 96], sizes = [1, 32], strides = [1, 1]} : vector<1x256xf32> to vector<1x32xf32>
    %c160 = arith.constant 160 : index
    %c0_4 = arith.constant 0 : index
    %7 = vector.load %arg3[%c160, %c0_4] : memref<224x256xf32, #tpu.memory_space<vmem>>, vector<1x256xf32>
    %c176 = arith.constant 176 : index
    %c0_5 = arith.constant 0 : index
    %8 = vector.load %arg3[%c176, %c0_5] : memref<224x256xf32, #tpu.memory_space<vmem>>, vector<1x256xf32>
    %c192 = arith.constant 192 : index
    %c0_6 = arith.constant 0 : index
    %9 = vector.load %arg3[%c192, %c0_6] : memref<224x256xf32, #tpu.memory_space<vmem>>, vector<1x256xf32>
    %c208 = arith.constant 208 : index
    %c0_7 = arith.constant 0 : index
    %10 = vector.load %arg3[%c208, %c0_7] : memref<224x256xf32, #tpu.memory_space<vmem>>, vector<1x2xf32>
    %c0_8 = arith.constant 0 : index
    %c0_9 = arith.constant 0 : index
    %11 = vector.load %arg3[%c0_8, %c0_9] : memref<224x256xf32, #tpu.memory_space<vmem>>, vector<16x256xf32>
    %cst = arith.constant dense<0.000000e+00> : vector<128x256xf32>
    %12 = tpu.matmul %0, %11, %cst {dimension_numbers = #tpu.dot_dimension_numbers<[1], [0], [0], [1], [0, 0, 1, 1], [], []>} : vector<128x16xf32>, vector<16x256xf32>, vector<128x256xf32> -> vector<128x256xf32>
    %13 = vector.extract_strided_slice %12 {offsets = [0, 0], sizes = [128, 32], strides = [1, 1]} : vector<128x256xf32> to vector<128x32xf32>
    %14 = vector.broadcast %3 : vector<1x32xf32> to vector<128x32xf32>
    %15 = arith.addf %13, %14 : vector<128x32xf32>
    %cst_10 = arith.constant 0.000000e+00 : f32
    %16 = vector.broadcast %cst_10 : f32 to vector<128x32xf32>
    %17 = arith.maximumf %15, %16 : vector<128x32xf32>
    %c80 = arith.constant 80 : index
    %c0_11 = arith.constant 0 : index
    %18 = vector.load %arg3[%c80, %c0_11] : memref<224x256xf32, #tpu.memory_space<vmem>>, vector<32x32xf32>
    %cst_12 = arith.constant dense<0.000000e+00> : vector<128x32xf32>
    %19 = tpu.matmul %17, %18, %cst_12 {dimension_numbers = #tpu.dot_dimension_numbers<[1], [0], [0], [1], [0, 0, 1, 1], [], []>} : vector<128x32xf32>, vector<32x32xf32>, vector<128x32xf32> -> vector<128x32xf32>
    %20 = vector.broadcast %4 : vector<1x32xf32> to vector<128x32xf32>
    %21 = arith.addf %19, %20 : vector<128x32xf32>
    %c16 = arith.constant 16 : index
    %c0_13 = arith.constant 0 : index
    %22 = vector.load %arg3[%c16, %c0_13] : memref<224x256xf32, #tpu.memory_space<vmem>>, vector<32x256xf32>
    %cst_14 = arith.constant dense<0.000000e+00> : vector<128x256xf32>
    %23 = tpu.matmul %21, %22, %cst_14 {dimension_numbers = #tpu.dot_dimension_numbers<[1], [0], [0], [1], [0, 0, 1, 1], [], []>} : vector<128x32xf32>, vector<32x256xf32>, vector<128x256xf32> -> vector<128x256xf32>
    %24 = vector.extract_strided_slice %23 {offsets = [0, 0], sizes = [128, 32], strides = [1, 1]} : vector<128x256xf32> to vector<128x32xf32>
    %25 = vector.broadcast %1 : vector<128x1xf32> to vector<128x32xf32>
    %26 = arith.mulf %25, %24 : vector<128x32xf32>
    %27 = vector.broadcast %5 : vector<1x32xf32> to vector<128x32xf32>
    %28 = arith.addf %26, %27 : vector<128x32xf32>
    %cst_15 = arith.constant 0.000000e+00 : f32
    %29 = vector.broadcast %cst_15 : f32 to vector<128x32xf32>
    %30 = arith.maximumf %28, %29 : vector<128x32xf32>
    %c112 = arith.constant 112 : index
    %c0_16 = arith.constant 0 : index
    %31 = vector.load %arg3[%c112, %c0_16] : memref<224x256xf32, #tpu.memory_space<vmem>>, vector<32x32xf32>
    %cst_17 = arith.constant dense<0.000000e+00> : vector<128x32xf32>
    %32 = tpu.matmul %30, %31, %cst_17 {dimension_numbers = #tpu.dot_dimension_numbers<[1], [0], [0], [1], [0, 0, 1, 1], [], []>} : vector<128x32xf32>, vector<32x32xf32>, vector<128x32xf32> -> vector<128x32xf32>
    %33 = vector.broadcast %6 : vector<1x32xf32> to vector<128x32xf32>
    %34 = arith.addf %32, %33 : vector<128x32xf32>
    %cst_18 = arith.constant 0.000000e+00 : f32
    %35 = vector.broadcast %cst_18 : f32 to vector<128x32xf32>
    %36 = arith.maximumf %34, %35 : vector<128x32xf32>
    %37 = arith.addf %12, %23 : vector<128x256xf32>
    %c48 = arith.constant 48 : index
    %c0_19 = arith.constant 0 : index
    %38 = vector.load %arg3[%c48, %c0_19] : memref<224x256xf32, #tpu.memory_space<vmem>>, vector<32x256xf32>
    %cst_20 = arith.constant dense<0.000000e+00> : vector<128x256xf32>
    %39 = tpu.matmul %36, %38, %cst_20 {dimension_numbers = #tpu.dot_dimension_numbers<[1], [0], [0], [1], [0, 0, 1, 1], [], []>} : vector<128x32xf32>, vector<32x256xf32>, vector<128x256xf32> -> vector<128x256xf32>
    %40 = arith.addf %37, %39 : vector<128x256xf32>
    %41 = vector.broadcast %7 : vector<1x256xf32> to vector<128x256xf32>
    %42 = arith.addf %40, %41 : vector<128x256xf32>
    %cst_21 = arith.constant 0.000000e+00 : f32
    %43 = vector.broadcast %cst_21 : f32 to vector<128x256xf32>
    %44 = arith.maximumf %42, %43 : vector<128x256xf32>
    %45 = vector.broadcast %8 : vector<1x256xf32> to vector<128x256xf32>
    %46 = arith.mulf %44, %45 : vector<128x256xf32>
    %cst_22 = arith.constant dense<0.000000e+00> : vector<128xf32>
    %47 = vector.multi_reduction <add>, %46, %cst_22 [1] : vector<128x256xf32> to vector<128xf32>
    %48 = vector.shape_cast %47 : vector<128xf32> to vector<128x1xf32>
    %49 = vector.extract_strided_slice %10 {offsets = [0, 0], sizes = [1, 1], strides = [1, 1]} : vector<1x2xf32> to vector<1x1xf32>
    %50 = vector.broadcast %49 : vector<1x1xf32> to vector<128x1xf32>
    %51 = arith.addf %48, %50 : vector<128x1xf32>
    %52 = vector.broadcast %9 : vector<1x256xf32> to vector<128x256xf32>
    %53 = arith.mulf %44, %52 : vector<128x256xf32>
    %cst_23 = arith.constant dense<0.000000e+00> : vector<128xf32>
    %54 = vector.multi_reduction <add>, %53, %cst_23 [1] : vector<128x256xf32> to vector<128xf32>
    %55 = vector.shape_cast %54 : vector<128xf32> to vector<128x1xf32>
    %56 = vector.extract_strided_slice %10 {offsets = [0, 1], sizes = [1, 1], strides = [1, 1]} : vector<1x2xf32> to vector<1x1xf32>
    %57 = vector.broadcast %56 : vector<1x1xf32> to vector<128x1xf32>
    %58 = arith.addf %55, %57 : vector<128x1xf32>
    %c0_24 = arith.constant 0 : index
    %c0_25 = arith.constant 0 : index
    %59 = vector.load %arg4[%c0_24, %c0_25] : memref<128x40xf32, #tpu.memory_space<vmem>>, vector<128x32xf32>
    tpu.vector_store %arg4[%c0_24, %c0_25], %21 {strides = array<i32>} : memref<128x40xf32, #tpu.memory_space<vmem>>, vector<128x32xf32>,
    %60 = tpu.concatenate %51, %58 in 1 : vector<128x1xf32>, vector<128x1xf32> -> vector<128x2xf32>
    %c0_26 = arith.constant 0 : index
    %c32 = arith.constant 32 : index
    %61 = vector.load %arg4[%c0_26, %c32] : memref<128x40xf32, #tpu.memory_space<vmem>>, vector<128x2xf32>
    tpu.vector_store %arg4[%c0_26, %c32], %60 {strides = array<i32>} : memref<128x40xf32, #tpu.memory_space<vmem>>, vector<128x2xf32>,
    return
  }
  func.func @transform_0(%arg0: i32) -> (i32, i32) {
    %c0_i32 = arith.constant 0 : i32
    %c0_i32_0 = arith.constant 0 : i32
    return %arg0, %c0_i32 : i32, i32
  }
  func.func @transform_1(%arg0: i32) -> (i32, i32) {
    %c0_i32 = arith.constant 0 : i32
    %c0_i32_0 = arith.constant 0 : i32
    return %arg0, %c0_i32 : i32, i32
  }
  func.func @transform_2(%arg0: i32) -> (i32, i32) {
    %c0_i32 = arith.constant 0 : i32
    %c0_i32_0 = arith.constant 0 : i32
    %c0_i32_1 = arith.constant 0 : i32
    return %c0_i32, %c0_i32_0 : i32, i32
  }
  func.func @transform_3(%arg0: i32) -> (i32, i32) {
    %c0_i32 = arith.constant 0 : i32
    %c0_i32_0 = arith.constant 0 : i32
    return %arg0, %c0_i32 : i32, i32
  }
}

</mosaic_0001>

<llo_original>
// kernel: tpu_custom_call.1
$region0: #{tpu_custom_call.1}
  #allocation0 [shape = 'u32[]', space=smem, size = 0x4, offset = 0x4, fixed_abs, tag = 'smem constant byte address 0x4 - core index']
  #allocation1 [shape = 'u32[72,128]{1,0:T(1,128)}', space=vmem, size = 0x9000, scoped, tag = 'internal scratch']
  %s0 = inlined_call_operand.vmem [shape: f32[256,16], index: 0, kind: input, shape index: {}]
  %s1 = inlined_call_operand.vmem [shape: f32[256,1], index: 1, kind: input, shape index: {}]
  %s2 = inlined_call_operand.vmem [shape: f32[224,256], index: 2, kind: input, shape index: {}]
  %s3 = inlined_call_operand.vmem [shape: f32[256,40], index: 3, kind: output, shape index: {}]
  %s4 = sld [smem:[#allocation0]]
  $region45: #{tpu_custom_call.1} parent=0
    _
  %s6 = ssub.s32 1, %s4
  %s7 = scalar_select 0, %s6, %s4
  loop: start=0, step=1, limit=4
  $region2: #{tpu_custom_call.1} parent=0 // loop_pre_header
    _
  $region3: #{tpu_custom_call.1} parent=0 // loop_header
    %s9 = sphi 0, %s13
    %p10 = scmp.ge.s32.totalorder %s9, 4
    %s19 = sphi 0, %s21
    %s22 = sphi 0, %s19
    %s23 = sphi 0, %s22
    %s39 = sphi 0, %s23
    %s45 = sphi 0, %s47
    %s48 = sphi 0, %s45
    %s49 = sphi 0, %s48
    %s65 = sphi 0, %s49
    %s69 = sphi 0, %s69
    %s71 = sphi 0, %s69
    %s72 = sphi 0, %s71
    %s86 = sphi 0, %s72
    %s92 = sphi 0, %s94
    %s95 = sphi 0, %s92
    %s96 = sphi 0, %s95
    %s112 = sphi 0, %s96
  $region4: #{tpu_custom_call.1} parent=0 // loop_header_branch
    %12 = sbr.rel (%p10) target = $region8
  $region5: #{tpu_custom_call.1} parent=0 // loop_body
    %s14 = ssub.s32 %s9, 1
    %s15 = ssub.s32 %s9, 2
    %s16 = sadd.s32 %s9, 1
    %s17 = ssub.s32 %s9, %s16
    %p18 = scmp.eq.s32.totalorder %s17, 0
    %s20 = sadd.s32 %s19, 1
    %s21 = scalar_select %p18, %s19, %s20
    %p24 = pneg %p18
    %p25 = scmp.eq.s32.totalorder %s9, 1
    %p26 = por %p24, %p25
    %p27 = scmp.ne.s32.totalorder %s19, %s22
    %p28 = scmp.eq.s32.totalorder %s9, 0
    %p29 = por %p27, %p28
    %p30 = scmp.ne.s32.totalorder %s19, %s22
    %p31 = scmp.eq.s32.totalorder %s14, 1
    %p32 = por %p30, %p31
    %p33 = scmp.ne.s32.totalorder %s22, %s23
    %p34 = scmp.eq.s32.totalorder %s14, 0
    %p35 = por %p33, %p34
    %p36 = scmp.ne.s32.totalorder %s22, %s23
    %p37 = scmp.eq.s32.totalorder %s15, 1
    %p38 = por %p36, %p37
    %p40 = scmp.ne.s32.totalorder %s23, %s39
    %p41 = scmp.eq.s32.totalorder %s15, 0
    %p42 = por %p40, %p41
    %s43 = ssub.s32 %s9, %s16
    %p44 = scmp.eq.s32.totalorder %s43, 0
    %s46 = sadd.s32 %s45, 1
    %s47 = scalar_select %p44, %s45, %s46
    %p50 = pneg %p44
    %p51 = scmp.eq.s32.totalorder %s9, 1
    %p52 = por %p50, %p51
    %p53 = scmp.ne.s32.totalorder %s45, %s48
    %p54 = scmp.eq.s32.totalorder %s9, 0
    %p55 = por %p53, %p54
    %p56 = scmp.ne.s32.totalorder %s45, %s48
    %p57 = scmp.eq.s32.totalorder %s14, 1
    %p58 = por %p56, %p57
    %p59 = scmp.ne.s32.totalorder %s48, %s49
    %p60 = scmp.eq.s32.totalorder %s14, 0
    %p61 = por %p59, %p60
    %p62 = scmp.ne.s32.totalorder %s48, %s49
    %p63 = scmp.eq.s32.totalorder %s15, 1
    %p64 = por %p62, %p63
    %p66 = scmp.ne.s32.totalorder %s49, %s65
    %p67 = scmp.eq.s32.totalorder %s15, 0
    %p68 = por %p66, %p67
    %s70 = sadd.s32 %s69, 1
    %p73 = scmp.eq.s32.totalorder %s9, 1
    %p74 = scmp.ne.s32.totalorder %s69, %s71
    %p75 = scmp.eq.s32.totalorder %s9, 0
    %p76 = por %p74, %p75
    %p77 = scmp.ne.s32.totalorder %s69, %s71
    %p78 = scmp.eq.s32.totalorder %s14, 1
    %p79 = por %p77, %p78
    %p80 = scmp.ne.s32.totalorder %s71, %s72
    %p81 = scmp.eq.s32.totalorder %s14, 0
    %p82 = por %p80, %p81
    %p83 = scmp.ne.s32.totalorder %s71, %s72
    %p84 = scmp.eq.s32.totalorder %s15, 1
    %p85 = por %p83, %p84
    %p87 = scmp.ne.s32.totalorder %s72, %s86
    %p88 = scmp.eq.s32.totalorder %s15, 0
    %p89 = por %p87, %p88
    %s90 = ssub.s32 %s9, %s16
    %p91 = scmp.eq.s32.totalorder %s90, 0
    %s93 = sadd.s32 %s92, 1
    %s94 = scalar_select %p91, %s92, %s93
    %p97 = pneg %p91
    %p98 = scmp.eq.s32.totalorder %s9, 1
    %p99 = por %p97, %p98
    %p100 = scmp.ne.s32.totalorder %s92, %s95
    %p101 = scmp.eq.s32.totalorder %s9, 0
    %p102 = por %p100, %p101
    %p103 = scmp.ne.s32.totalorder %s92, %s95
    %p104 = scmp.eq.s32.totalorder %s14, 1
    %p105 = por %p103, %p104
    %p106 = scmp.ne.s32.totalorder %s95, %s96
    %p107 = scmp.eq.s32.totalorder %s14, 0
    %p108 = por %p106, %p107
    %p109 = scmp.ne.s32.totalorder %s95, %s96
    %p110 = scmp.eq.s32.totalorder %s15, 1
    %p111 = por %p109, %p110
    %p113 = scmp.ne.s32.totalorder %s96, %s112
    %p114 = scmp.eq.s32.totalorder %s15, 0
    %p115 = por %p113, %p114
    %p116 = scmp.le.s32.totalorder 1, %s9
    %p117 = scmp.lt.s32.totalorder %s9, 3
    %p118 = pnand %p116, %p117
    %p119 = pneg %p118
    // Predicated region
    $region9: #{tpu_custom_call.1} parent=5 // pred_check
      _
    $region10: #{tpu_custom_call.1} parent=5 // pred_check_branch
      %121 = sbr.rel (%p118) target = $region12
    $region11: #{tpu_custom_call.1} parent=5 // pred_region
      %s122 = ssub.s32 %s9, 1
      // Predicated region
      $region13: #{tpu_custom_call.1} parent=11 // pred_check
        %p123 = pneg %p82
      $region14: #{tpu_custom_call.1} parent=11 // pred_check_branch
        %125 = sbr.rel (%p123) target = $region16
      $region15: #{tpu_custom_call.1} parent=11 // pred_region
        _
      $region16: #{tpu_custom_call.1} parent=11 // pred_fallthru
        _
    $region12: #{tpu_custom_call.1} parent=5 // pred_fallthru
      _
    %p126 = scmp.lt.s32.totalorder %s9, 2
    // Predicated region
    $region17: #{tpu_custom_call.1} parent=5 // pred_check
      %p127 = pneg %p126
    $region18: #{tpu_custom_call.1} parent=5 // pred_check_branch
      %129 = sbr.rel (%p127) target = $region20
    $region19: #{tpu_custom_call.1} parent=5 // pred_region
      // Predicated region
      $region21: #{tpu_custom_call.1} parent=19 // pred_check
        %p130 = pneg %p29
      $region22: #{tpu_custom_call.1} parent=19 // pred_check_branch
        %132 = sbr.rel (%p130) target = $region24
      $region23: #{tpu_custom_call.1} parent=19 // pred_region
        %s133 = smul.u32 16, %s9
        %p134 = scmp.lt.s32.totalorder %s133, 31
        %s135 = scalar_select %p134, %s133, 31
        %s136 = smul.addr %s135, 8
        %s137 = scalar_lea.vmem %s0, %s136
        %s138 = smul.u32 16, %s9
      $region24: #{tpu_custom_call.1} parent=19 // pred_fallthru
        _
      // Predicated region
      $region25: #{tpu_custom_call.1} parent=19 // pred_check
        %p139 = pneg %p55
      $region26: #{tpu_custom_call.1} parent=19 // pred_check_branch
        %141 = sbr.rel (%p139) target = $region28
      $region27: #{tpu_custom_call.1} parent=19 // pred_region
        %s142 = smul.u32 16, %s9
        %p143 = scmp.lt.s32.totalorder %s142, 31
        %s144 = scalar_select %p143, %s142, 31
        %s145 = smul.addr %s144, 8
        %s146 = scalar_lea.vmem %s1, %s145
        %s147 = smul.u32 16, %s9
      $region28: #{tpu_custom_call.1} parent=19 // pred_fallthru
        _
    $region20: #{tpu_custom_call.1} parent=5 // pred_fallthru
      _
    %p148 = scmp.le.s32.totalorder 1, %s9
    %p149 = scmp.lt.s32.totalorder %s9, 3
    %p150 = pnand %p148, %p149
    %p151 = pneg %p150
    // Predicated region
    $region29: #{tpu_custom_call.1} parent=5 // pred_check
      _
    $region30: #{tpu_custom_call.1} parent=5 // pred_check_branch
      %153 = sbr.rel (%p150) target = $region32
    $region31: #{tpu_custom_call.1} parent=5 // pred_region
      %s154 = ssub.s32 %s9, 1
      %s155 = smul.u32 16, %s14
      %p156 = scmp.lt.s32.totalorder %s155, 31
      %s157 = scalar_select %p156, %s155, 31
      %s158 = smul.addr %s157, 8
      %s159 = scalar_lea.vmem %s0, %s158
      %p160 = pneg %p35
      %p161 = pneg %p32
      %s162 = smul.u32 16, %s14
      %p163 = scmp.lt.s32.totalorder %s162, 31
      %s164 = scalar_select %p163, %s162, 31
      %s165 = smul.addr %s164, 8
      %s166 = scalar_lea.vmem %s1, %s165
      %p167 = pneg %p61
      %p168 = pneg %p58
      %p169 = pneg %p82
      %p170 = pneg %p79
      %p171 = pneg %p108
      %p172 = pneg %p105
      %s173 = smul.u32 16, %s14
      %p174 = scmp.lt.s32.totalorder %s173, 31
      %s175 = scalar_select %p174, %s173, 31
      %s176 = smul.addr %s175, 8
      %s177 = scalar_lea.vmem %s3, %s176
      %s178 = smul.u32 16, %s14
      %p179 = scmp.lt.s32.totalorder %s178, 31
      %s180 = scalar_select %p179, %s178, 31
      %s181 = smul.addr %s180, 8
      %s182 = scalar_lea.vmem %s0, %s181
      %s183 = smul.u32 16, %s14
      %s184 = smul.u32 16, %s14
      %p185 = scmp.lt.s32.totalorder %s184, 31
      %s186 = scalar_select %p185, %s184, 31
      %s187 = smul.addr %s186, 8
      %s188 = scalar_lea.vmem %s1, %s187
      %s189 = smul.u32 16, %s14
      %s190 = smul.u32 16, %s14
      %p191 = scmp.lt.s32.totalorder %s190, 31
      %s192 = scalar_select %p191, %s190, 31
      %s193 = smul.addr %s192, 8
      %s194 = scalar_lea.vmem %s3, %s193
      %s195 = smul.u32 16, %s14
      %v196 = vld [vmem:[%s182] sm:$0xff]
      %v197 = vld [vmem:[%s182 + $0x8] sm:$0xff]
      %v198 = vld [vmem:[%s182 + $0x10] sm:$0xff]
      %v199 = vld [vmem:[%s182 + $0x18] sm:$0xff]
      %v200 = vld [vmem:[%s182 + $0x20] sm:$0xff]
      %v201 = vld [vmem:[%s182 + $0x28] sm:$0xff]
      %v202 = vld [vmem:[%s182 + $0x30] sm:$0xff]
      %v203 = vld [vmem:[%s182 + $0x38] sm:$0xff]
      %v204 = vld [vmem:[%s182 + $0x40] sm:$0xff]
      %v205 = vld [vmem:[%s182 + $0x48] sm:$0xff]
      %v206 = vld [vmem:[%s182 + $0x50] sm:$0xff]
      %v207 = vld [vmem:[%s182 + $0x58] sm:$0xff]
      %v208 = vld [vmem:[%s182 + $0x60] sm:$0xff]
      %v209 = vld [vmem:[%s182 + $0x68] sm:$0xff]
      %v210 = vld [vmem:[%s182 + $0x70] sm:$0xff]
      %v211 = vld [vmem:[%s182 + $0x78] sm:$0xff]
      %v212 = vld [vmem:[%s188] sm:$0xff]
      %v213 = vld [vmem:[%s188 + $0x8] sm:$0xff]
      %v214 = vld [vmem:[%s188 + $0x10] sm:$0xff]
      %v215 = vld [vmem:[%s188 + $0x18] sm:$0xff]
      %v216 = vld [vmem:[%s188 + $0x20] sm:$0xff]
      %v217 = vld [vmem:[%s188 + $0x28] sm:$0xff]
      %v218 = vld [vmem:[%s188 + $0x30] sm:$0xff]
      %v219 = vld [vmem:[%s188 + $0x38] sm:$0xff]
      %v220 = vld [vmem:[%s188 + $0x40] sm:$0xff]
      %v221 = vld [vmem:[%s188 + $0x48] sm:$0xff]
      %v222 = vld [vmem:[%s188 + $0x50] sm:$0xff]
      %v223 = vld [vmem:[%s188 + $0x58] sm:$0xff]
      %v224 = vld [vmem:[%s188 + $0x60] sm:$0xff]
      %v225 = vld [vmem:[%s188 + $0x68] sm:$0xff]
      %v226 = vld [vmem:[%s188 + $0x70] sm:$0xff]
      %v227 = vld [vmem:[%s188 + $0x78] sm:$0xff]
      %s228 = scalar_lea.vmem %s2, 288
      %v229 = vld [vmem:[%s228] ss:$8 sm:$0x3]
      %s230 = scalar_lea.vmem %s2, 320
      %v231 = vld [vmem:[%s230] ss:$8 sm:$0x3]
      %s232 = scalar_lea.vmem %s2, 352
      %v233 = vld [vmem:[%s232] ss:$8 sm:$0x3]
      %s234 = scalar_lea.vmem %s2, 384
      %v235 = vld [vmem:[%s234] ss:$8 sm:$0x3]
      %v236 = vld [vmem:[%s2 + $0x1a0] ss:$0 sm:$0xff]
      %v237 = vld [vmem:[%s2] sm:$0xff]
      %v238 = vld [vmem:[%s2 + $0x8] sm:$0xff]
      %v239 = vld [vmem:[%s2 + $0x10] sm:$0xff]
      %v240 = vld [vmem:[%s2 + $0x18] sm:$0xff]
      %vm241 = vcmask 130048
      %v243 = vsel %vm241, %v196, 0
      %v246 = vsel %vm241, %v197, 0
      %v249 = vsel %vm241, %v198, 0
      %v252 = vsel %vm241, %v199, 0
      %v255 = vsel %vm241, %v200, 0
      %v258 = vsel %vm241, %v201, 0
      %v261 = vsel %vm241, %v202, 0
      %v264 = vsel %vm241, %v203, 0
      %v267 = vsel %vm241, %v204, 0
      %v270 = vsel %vm241, %v205, 0
      %v273 = vsel %vm241, %v206, 0
      %v276 = vsel %vm241, %v207, 0
      %v279 = vsel %vm241, %v208, 0
      %v282 = vsel %vm241, %v209, 0
      %v285 = vsel %vm241, %v210, 0
      %v288 = vsel %vm241, %v211, 0
      %290 = vmatpush.msra.mxu0 0.0
      %291 = vmatpush.msra.mxu0 0.0
      %292 = vmatpush.msra.mxu0 0.0
      %293 = vmatpush.msra.mxu0 0.0
      %294 = vmatpush.msra.mxu0 0.0
      %295 = vmatpush.msra.mxu0 0.0
      %296 = vmatpush.msra.mxu0 0.0
      %297 = vmatpush.msra.mxu0 0.0
      %298 = vmatpush.msra.mxu0 0.0
      %299 = vmatpush.msra.mxu0 0.0
      %300 = vmatpush.msra.mxu0 0.0
      %301 = vmatpush.msra.mxu0 0.0
      %302 = vmatpush.msra.mxu0 0.0
      %303 = vmatpush.msra.mxu0 0.0
      %304 = vmatpush.msra.mxu0 %v239
      %305 = vmatpush.msra.mxu0 %v237
      %306 = vmatmul.f32.gmra.mxu0 %v243
      %v307 = vpop.f32.mrf.mxu0
      %v308 = vadd.f32 0.0, %v307
      %309 = vmatmul.f32.gmra.mxu0 %v246
      %v310 = vpop.f32.mrf.mxu0
      %v311 = vadd.f32 0.0, %v310
      %312 = vmatmul.f32.gmra.mxu0 %v249
      %v313 = vpop.f32.mrf.mxu0
      %v314 = vadd.f32 0.0, %v313
      %315 = vmatmul.f32.gmra.mxu0 %v252
      %v316 = vpop.f32.mrf.mxu0
      %v317 = vadd.f32 0.0, %v316
      %318 = vmatmul.f32.gmra.mxu0 %v255
      %v319 = vpop.f32.mrf.mxu0
      %v320 = vadd.f32 0.0, %v319
      %321 = vmatmul.f32.gmra.mxu0 %v258
      %v322 = vpop.f32.mrf.mxu0
      %v323 = vadd.f32 0.0, %v322
      %324 = vmatmul.f32.gmra.mxu0 %v261
      %v325 = vpop.f32.mrf.mxu0
      %v326 = vadd.f32 0.0, %v325
      %327 = vmatmul.f32.gmra.mxu0 %v264
      %v328 = vpop.f32.mrf.mxu0
      %v329 = vadd.f32 0.0, %v328
      %330 = vmatmul.f32.gmra.mxu0 %v267
      %v331 = vpop.f32.mrf.mxu0
      %v332 = vadd.f32 0.0, %v331
      %333 = vmatmul.f32.gmra.mxu0 %v270
      %v334 = vpop.f32.mrf.mxu0
      %v335 = vadd.f32 0.0, %v334
      %336 = vmatmul.f32.gmra.mxu0 %v273
      %v337 = vpop.f32.mrf.mxu0
      %v338 = vadd.f32 0.0, %v337
      %339 = vmatmul.f32.gmra.mxu0 %v276
      %v340 = vpop.f32.mrf.mxu0
      %v341 = vadd.f32 0.0, %v340
      %342 = vmatmul.f32.gmra.mxu0 %v279
      %v343 = vpop.f32.mrf.mxu0
      %v344 = vadd.f32 0.0, %v343
      %345 = vmatmul.f32.gmra.mxu0 %v282
      %v346 = vpop.f32.mrf.mxu0
      %v347 = vadd.f32 0.0, %v346
      %348 = vmatmul.f32.gmra.mxu0 %v285
      %v349 = vpop.f32.mrf.mxu0
      %v350 = vadd.f32 0.0, %v349
      %351 = vmatmul.f32.gmra.mxu0 %v288
      %v352 = vpop.f32.mrf.mxu0
      %v353 = vadd.f32 0.0, %v352
      %354 = vdwg.mxu0
      %355 = vmatpush.msra.mxu0 0.0
      %356 = vmatpush.msra.mxu0 0.0
      %357 = vmatpush.msra.mxu0 0.0
      %358 = vmatpush.msra.mxu0 0.0
      %359 = vmatpush.msra.mxu0 0.0
      %360 = vmatpush.msra.mxu0 0.0
      %361 = vmatpush.msra.mxu0 0.0
      %362 = vmatpush.msra.mxu0 0.0
      %363 = vmatpush.msra.mxu0 0.0
      %364 = vmatpush.msra.mxu0 0.0
      %365 = vmatpush.msra.mxu0 0.0
      %366 = vmatpush.msra.mxu0 0.0
      %367 = vmatpush.msra.mxu0 0.0
      %368 = vmatpush.msra.mxu0 0.0
      %369 = vmatpush.msra.mxu0 %v240
      %370 = vmatpush.msra.mxu0 %v238
      %371 = vmatmul.f32.gmra.mxu0 %v243
      %v372 = vpop.f32.mrf.mxu0
      %v373 = vadd.f32 0.0, %v372
      %374 = vmatmul.f32.gmra.mxu0 %v246
      %v375 = vpop.f32.mrf.mxu0
      %v376 = vadd.f32 0.0, %v375
      %377 = vmatmul.f32.gmra.mxu0 %v249
      %v378 = vpop.f32.mrf.mxu0
      %v379 = vadd.f32 0.0, %v378
      %380 = vmatmul.f32.gmra.mxu0 %v252
      %v381 = vpop.f32.mrf.mxu0
      %v382 = vadd.f32 0.0, %v381
      %383 = vmatmul.f32.gmra.mxu0 %v255
      %v384 = vpop.f32.mrf.mxu0
      %v385 = vadd.f32 0.0, %v384
      %386 = vmatmul.f32.gmra.mxu0 %v258
      %v387 = vpop.f32.mrf.mxu0
      %v388 = vadd.f32 0.0, %v387
      %389 = vmatmul.f32.gmra.mxu0 %v261
      %v390 = vpop.f32.mrf.mxu0
      %v391 = vadd.f32 0.0, %v390
      %392 = vmatmul.f32.gmra.mxu0 %v264
      %v393 = vpop.f32.mrf.mxu0
      %v394 = vadd.f32 0.0, %v393
      %395 = vmatmul.f32.gmra.mxu0 %v267
      %v396 = vpop.f32.mrf.mxu0
      %v397 = vadd.f32 0.0, %v396
      %398 = vmatmul.f32.gmra.mxu0 %v270
      %v399 = vpop.f32.mrf.mxu0
      %v400 = vadd.f32 0.0, %v399
      %401 = vmatmul.f32.gmra.mxu0 %v273
      %v402 = vpop.f32.mrf.mxu0
      %v403 = vadd.f32 0.0, %v402
      %404 = vmatmul.f32.gmra.mxu0 %v276
      %v405 = vpop.f32.mrf.mxu0
      %v406 = vadd.f32 0.0, %v405
      %407 = vmatmul.f32.gmra.mxu0 %v279
      %v408 = vpop.f32.mrf.mxu0
      %v409 = vadd.f32 0.0, %v408
      %410 = vmatmul.f32.gmra.mxu0 %v282
      %v411 = vpop.f32.mrf.mxu0
      %v412 = vadd.f32 0.0, %v411
      %413 = vmatmul.f32.gmra.mxu0 %v285
      %v414 = vpop.f32.mrf.mxu0
      %v415 = vadd.f32 0.0, %v414
      %416 = vmatmul.f32.gmra.mxu0 %v288
      %v417 = vpop.f32.mrf.mxu0
      %v418 = vadd.f32 0.0, %v417
      %419 = vdwg.mxu0
      %v421 = vperm.slane %v229, 0
      %v423 = vadd.f32 %v308, %v421
      %v424 = vadd.f32 %v311, %v421
      %v425 = vadd.f32 %v314, %v421
      %v426 = vadd.f32 %v317, %v421
      %v427 = vadd.f32 %v320, %v421
      %v428 = vadd.f32 %v323, %v421
      %v429 = vadd.f32 %v326, %v421
      %v430 = vadd.f32 %v329, %v421
      %v431 = vadd.f32 %v332, %v421
      %v432 = vadd.f32 %v335, %v421
      %v433 = vadd.f32 %v338, %v421
      %v434 = vadd.f32 %v341, %v421
      %v435 = vadd.f32 %v344, %v421
      %v436 = vadd.f32 %v347, %v421
      %v437 = vadd.f32 %v350, %v421
      %v438 = vadd.f32 %v353, %v421
      %v439 = vmax.f32 %v423, 0.0
      %v440 = vmax.f32 %v424, 0.0
      %v441 = vmax.f32 %v425, 0.0
      %v442 = vmax.f32 %v426, 0.0
      %v443 = vmax.f32 %v427, 0.0
      %v444 = vmax.f32 %v428, 0.0
      %v445 = vmax.f32 %v429, 0.0
      %v446 = vmax.f32 %v430, 0.0
      %v447 = vmax.f32 %v431, 0.0
      %v448 = vmax.f32 %v432, 0.0
      %v449 = vmax.f32 %v433, 0.0
      %v450 = vmax.f32 %v434, 0.0
      %v451 = vmax.f32 %v435, 0.0
      %v452 = vmax.f32 %v436, 0.0
      %v453 = vmax.f32 %v437, 0.0
      %v454 = vmax.f32 %v438, 0.0
      %v455 = vld [vmem:[%s2 + $0xa0] sm:$0xff]
      %v456 = vld [vmem:[%s2 + $0xb0] sm:$0xff]
      %v457 = vld [vmem:[%s2 + $0xc0] sm:$0xff]
      %v458 = vld [vmem:[%s2 + $0xd0] sm:$0xff]
      %459 = vrot.lane.b32.xlu0 %v421, 96
      %v460 = vpop.permute.xlu0 %459
      %vm462 = vcmask 261120
      %v464 = vsel %vm462, %v439, 0
      %v467 = vsel %vm462, %v440, 0
      %v470 = vsel %vm462, %v441, 0
      %v473 = vsel %vm462, %v442, 0
      %v476 = vsel %vm462, %v443, 0
      %v479 = vsel %vm462, %v444, 0
      %v482 = vsel %vm462, %v445, 0
      %v485 = vsel %vm462, %v446, 0
      %v488 = vsel %vm462, %v447, 0
      %v491 = vsel %vm462, %v448, 0
      %v494 = vsel %vm462, %v449, 0
      %v497 = vsel %vm462, %v450, 0
      %v500 = vsel %vm462, %v451, 0
      %v503 = vsel %vm462, %v452, 0
      %v506 = vsel %vm462, %v453, 0
      %v509 = vsel %vm462, %v454, 0
      %511 = vmatpush.msra.mxu0 0.0
      %512 = vmatpush.msra.mxu0 0.0
      %513 = vmatpush.msra.mxu0 0.0
      %514 = vmatpush.msra.mxu0 0.0
      %515 = vmatpush.msra.mxu0 0.0
      %516 = vmatpush.msra.mxu0 0.0
      %517 = vmatpush.msra.mxu0 0.0
      %518 = vmatpush.msra.mxu0 0.0
      %519 = vmatpush.msra.mxu0 0.0
      %520 = vmatpush.msra.mxu0 0.0
      %521 = vmatpush.msra.mxu0 0.0
      %522 = vmatpush.msra.mxu0 0.0
      %523 = vmatpush.msra.mxu0 %v458
      %524 = vmatpush.msra.mxu0 %v457
      %525 = vmatpush.msra.mxu0 %v456
      %526 = vmatpush.msra.mxu0 %v455
      %527 = vmatmul.f32.gmra.mxu0 %v464
      %v528 = vpop.f32.mrf.mxu0
      %v529 = vadd.f32 %v460, %v528
      %530 = vmatmul.f32.gmra.mxu0 %v467
      %v531 = vpop.f32.mrf.mxu0
      %v532 = vadd.f32 %v460, %v531
      %533 = vmatmul.f32.gmra.mxu0 %v470
      %v534 = vpop.f32.mrf.mxu0
      %v535 = vadd.f32 %v460, %v534
      %536 = vmatmul.f32.gmra.mxu0 %v473
      %v537 = vpop.f32.mrf.mxu0
      %v538 = vadd.f32 %v460, %v537
      %539 = vmatmul.f32.gmra.mxu0 %v476
      %v540 = vpop.f32.mrf.mxu0
      %v541 = vadd.f32 %v460, %v540
      %542 = vmatmul.f32.gmra.mxu0 %v479
      %v543 = vpop.f32.mrf.mxu0
      %v544 = vadd.f32 %v460, %v543
      %545 = vmatmul.f32.gmra.mxu0 %v482
      %v546 = vpop.f32.mrf.mxu0
      %v547 = vadd.f32 %v460, %v546
      %548 = vmatmul.f32.gmra.mxu0 %v485
      %v549 = vpop.f32.mrf.mxu0
      %v550 = vadd.f32 %v460, %v549
      %551 = vmatmul.f32.gmra.mxu0 %v488
      %v552 = vpop.f32.mrf.mxu0
      %v553 = vadd.f32 %v460, %v552
      %554 = vmatmul.f32.gmra.mxu0 %v491
      %v555 = vpop.f32.mrf.mxu0
      %v556 = vadd.f32 %v460, %v555
      %557 = vmatmul.f32.gmra.mxu0 %v494
      %v558 = vpop.f32.mrf.mxu0
      %v559 = vadd.f32 %v460, %v558
      %560 = vmatmul.f32.gmra.mxu0 %v497
      %v561 = vpop.f32.mrf.mxu0
      %v562 = vadd.f32 %v460, %v561
      %563 = vmatmul.f32.gmra.mxu0 %v500
      %v564 = vpop.f32.mrf.mxu0
      %v565 = vadd.f32 %v460, %v564
      %566 = vmatmul.f32.gmra.mxu0 %v503
      %v567 = vpop.f32.mrf.mxu0
      %v568 = vadd.f32 %v460, %v567
      %569 = vmatmul.f32.gmra.mxu0 %v506
      %v570 = vpop.f32.mrf.mxu0
      %v571 = vadd.f32 %v460, %v570
      %572 = vmatmul.f32.gmra.mxu0 %v509
      %v573 = vpop.f32.mrf.mxu0
      %v574 = vadd.f32 %v460, %v573
      %575 = vdwg.mxu0
      %v576 = vld [vmem:[%s2 + $0x20] sm:$0xff]
      %v577 = vld [vmem:[%s2 + $0x28] sm:$0xff]
      %v578 = vld [vmem:[%s2 + $0x30] sm:$0xff]
      %v579 = vld [vmem:[%s2 + $0x38] sm:$0xff]
      %v580 = vld [vmem:[%s2 + $0x40] sm:$0xff]
      %v581 = vld [vmem:[%s2 + $0x48] sm:$0xff]
      %v582 = vld [vmem:[%s2 + $0x50] sm:$0xff]
      %v583 = vld [vmem:[%s2 + $0x58] sm:$0xff]
      %v585 = vsel %vm462, %v529, 0
      %v588 = vsel %vm462, %v532, 0
      %v591 = vsel %vm462, %v535, 0
      %v594 = vsel %vm462, %v538, 0
      %v597 = vsel %vm462, %v541, 0
      %v600 = vsel %vm462, %v544, 0
      %v603 = vsel %vm462, %v547, 0
      %v606 = vsel %vm462, %v550, 0
      %v609 = vsel %vm462, %v553, 0
      %v612 = vsel %vm462, %v556, 0
      %v615 = vsel %vm462, %v559, 0
      %v618 = vsel %vm462, %v562, 0
      %v621 = vsel %vm462, %v565, 0
      %v624 = vsel %vm462, %v568, 0
      %v627 = vsel %vm462, %v571, 0
      %v630 = vsel %vm462, %v574, 0
      %632 = vmatpush.msra.mxu0 0.0
      %633 = vmatpush.msra.mxu0 0.0
      %634 = vmatpush.msra.mxu0 0.0
      %635 = vmatpush.msra.mxu0 0.0
      %636 = vmatpush.msra.mxu0 0.0
      %637 = vmatpush.msra.mxu0 0.0
      %638 = vmatpush.msra.mxu0 0.0
      %639 = vmatpush.msra.mxu0 0.0
      %640 = vmatpush.msra.mxu0 0.0
      %641 = vmatpush.msra.mxu0 0.0
      %642 = vmatpush.msra.mxu0 0.0
      %643 = vmatpush.msra.mxu0 0.0
      %644 = vmatpush.msra.mxu0 %v582
      %645 = vmatpush.msra.mxu0 %v580
      %646 = vmatpush.msra.mxu0 %v578
      %647 = vmatpush.msra.mxu0 %v576
      %648 = vmatmul.f32.gmra.mxu0 %v585
      %v649 = vpop.f32.mrf.mxu0
      %v650 = vadd.f32 0.0, %v649
      %651 = vmatmul.f32.gmra.mxu0 %v588
      %v652 = vpop.f32.mrf.mxu0
      %v653 = vadd.f32 0.0, %v652
      %654 = vmatmul.f32.gmra.mxu0 %v591
      %v655 = vpop.f32.mrf.mxu0
      %v656 = vadd.f32 0.0, %v655
      %657 = vmatmul.f32.gmra.mxu0 %v594
      %v658 = vpop.f32.mrf.mxu0
      %v659 = vadd.f32 0.0, %v658
      %660 = vmatmul.f32.gmra.mxu0 %v597
      %v661 = vpop.f32.mrf.mxu0
      %v662 = vadd.f32 0.0, %v661
      %663 = vmatmul.f32.gmra.mxu0 %v600
      %v664 = vpop.f32.mrf.mxu0
      %v665 = vadd.f32 0.0, %v664
      %666 = vmatmul.f32.gmra.mxu0 %v603
      %v667 = vpop.f32.mrf.mxu0
      %v668 = vadd.f32 0.0, %v667
      %669 = vmatmul.f32.gmra.mxu0 %v606
      %v670 = vpop.f32.mrf.mxu0
      %v671 = vadd.f32 0.0, %v670
      %672 = vmatmul.f32.gmra.mxu0 %v609
      %v673 = vpop.f32.mrf.mxu0
      %v674 = vadd.f32 0.0, %v673
      %675 = vmatmul.f32.gmra.mxu0 %v612
      %v676 = vpop.f32.mrf.mxu0
      %v677 = vadd.f32 0.0, %v676
      %678 = vmatmul.f32.gmra.mxu0 %v615
      %v679 = vpop.f32.mrf.mxu0
      %v680 = vadd.f32 0.0, %v679
      %681 = vmatmul.f32.gmra.mxu0 %v618
      %v682 = vpop.f32.mrf.mxu0
      %v683 = vadd.f32 0.0, %v682
      %684 = vmatmul.f32.gmra.mxu0 %v621
      %v685 = vpop.f32.mrf.mxu0
      %v686 = vadd.f32 0.0, %v685
      %687 = vmatmul.f32.gmra.mxu0 %v624
      %v688 = vpop.f32.mrf.mxu0
      %v689 = vadd.f32 0.0, %v688
      %690 = vmatmul.f32.gmra.mxu0 %v627
      %v691 = vpop.f32.mrf.mxu0
      %v692 = vadd.f32 0.0, %v691
      %693 = vmatmul.f32.gmra.mxu0 %v630
      %v694 = vpop.f32.mrf.mxu0
      %v695 = vadd.f32 0.0, %v694
      %696 = vdwg.mxu0
      %697 = vmatpush.msra.mxu0 0.0
      %698 = vmatpush.msra.mxu0 0.0
      %699 = vmatpush.msra.mxu0 0.0
      %700 = vmatpush.msra.mxu0 0.0
      %701 = vmatpush.msra.mxu0 0.0
      %702 = vmatpush.msra.mxu0 0.0
      %703 = vmatpush.msra.mxu0 0.0
      %704 = vmatpush.msra.mxu0 0.0
      %705 = vmatpush.msra.mxu0 0.0
      %706 = vmatpush.msra.mxu0 0.0
      %707 = vmatpush.msra.mxu0 0.0
      %708 = vmatpush.msra.mxu0 0.0
      %709 = vmatpush.msra.mxu0 %v583
      %710 = vmatpush.msra.mxu0 %v581
      %711 = vmatpush.msra.mxu0 %v579
      %712 = vmatpush.msra.mxu0 %v577
      %713 = vmatmul.f32.gmra.mxu0 %v585
      %v714 = vpop.f32.mrf.mxu0
      %v715 = vadd.f32 0.0, %v714
      %716 = vmatmul.f32.gmra.mxu0 %v588
      %v717 = vpop.f32.mrf.mxu0
      %v718 = vadd.f32 0.0, %v717
      %719 = vmatmul.f32.gmra.mxu0 %v591
      %v720 = vpop.f32.mrf.mxu0
      %v721 = vadd.f32 0.0, %v720
      %722 = vmatmul.f32.gmra.mxu0 %v594
      %v723 = vpop.f32.mrf.mxu0
      %v724 = vadd.f32 0.0, %v723
      %725 = vmatmul.f32.gmra.mxu0 %v597
      %v726 = vpop.f32.mrf.mxu0
      %v727 = vadd.f32 0.0, %v726
      %728 = vmatmul.f32.gmra.mxu0 %v600
      %v729 = vpop.f32.mrf.mxu0
      %v730 = vadd.f32 0.0, %v729
      %731 = vmatmul.f32.gmra.mxu0 %v603
      %v732 = vpop.f32.mrf.mxu0
      %v733 = vadd.f32 0.0, %v732
      %734 = vmatmul.f32.gmra.mxu0 %v606
      %v735 = vpop.f32.mrf.mxu0
      %v736 = vadd.f32 0.0, %v735
      %737 = vmatmul.f32.gmra.mxu0 %v609
      %v738 = vpop.f32.mrf.mxu0
      %v739 = vadd.f32 0.0, %v738
      %740 = vmatmul.f32.gmra.mxu0 %v612
      %v741 = vpop.f32.mrf.mxu0
      %v742 = vadd.f32 0.0, %v741
      %743 = vmatmul.f32.gmra.mxu0 %v615
      %v744 = vpop.f32.mrf.mxu0
      %v745 = vadd.f32 0.0, %v744
      %746 = vmatmul.f32.gmra.mxu0 %v618
      %v747 = vpop.f32.mrf.mxu0
      %v748 = vadd.f32 0.0, %v747
      %749 = vmatmul.f32.gmra.mxu0 %v621
      %v750 = vpop.f32.mrf.mxu0
      %v751 = vadd.f32 0.0, %v750
      %752 = vmatmul.f32.gmra.mxu0 %v624
      %v753 = vpop.f32.mrf.mxu0
      %v754 = vadd.f32 0.0, %v753
      %755 = vmatmul.f32.gmra.mxu0 %v627
      %v756 = vpop.f32.mrf.mxu0
      %v757 = vadd.f32 0.0, %v756
      %758 = vmatmul.f32.gmra.mxu0 %v630
      %v759 = vpop.f32.mrf.mxu0
      %v760 = vadd.f32 0.0, %v759
      %761 = vdwg.mxu0
      %763 = vset.pattern.permute.xlu0 0
      %764 = vperm.xlu0 %763, %v212
      %v765 = vpop.permute.xlu0 %764
      %768 = vset.pattern.permute.xlu0 0
      %769 = vperm.xlu0 %768, %v213
      %v770 = vpop.permute.xlu0 %769
      %773 = vset.pattern.permute.xlu0 0
      %774 = vperm.xlu0 %773, %v214
      %v775 = vpop.permute.xlu0 %774
      %778 = vset.pattern.permute.xlu0 0
      %779 = vperm.xlu0 %778, %v215
      %v780 = vpop.permute.xlu0 %779
      %783 = vset.pattern.permute.xlu0 0
      %784 = vperm.xlu0 %783, %v216
      %v785 = vpop.permute.xlu0 %784
      %788 = vset.pattern.permute.xlu0 0
      %789 = vperm.xlu0 %788, %v217
      %v790 = vpop.permute.xlu0 %789
      %793 = vset.pattern.permute.xlu0 0
      %794 = vperm.xlu0 %793, %v218
      %v795 = vpop.permute.xlu0 %794
      %798 = vset.pattern.permute.xlu0 0
      %799 = vperm.xlu0 %798, %v219
      %v800 = vpop.permute.xlu0 %799
      %803 = vset.pattern.permute.xlu0 0
      %804 = vperm.xlu0 %803, %v220
      %v805 = vpop.permute.xlu0 %804
      %808 = vset.pattern.permute.xlu0 0
      %809 = vperm.xlu0 %808, %v221
      %v810 = vpop.permute.xlu0 %809
      %813 = vset.pattern.permute.xlu0 0
      %814 = vperm.xlu0 %813, %v222
      %v815 = vpop.permute.xlu0 %814
      %818 = vset.pattern.permute.xlu0 0
      %819 = vperm.xlu0 %818, %v223
      %v820 = vpop.permute.xlu0 %819
      %823 = vset.pattern.permute.xlu0 0
      %824 = vperm.xlu0 %823, %v224
      %v825 = vpop.permute.xlu0 %824
      %828 = vset.pattern.permute.xlu0 0
      %829 = vperm.xlu0 %828, %v225
      %v830 = vpop.permute.xlu0 %829
      %833 = vset.pattern.permute.xlu0 0
      %834 = vperm.xlu0 %833, %v226
      %v835 = vpop.permute.xlu0 %834
      %838 = vset.pattern.permute.xlu0 0
      %839 = vperm.xlu0 %838, %v227
      %v840 = vpop.permute.xlu0 %839
      %v842 = vmul.f32 %v765, %v650
      %v843 = vmul.f32 %v770, %v653
      %v844 = vmul.f32 %v775, %v656
      %v845 = vmul.f32 %v780, %v659
      %v846 = vmul.f32 %v785, %v662
      %v847 = vmul.f32 %v790, %v665
      %v848 = vmul.f32 %v795, %v668
      %v849 = vmul.f32 %v800, %v671
      %v850 = vmul.f32 %v805, %v674
      %v851 = vmul.f32 %v810, %v677
      %v852 = vmul.f32 %v815, %v680
      %v853 = vmul.f32 %v820, %v683
      %v854 = vmul.f32 %v825, %v686
      %v855 = vmul.f32 %v830, %v689
      %v856 = vmul.f32 %v835, %v692
      %v857 = vmul.f32 %v840, %v695
      %858 = vrot.lane.b32.xlu0 %v421, 64
      %v859 = vpop.permute.xlu0 %858
      %v861 = vadd.f32 %v842, %v859
      %v862 = vadd.f32 %v843, %v859
      %v863 = vadd.f32 %v844, %v859
      %v864 = vadd.f32 %v845, %v859
      %v865 = vadd.f32 %v846, %v859
      %v866 = vadd.f32 %v847, %v859
      %v867 = vadd.f32 %v848, %v859
      %v868 = vadd.f32 %v849, %v859
      %v869 = vadd.f32 %v850, %v859
      %v870 = vadd.f32 %v851, %v859
      %v871 = vadd.f32 %v852, %v859
      %v872 = vadd.f32 %v853, %v859
      %v873 = vadd.f32 %v854, %v859
      %v874 = vadd.f32 %v855, %v859
      %v875 = vadd.f32 %v856, %v859
      %v876 = vadd.f32 %v857, %v859
      %v877 = vmax.f32 %v861, 0.0
      %v878 = vmax.f32 %v862, 0.0
      %v879 = vmax.f32 %v863, 0.0
      %v880 = vmax.f32 %v864, 0.0
      %v881 = vmax.f32 %v865, 0.0
      %v882 = vmax.f32 %v866, 0.0
      %v883 = vmax.f32 %v867, 0.0
      %v884 = vmax.f32 %v868, 0.0
      %v885 = vmax.f32 %v869, 0.0
      %v886 = vmax.f32 %v870, 0.0
      %v887 = vmax.f32 %v871, 0.0
      %v888 = vmax.f32 %v872, 0.0
      %v889 = vmax.f32 %v873, 0.0
      %v890 = vmax.f32 %v874, 0.0
      %v891 = vmax.f32 %v875, 0.0
      %v892 = vmax.f32 %v876, 0.0
      %v893 = vld [vmem:[%s2 + $0xe0] sm:$0xff]
      %v894 = vld [vmem:[%s2 + $0xf0] sm:$0xff]
      %v895 = vld [vmem:[%s2 + $0x100] sm:$0xff]
      %v896 = vld [vmem:[%s2 + $0x110] sm:$0xff]
      %897 = vrot.lane.b32.xlu0 %v421, 32
      %v898 = vpop.permute.xlu0 %897
      %v901 = vsel %vm462, %v877, 0
      %v904 = vsel %vm462, %v878, 0
      %v907 = vsel %vm462, %v879, 0
      %v910 = vsel %vm462, %v880, 0
      %v913 = vsel %vm462, %v881, 0
      %v916 = vsel %vm462, %v882, 0
      %v919 = vsel %vm462, %v883, 0
      %v922 = vsel %vm462, %v884, 0
      %v925 = vsel %vm462, %v885, 0
      %v928 = vsel %vm462, %v886, 0
      %v931 = vsel %vm462, %v887, 0
      %v934 = vsel %vm462, %v888, 0
      %v937 = vsel %vm462, %v889, 0
      %v940 = vsel %vm462, %v890, 0
      %v943 = vsel %vm462, %v891, 0
      %v946 = vsel %vm462, %v892, 0
      %948 = vmatpush.msra.mxu0 0.0
      %949 = vmatpush.msra.mxu0 0.0
      %950 = vmatpush.msra.mxu0 0.0
      %951 = vmatpush.msra.mxu0 0.0
      %952 = vmatpush.msra.mxu0 0.0
      %953 = vmatpush.msra.mxu0 0.0
      %954 = vmatpush.msra.mxu0 0.0
      %955 = vmatpush.msra.mxu0 0.0
      %956 = vmatpush.msra.mxu0 0.0
      %957 = vmatpush.msra.mxu0 0.0
      %958 = vmatpush.msra.mxu0 0.0
      %959 = vmatpush.msra.mxu0 0.0
      %960 = vmatpush.msra.mxu0 %v896
      %961 = vmatpush.msra.mxu0 %v895
      %962 = vmatpush.msra.mxu0 %v894
      %963 = vmatpush.msra.mxu0 %v893
      %964 = vmatmul.f32.gmra.mxu0 %v901
      %v965 = vpop.f32.mrf.mxu0
      %v966 = vadd.f32 %v898, %v965
      %967 = vmatmul.f32.gmra.mxu0 %v904
      %v968 = vpop.f32.mrf.mxu0
      %v969 = vadd.f32 %v898, %v968
      %970 = vmatmul.f32.gmra.mxu0 %v907
      %v971 = vpop.f32.mrf.mxu0
      %v972 = vadd.f32 %v898, %v971
      %973 = vmatmul.f32.gmra.mxu0 %v910
      %v974 = vpop.f32.mrf.mxu0
      %v975 = vadd.f32 %v898, %v974
      %976 = vmatmul.f32.gmra.mxu0 %v913
      %v977 = vpop.f32.mrf.mxu0
      %v978 = vadd.f32 %v898, %v977
      %979 = vmatmul.f32.gmra.mxu0 %v916
      %v980 = vpop.f32.mrf.mxu0
      %v981 = vadd.f32 %v898, %v980
      %982 = vmatmul.f32.gmra.mxu0 %v919
      %v983 = vpop.f32.mrf.mxu0
      %v984 = vadd.f32 %v898, %v983
      %985 = vmatmul.f32.gmra.mxu0 %v922
      %v986 = vpop.f32.mrf.mxu0
      %v987 = vadd.f32 %v898, %v986
      %988 = vmatmul.f32.gmra.mxu0 %v925
      %v989 = vpop.f32.mrf.mxu0
      %v990 = vadd.f32 %v898, %v989
      %991 = vmatmul.f32.gmra.mxu0 %v928
      %v992 = vpop.f32.mrf.mxu0
      %v993 = vadd.f32 %v898, %v992
      %994 = vmatmul.f32.gmra.mxu0 %v931
      %v995 = vpop.f32.mrf.mxu0
      %v996 = vadd.f32 %v898, %v995
      %997 = vmatmul.f32.gmra.mxu0 %v934
      %v998 = vpop.f32.mrf.mxu0
      %v999 = vadd.f32 %v898, %v998
      %1000 = vmatmul.f32.gmra.mxu0 %v937
      %v1001 = vpop.f32.mrf.mxu0
      %v1002 = vadd.f32 %v898, %v1001
      %1003 = vmatmul.f32.gmra.mxu0 %v940
      %v1004 = vpop.f32.mrf.mxu0
      %v1005 = vadd.f32 %v898, %v1004
      %1006 = vmatmul.f32.gmra.mxu0 %v943
      %v1007 = vpop.f32.mrf.mxu0
      %v1008 = vadd.f32 %v898, %v1007
      %1009 = vmatmul.f32.gmra.mxu0 %v946
      %v1010 = vpop.f32.mrf.mxu0
      %v1011 = vadd.f32 %v898, %v1010
      %1012 = vdwg.mxu0
      %v1013 = vmax.f32 %v966, 0.0
      %v1014 = vmax.f32 %v969, 0.0
      %v1015 = vmax.f32 %v972, 0.0
      %v1016 = vmax.f32 %v975, 0.0
      %v1017 = vmax.f32 %v978, 0.0
      %v1018 = vmax.f32 %v981, 0.0
      %v1019 = vmax.f32 %v984, 0.0
      %v1020 = vmax.f32 %v987, 0.0
      %v1021 = vmax.f32 %v990, 0.0
      %v1022 = vmax.f32 %v993, 0.0
      %v1023 = vmax.f32 %v996, 0.0
      %v1024 = vmax.f32 %v999, 0.0
      %v1025 = vmax.f32 %v1002, 0.0
      %v1026 = vmax.f32 %v1005, 0.0
      %v1027 = vmax.f32 %v1008, 0.0
      %v1028 = vmax.f32 %v1011, 0.0
      %v1029 = vadd.f32 %v308, %v650
      %v1030 = vadd.f32 %v373, %v715
      %v1031 = vadd.f32 %v311, %v653
      %v1032 = vadd.f32 %v376, %v718
      %v1033 = vadd.f32 %v314, %v656
      %v1034 = vadd.f32 %v379, %v721
      %v1035 = vadd.f32 %v317, %v659
      %v1036 = vadd.f32 %v382, %v724
      %v1037 = vadd.f32 %v320, %v662
      %v1038 = vadd.f32 %v385, %v727
      %v1039 = vadd.f32 %v323, %v665
      %v1040 = vadd.f32 %v388, %v730
      %v1041 = vadd.f32 %v326, %v668
      %v1042 = vadd.f32 %v391, %v733
      %v1043 = vadd.f32 %v329, %v671
      %v1044 = vadd.f32 %v394, %v736
      %v1045 = vadd.f32 %v332, %v674
      %v1046 = vadd.f32 %v397, %v739
      %v1047 = vadd.f32 %v335, %v677
      %v1048 = vadd.f32 %v400, %v742
      %v1049 = vadd.f32 %v338, %v680
      %v1050 = vadd.f32 %v403, %v745
      %v1051 = vadd.f32 %v341, %v683
      %v1052 = vadd.f32 %v406, %v748
      %v1053 = vadd.f32 %v344, %v686
      %v1054 = vadd.f32 %v409, %v751
      %v1055 = vadd.f32 %v347, %v689
      %v1056 = vadd.f32 %v412, %v754
      %v1057 = vadd.f32 %v350, %v692
      %v1058 = vadd.f32 %v415, %v757
      %v1059 = vadd.f32 %v353, %v695
      %v1060 = vadd.f32 %v418, %v760
      %v1061 = vld [vmem:[%s2 + $0x60] sm:$0xff]
      %v1062 = vld [vmem:[%s2 + $0x68] sm:$0xff]
      %v1063 = vld [vmem:[%s2 + $0x70] sm:$0xff]
      %v1064 = vld [vmem:[%s2 + $0x78] sm:$0xff]
      %v1065 = vld [vmem:[%s2 + $0x80] sm:$0xff]
      %v1066 = vld [vmem:[%s2 + $0x88] sm:$0xff]
      %v1067 = vld [vmem:[%s2 + $0x90] sm:$0xff]
      %v1068 = vld [vmem:[%s2 + $0x98] sm:$0xff]
      %v1070 = vsel %vm462, %v1013, 0
      %v1073 = vsel %vm462, %v1014, 0
      %v1076 = vsel %vm462, %v1015, 0
      %v1079 = vsel %vm462, %v1016, 0
      %v1082 = vsel %vm462, %v1017, 0
      %v1085 = vsel %vm462, %v1018, 0
      %v1088 = vsel %vm462, %v1019, 0
      %v1091 = vsel %vm462, %v1020, 0
      %v1094 = vsel %vm462, %v1021, 0
      %v1097 = vsel %vm462, %v1022, 0
      %v1100 = vsel %vm462, %v1023, 0
      %v1103 = vsel %vm462, %v1024, 0
      %v1106 = vsel %vm462, %v1025, 0
      %v1109 = vsel %vm462, %v1026, 0
      %v1112 = vsel %vm462, %v1027, 0
      %v1115 = vsel %vm462, %v1028, 0
      %1117 = vmatpush.msra.mxu0 0.0
      %1118 = vmatpush.msra.mxu0 0.0
      %1119 = vmatpush.msra.mxu0 0.0
      %1120 = vmatpush.msra.mxu0 0.0
      %1121 = vmatpush.msra.mxu0 0.0
      %1122 = vmatpush.msra.mxu0 0.0
      %1123 = vmatpush.msra.mxu0 0.0
      %1124 = vmatpush.msra.mxu0 0.0
      %1125 = vmatpush.msra.mxu0 0.0
      %1126 = vmatpush.msra.mxu0 0.0
      %1127 = vmatpush.msra.mxu0 0.0
      %1128 = vmatpush.msra.mxu0 0.0
      %1129 = vmatpush.msra.mxu0 %v1067
      %1130 = vmatpush.msra.mxu0 %v1065
      %1131 = vmatpush.msra.mxu0 %v1063
      %1132 = vmatpush.msra.mxu0 %v1061
      %1133 = vmatmul.f32.gmra.mxu0 %v1070
      %v1134 = vpop.f32.mrf.mxu0
      %v1135 = vadd.f32 0.0, %v1134
      %1136 = vmatmul.f32.gmra.mxu0 %v1073
      %v1137 = vpop.f32.mrf.mxu0
      %v1138 = vadd.f32 0.0, %v1137
      %1139 = vmatmul.f32.gmra.mxu0 %v1076
      %v1140 = vpop.f32.mrf.mxu0
      %v1141 = vadd.f32 0.0, %v1140
      %1142 = vmatmul.f32.gmra.mxu0 %v1079
      %v1143 = vpop.f32.mrf.mxu0
      %v1144 = vadd.f32 0.0, %v1143
      %1145 = vmatmul.f32.gmra.mxu0 %v1082
      %v1146 = vpop.f32.mrf.mxu0
      %v1147 = vadd.f32 0.0, %v1146
      %1148 = vmatmul.f32.gmra.mxu0 %v1085
      %v1149 = vpop.f32.mrf.mxu0
      %v1150 = vadd.f32 0.0, %v1149
      %1151 = vmatmul.f32.gmra.mxu0 %v1088
      %v1152 = vpop.f32.mrf.mxu0
      %v1153 = vadd.f32 0.0, %v1152
      %1154 = vmatmul.f32.gmra.mxu0 %v1091
      %v1155 = vpop.f32.mrf.mxu0
      %v1156 = vadd.f32 0.0, %v1155
      %1157 = vmatmul.f32.gmra.mxu0 %v1094
      %v1158 = vpop.f32.mrf.mxu0
      %v1159 = vadd.f32 0.0, %v1158
      %1160 = vmatmul.f32.gmra.mxu0 %v1097
      %v1161 = vpop.f32.mrf.mxu0
      %v1162 = vadd.f32 0.0, %v1161
      %1163 = vmatmul.f32.gmra.mxu0 %v1100
      %v1164 = vpop.f32.mrf.mxu0
      %v1165 = vadd.f32 0.0, %v1164
      %1166 = vmatmul.f32.gmra.mxu0 %v1103
      %v1167 = vpop.f32.mrf.mxu0
      %v1168 = vadd.f32 0.0, %v1167
      %1169 = vmatmul.f32.gmra.mxu0 %v1106
      %v1170 = vpop.f32.mrf.mxu0
      %v1171 = vadd.f32 0.0, %v1170
      %1172 = vmatmul.f32.gmra.mxu0 %v1109
      %v1173 = vpop.f32.mrf.mxu0
      %v1174 = vadd.f32 0.0, %v1173
      %1175 = vmatmul.f32.gmra.mxu0 %v1112
      %v1176 = vpop.f32.mrf.mxu0
      %v1177 = vadd.f32 0.0, %v1176
      %1178 = vmatmul.f32.gmra.mxu0 %v1115
      %v1179 = vpop.f32.mrf.mxu0
      %v1180 = vadd.f32 0.0, %v1179
      %1181 = vdwg.mxu0
      %1182 = vmatpush.msra.mxu0 0.0
      %1183 = vmatpush.msra.mxu0 0.0
      %1184 = vmatpush.msra.mxu0 0.0
      %1185 = vmatpush.msra.mxu0 0.0
      %1186 = vmatpush.msra.mxu0 0.0
      %1187 = vmatpush.msra.mxu0 0.0
      %1188 = vmatpush.msra.mxu0 0.0
      %1189 = vmatpush.msra.mxu0 0.0
      %1190 = vmatpush.msra.mxu0 0.0
      %1191 = vmatpush.msra.mxu0 0.0
      %1192 = vmatpush.msra.mxu0 0.0
      %1193 = vmatpush.msra.mxu0 0.0
      %1194 = vmatpush.msra.mxu0 %v1068
      %1195 = vmatpush.msra.mxu0 %v1066
      %1196 = vmatpush.msra.mxu0 %v1064
      %1197 = vmatpush.msra.mxu0 %v1062
      %1198 = vmatmul.f32.gmra.mxu0 %v1070
      %v1199 = vpop.f32.mrf.mxu0
      %v1200 = vadd.f32 0.0, %v1199
      %1201 = vmatmul.f32.gmra.mxu0 %v1073
      %v1202 = vpop.f32.mrf.mxu0
      %v1203 = vadd.f32 0.0, %v1202
      %1204 = vmatmul.f32.gmra.mxu0 %v1076
      %v1205 = vpop.f32.mrf.mxu0
      %v1206 = vadd.f32 0.0, %v1205
      %1207 = vmatmul.f32.gmra.mxu0 %v1079
      %v1208 = vpop.f32.mrf.mxu0
      %v1209 = vadd.f32 0.0, %v1208
      %1210 = vmatmul.f32.gmra.mxu0 %v1082
      %v1211 = vpop.f32.mrf.mxu0
      %v1212 = vadd.f32 0.0, %v1211
      %1213 = vmatmul.f32.gmra.mxu0 %v1085
      %v1214 = vpop.f32.mrf.mxu0
      %v1215 = vadd.f32 0.0, %v1214
      %1216 = vmatmul.f32.gmra.mxu0 %v1088
      %v1217 = vpop.f32.mrf.mxu0
      %v1218 = vadd.f32 0.0, %v1217
      %1219 = vmatmul.f32.gmra.mxu0 %v1091
      %v1220 = vpop.f32.mrf.mxu0
      %v1221 = vadd.f32 0.0, %v1220
      %1222 = vmatmul.f32.gmra.mxu0 %v1094
      %v1223 = vpop.f32.mrf.mxu0
      %v1224 = vadd.f32 0.0, %v1223
      %1225 = vmatmul.f32.gmra.mxu0 %v1097
      %v1226 = vpop.f32.mrf.mxu0
      %v1227 = vadd.f32 0.0, %v1226
      %1228 = vmatmul.f32.gmra.mxu0 %v1100
      %v1229 = vpop.f32.mrf.mxu0
      %v1230 = vadd.f32 0.0, %v1229
      %1231 = vmatmul.f32.gmra.mxu0 %v1103
      %v1232 = vpop.f32.mrf.mxu0
      %v1233 = vadd.f32 0.0, %v1232
      %1234 = vmatmul.f32.gmra.mxu0 %v1106
      %v1235 = vpop.f32.mrf.mxu0
      %v1236 = vadd.f32 0.0, %v1235
      %1237 = vmatmul.f32.gmra.mxu0 %v1109
      %v1238 = vpop.f32.mrf.mxu0
      %v1239 = vadd.f32 0.0, %v1238
      %1240 = vmatmul.f32.gmra.mxu0 %v1112
      %v1241 = vpop.f32.mrf.mxu0
      %v1242 = vadd.f32 0.0, %v1241
      %1243 = vmatmul.f32.gmra.mxu0 %v1115
      %v1244 = vpop.f32.mrf.mxu0
      %v1245 = vadd.f32 0.0, %v1244
      %1246 = vdwg.mxu0
      %v1247 = vadd.f32 %v1029, %v1135
      %v1248 = vadd.f32 %v1030, %v1200
      %v1249 = vadd.f32 %v1031, %v1138
      %v1250 = vadd.f32 %v1032, %v1203
      %v1251 = vadd.f32 %v1033, %v1141
      %v1252 = vadd.f32 %v1034, %v1206
      %v1253 = vadd.f32 %v1035, %v1144
      %v1254 = vadd.f32 %v1036, %v1209
      %v1255 = vadd.f32 %v1037, %v1147
      %v1256 = vadd.f32 %v1038, %v1212
      %v1257 = vadd.f32 %v1039, %v1150
      %v1258 = vadd.f32 %v1040, %v1215
      %v1259 = vadd.f32 %v1041, %v1153
      %v1260 = vadd.f32 %v1042, %v1218
      %v1261 = vadd.f32 %v1043, %v1156
      %v1262 = vadd.f32 %v1044, %v1221
      %v1263 = vadd.f32 %v1045, %v1159
      %v1264 = vadd.f32 %v1046, %v1224
      %v1265 = vadd.f32 %v1047, %v1162
      %v1266 = vadd.f32 %v1048, %v1227
      %v1267 = vadd.f32 %v1049, %v1165
      %v1268 = vadd.f32 %v1050, %v1230
      %v1269 = vadd.f32 %v1051, %v1168
      %v1270 = vadd.f32 %v1052, %v1233
      %v1271 = vadd.f32 %v1053, %v1171
      %v1272 = vadd.f32 %v1054, %v1236
      %v1273 = vadd.f32 %v1055, %v1174
      %v1274 = vadd.f32 %v1056, %v1239
      %v1275 = vadd.f32 %v1057, %v1177
      %v1276 = vadd.f32 %v1058, %v1242
      %v1277 = vadd.f32 %v1059, %v1180
      %v1278 = vadd.f32 %v1060, %v1245
      %v1280 = vperm.slane %v231, 0
      %v1281 = vperm.slane %v231, 1
      %v1284 = vadd.f32 %v1247, %v1280
      %v1285 = vadd.f32 %v1248, %v1281
      %v1286 = vadd.f32 %v1249, %v1280
      %v1287 = vadd.f32 %v1250, %v1281
      %v1288 = vadd.f32 %v1251, %v1280
      %v1289 = vadd.f32 %v1252, %v1281
      %v1290 = vadd.f32 %v1253, %v1280
      %v1291 = vadd.f32 %v1254, %v1281
      %v1292 = vadd.f32 %v1255, %v1280
      %v1293 = vadd.f32 %v1256, %v1281
      %v1294 = vadd.f32 %v1257, %v1280
      %v1295 = vadd.f32 %v1258, %v1281
      %v1296 = vadd.f32 %v1259, %v1280
      %v1297 = vadd.f32 %v1260, %v1281
      %v1298 = vadd.f32 %v1261, %v1280
      %v1299 = vadd.f32 %v1262, %v1281
      %v1300 = vadd.f32 %v1263, %v1280
      %v1301 = vadd.f32 %v1264, %v1281
      %v1302 = vadd.f32 %v1265, %v1280
      %v1303 = vadd.f32 %v1266, %v1281
      %v1304 = vadd.f32 %v1267, %v1280
      %v1305 = vadd.f32 %v1268, %v1281
      %v1306 = vadd.f32 %v1269, %v1280
      %v1307 = vadd.f32 %v1270, %v1281
      %v1308 = vadd.f32 %v1271, %v1280
      %v1309 = vadd.f32 %v1272, %v1281
      %v1310 = vadd.f32 %v1273, %v1280
      %v1311 = vadd.f32 %v1274, %v1281
      %v1312 = vadd.f32 %v1275, %v1280
      %v1313 = vadd.f32 %v1276, %v1281
      %v1314 = vadd.f32 %v1277, %v1280
      %v1315 = vadd.f32 %v1278, %v1281
      %v1316 = vmax.f32 %v1284, 0.0
      %v1317 = vmax.f32 %v1285, 0.0
      %v1318 = vmax.f32 %v1286, 0.0
      %v1319 = vmax.f32 %v1287, 0.0
      %v1320 = vmax.f32 %v1288, 0.0
      %v1321 = vmax.f32 %v1289, 0.0
      %v1322 = vmax.f32 %v1290, 0.0
      %v1323 = vmax.f32 %v1291, 0.0
      %v1324 = vmax.f32 %v1292, 0.0
      %v1325 = vmax.f32 %v1293, 0.0
      %v1326 = vmax.f32 %v1294, 0.0
      %v1327 = vmax.f32 %v1295, 0.0
      %v1328 = vmax.f32 %v1296, 0.0
      %v1329 = vmax.f32 %v1297, 0.0
      %v1330 = vmax.f32 %v1298, 0.0
      %v1331 = vmax.f32 %v1299, 0.0
      %v1332 = vmax.f32 %v1300, 0.0
      %v1333 = vmax.f32 %v1301, 0.0
      %v1334 = vmax.f32 %v1302, 0.0
      %v1335 = vmax.f32 %v1303, 0.0
      %v1336 = vmax.f32 %v1304, 0.0
      %v1337 = vmax.f32 %v1305, 0.0
      %v1338 = vmax.f32 %v1306, 0.0
      %v1339 = vmax.f32 %v1307, 0.0
      %v1340 = vmax.f32 %v1308, 0.0
      %v1341 = vmax.f32 %v1309, 0.0
      %v1342 = vmax.f32 %v1310, 0.0
      %v1343 = vmax.f32 %v1311, 0.0
      %v1344 = vmax.f32 %v1312, 0.0
      %v1345 = vmax.f32 %v1313, 0.0
      %v1346 = vmax.f32 %v1314, 0.0
      %v1347 = vmax.f32 %v1315, 0.0
      %v1349 = vperm.slane %v233, 0
      %v1350 = vperm.slane %v233, 1
      %v1353 = vmul.f32 %v1316, %v1349
      %v1354 = vmul.f32 %v1317, %v1350
      %v1355 = vmul.f32 %v1318, %v1349
      %v1356 = vmul.f32 %v1319, %v1350
      %v1357 = vmul.f32 %v1320, %v1349
      %v1358 = vmul.f32 %v1321, %v1350
      %v1359 = vmul.f32 %v1322, %v1349
      %v1360 = vmul.f32 %v1323, %v1350
      %v1361 = vmul.f32 %v1324, %v1349
      %v1362 = vmul.f32 %v1325, %v1350
      %v1363 = vmul.f32 %v1326, %v1349
      %v1364 = vmul.f32 %v1327, %v1350
      %v1365 = vmul.f32 %v1328, %v1349
      %v1366 = vmul.f32 %v1329, %v1350
      %v1367 = vmul.f32 %v1330, %v1349
      %v1368 = vmul.f32 %v1331, %v1350
      %v1369 = vmul.f32 %v1332, %v1349
      %v1370 = vmul.f32 %v1333, %v1350
      %v1371 = vmul.f32 %v1334, %v1349
      %v1372 = vmul.f32 %v1335, %v1350
      %v1373 = vmul.f32 %v1336, %v1349
      %v1374 = vmul.f32 %v1337, %v1350
      %v1375 = vmul.f32 %v1338, %v1349
      %v1376 = vmul.f32 %v1339, %v1350
      %v1377 = vmul.f32 %v1340, %v1349
      %v1378 = vmul.f32 %v1341, %v1350
      %v1379 = vmul.f32 %v1342, %v1349
      %v1380 = vmul.f32 %v1343, %v1350
      %v1381 = vmul.f32 %v1344, %v1349
      %v1382 = vmul.f32 %v1345, %v1350
      %v1383 = vmul.f32 %v1346, %v1349
      %v1384 = vmul.f32 %v1347, %v1350
      %v1385 = vadd.f32 %v1353, %v1354
      %1386 = vadd.xlane.f32.xlu0 %v1385
      %v1387 = vpop.xlane.xlu0 %1386
      %v1388 = vadd.f32 %v1355, %v1356
      %1389 = vadd.xlane.f32.xlu0 %v1388
      %v1390 = vpop.xlane.xlu0 %1389
      %v1391 = vadd.f32 %v1357, %v1358
      %1392 = vadd.xlane.f32.xlu0 %v1391
      %v1393 = vpop.xlane.xlu0 %1392
      %v1394 = vadd.f32 %v1359, %v1360
      %1395 = vadd.xlane.f32.xlu0 %v1394
      %v1396 = vpop.xlane.xlu0 %1395
      %v1397 = vadd.f32 %v1361, %v1362
      %1398 = vadd.xlane.f32.xlu0 %v1397
      %v1399 = vpop.xlane.xlu0 %1398
      %v1400 = vadd.f32 %v1363, %v1364
      %1401 = vadd.xlane.f32.xlu0 %v1400
      %v1402 = vpop.xlane.xlu0 %1401
      %v1403 = vadd.f32 %v1365, %v1366
      %1404 = vadd.xlane.f32.xlu0 %v1403
      %v1405 = vpop.xlane.xlu0 %1404
      %v1406 = vadd.f32 %v1367, %v1368
      %1407 = vadd.xlane.f32.xlu0 %v1406
      %v1408 = vpop.xlane.xlu0 %1407
      %v1409 = vadd.f32 %v1369, %v1370
      %1410 = vadd.xlane.f32.xlu0 %v1409
      %v1411 = vpop.xlane.xlu0 %1410
      %v1412 = vadd.f32 %v1371, %v1372
      %1413 = vadd.xlane.f32.xlu0 %v1412
      %v1414 = vpop.xlane.xlu0 %1413
      %v1415 = vadd.f32 %v1373, %v1374
      %1416 = vadd.xlane.f32.xlu0 %v1415
      %v1417 = vpop.xlane.xlu0 %1416
      %v1418 = vadd.f32 %v1375, %v1376
      %1419 = vadd.xlane.f32.xlu0 %v1418
      %v1420 = vpop.xlane.xlu0 %1419
      %v1421 = vadd.f32 %v1377, %v1378
      %1422 = vadd.xlane.f32.xlu0 %v1421
      %v1423 = vpop.xlane.xlu0 %1422
      %v1424 = vadd.f32 %v1379, %v1380
      %1425 = vadd.xlane.f32.xlu0 %v1424
      %v1426 = vpop.xlane.xlu0 %1425
      %v1427 = vadd.f32 %v1381, %v1382
      %1428 = vadd.xlane.f32.xlu0 %v1427
      %v1429 = vpop.xlane.xlu0 %1428
      %v1430 = vadd.f32 %v1383, %v1384
      %1431 = vadd.xlane.f32.xlu0 %v1430
      %v1432 = vpop.xlane.xlu0 %1431
      %v1433 = vadd.f32 %v1387, %v236
      %v1434 = vadd.f32 %v1390, %v236
      %v1435 = vadd.f32 %v1393, %v236
      %v1436 = vadd.f32 %v1396, %v236
      %v1437 = vadd.f32 %v1399, %v236
      %v1438 = vadd.f32 %v1402, %v236
      %v1439 = vadd.f32 %v1405, %v236
      %v1440 = vadd.f32 %v1408, %v236
      %v1441 = vadd.f32 %v1411, %v236
      %v1442 = vadd.f32 %v1414, %v236
      %v1443 = vadd.f32 %v1417, %v236
      %v1444 = vadd.f32 %v1420, %v236
      %v1445 = vadd.f32 %v1423, %v236
      %v1446 = vadd.f32 %v1426, %v236
      %v1447 = vadd.f32 %v1429, %v236
      %v1448 = vadd.f32 %v1432, %v236
      %v1450 = vperm.slane %v235, 0
      %v1451 = vperm.slane %v235, 1
      %v1454 = vmul.f32 %v1316, %v1450
      %v1455 = vmul.f32 %v1317, %v1451
      %v1456 = vmul.f32 %v1318, %v1450
      %v1457 = vmul.f32 %v1319, %v1451
      %v1458 = vmul.f32 %v1320, %v1450
      %v1459 = vmul.f32 %v1321, %v1451
      %v1460 = vmul.f32 %v1322, %v1450
      %v1461 = vmul.f32 %v1323, %v1451
      %v1462 = vmul.f32 %v1324, %v1450
      %v1463 = vmul.f32 %v1325, %v1451
      %v1464 = vmul.f32 %v1326, %v1450
      %v1465 = vmul.f32 %v1327, %v1451
      %v1466 = vmul.f32 %v1328, %v1450
      %v1467 = vmul.f32 %v1329, %v1451
      %v1468 = vmul.f32 %v1330, %v1450
      %v1469 = vmul.f32 %v1331, %v1451
      %v1470 = vmul.f32 %v1332, %v1450
      %v1471 = vmul.f32 %v1333, %v1451
      %v1472 = vmul.f32 %v1334, %v1450
      %v1473 = vmul.f32 %v1335, %v1451
      %v1474 = vmul.f32 %v1336, %v1450
      %v1475 = vmul.f32 %v1337, %v1451
      %v1476 = vmul.f32 %v1338, %v1450
      %v1477 = vmul.f32 %v1339, %v1451
      %v1478 = vmul.f32 %v1340, %v1450
      %v1479 = vmul.f32 %v1341, %v1451
      %v1480 = vmul.f32 %v1342, %v1450
      %v1481 = vmul.f32 %v1343, %v1451
      %v1482 = vmul.f32 %v1344, %v1450
      %v1483 = vmul.f32 %v1345, %v1451
      %v1484 = vmul.f32 %v1346, %v1450
      %v1485 = vmul.f32 %v1347, %v1451
      %v1486 = vadd.f32 %v1454, %v1455
      %1487 = vadd.xlane.f32.xlu0 %v1486
      %v1488 = vpop.xlane.xlu0 %1487
      %v1489 = vadd.f32 %v1456, %v1457
      %1490 = vadd.xlane.f32.xlu0 %v1489
      %v1491 = vpop.xlane.xlu0 %1490
      %v1492 = vadd.f32 %v1458, %v1459
      %1493 = vadd.xlane.f32.xlu0 %v1492
      %v1494 = vpop.xlane.xlu0 %1493
      %v1495 = vadd.f32 %v1460, %v1461
      %1496 = vadd.xlane.f32.xlu0 %v1495
      %v1497 = vpop.xlane.xlu0 %1496
      %v1498 = vadd.f32 %v1462, %v1463
      %1499 = vadd.xlane.f32.xlu0 %v1498
      %v1500 = vpop.xlane.xlu0 %1499
      %v1501 = vadd.f32 %v1464, %v1465
      %1502 = vadd.xlane.f32.xlu0 %v1501
      %v1503 = vpop.xlane.xlu0 %1502
      %v1504 = vadd.f32 %v1466, %v1467
      %1505 = vadd.xlane.f32.xlu0 %v1504
      %v1506 = vpop.xlane.xlu0 %1505
      %v1507 = vadd.f32 %v1468, %v1469
      %1508 = vadd.xlane.f32.xlu0 %v1507
      %v1509 = vpop.xlane.xlu0 %1508
      %v1510 = vadd.f32 %v1470, %v1471
      %1511 = vadd.xlane.f32.xlu0 %v1510
      %v1512 = vpop.xlane.xlu0 %1511
      %v1513 = vadd.f32 %v1472, %v1473
      %1514 = vadd.xlane.f32.xlu0 %v1513
      %v1515 = vpop.xlane.xlu0 %1514
      %v1516 = vadd.f32 %v1474, %v1475
      %1517 = vadd.xlane.f32.xlu0 %v1516
      %v1518 = vpop.xlane.xlu0 %1517
      %v1519 = vadd.f32 %v1476, %v1477
      %1520 = vadd.xlane.f32.xlu0 %v1519
      %v1521 = vpop.xlane.xlu0 %1520
      %v1522 = vadd.f32 %v1478, %v1479
      %1523 = vadd.xlane.f32.xlu0 %v1522
      %v1524 = vpop.xlane.xlu0 %1523
      %v1525 = vadd.f32 %v1480, %v1481
      %1526 = vadd.xlane.f32.xlu0 %v1525
      %v1527 = vpop.xlane.xlu0 %1526
      %v1528 = vadd.f32 %v1482, %v1483
      %1529 = vadd.xlane.f32.xlu0 %v1528
      %v1530 = vpop.xlane.xlu0 %1529
      %v1531 = vadd.f32 %v1484, %v1485
      %1532 = vadd.xlane.f32.xlu0 %v1531
      %v1533 = vpop.xlane.xlu0 %1532
      %v1534 = vadd.f32 %v1488, %v236
      %v1535 = vadd.f32 %v1491, %v236
      %v1536 = vadd.f32 %v1494, %v236
      %v1537 = vadd.f32 %v1497, %v236
      %v1538 = vadd.f32 %v1500, %v236
      %v1539 = vadd.f32 %v1503, %v236
      %v1540 = vadd.f32 %v1506, %v236
      %v1541 = vadd.f32 %v1509, %v236
      %v1542 = vadd.f32 %v1512, %v236
      %v1543 = vadd.f32 %v1515, %v236
      %v1544 = vadd.f32 %v1518, %v236
      %v1545 = vadd.f32 %v1521, %v236
      %v1546 = vadd.f32 %v1524, %v236
      %v1547 = vadd.f32 %v1527, %v236
      %v1548 = vadd.f32 %v1530, %v236
      %v1549 = vadd.f32 %v1533, %v236
      %1550 = vst.msk [vmem:[%s194] sm:$0xff] %vm462, %v529
      %1551 = vst.msk [vmem:[%s194 + $0x8] sm:$0xff] %vm462, %v532
      %1552 = vst.msk [vmem:[%s194 + $0x10] sm:$0xff] %vm462, %v535
      %1553 = vst.msk [vmem:[%s194 + $0x18] sm:$0xff] %vm462, %v538
      %1554 = vst.msk [vmem:[%s194 + $0x20] sm:$0xff] %vm462, %v541
      %1555 = vst.msk [vmem:[%s194 + $0x28] sm:$0xff] %vm462, %v544
      %1556 = vst.msk [vmem:[%s194 + $0x30] sm:$0xff] %vm462, %v547
      %1557 = vst.msk [vmem:[%s194 + $0x38] sm:$0xff] %vm462, %v550
      %1558 = vst.msk [vmem:[%s194 + $0x40] sm:$0xff] %vm462, %v553
      %1559 = vst.msk [vmem:[%s194 + $0x48] sm:$0xff] %vm462, %v556
      %1560 = vst.msk [vmem:[%s194 + $0x50] sm:$0xff] %vm462, %v559
      %1561 = vst.msk [vmem:[%s194 + $0x58] sm:$0xff] %vm462, %v562
      %1562 = vst.msk [vmem:[%s194 + $0x60] sm:$0xff] %vm462, %v565
      %1563 = vst.msk [vmem:[%s194 + $0x68] sm:$0xff] %vm462, %v568
      %1564 = vst.msk [vmem:[%s194 + $0x70] sm:$0xff] %vm462, %v571
      %1565 = vst.msk [vmem:[%s194 + $0x78] sm:$0xff] %vm462, %v574
      %vm1566 = vcmask 7168
      %v1567 = vsel %vm1566, %v1433, %v1534
      %v1568 = vsel %vm1566, %v1434, %v1535
      %v1569 = vsel %vm1566, %v1435, %v1536
      %v1570 = vsel %vm1566, %v1436, %v1537
      %v1571 = vsel %vm1566, %v1437, %v1538
      %v1572 = vsel %vm1566, %v1438, %v1539
      %v1573 = vsel %vm1566, %v1439, %v1540
      %v1574 = vsel %vm1566, %v1440, %v1541
      %v1575 = vsel %vm1566, %v1441, %v1542
      %v1576 = vsel %vm1566, %v1442, %v1543
      %v1577 = vsel %vm1566, %v1443, %v1544
      %v1578 = vsel %vm1566, %v1444, %v1545
      %v1579 = vsel %vm1566, %v1445, %v1546
      %v1580 = vsel %vm1566, %v1446, %v1547
      %v1581 = vsel %vm1566, %v1447, %v1548
      %v1582 = vsel %vm1566, %v1448, %v1549
      %1599 = vrot.lane.b32.xlu0 %v1567, 32
      %v1600 = vpop.permute.xlu0 %1599
      %1601 = vrot.lane.b32.xlu0 %v1568, 32
      %v1602 = vpop.permute.xlu0 %1601
      %1603 = vrot.lane.b32.xlu0 %v1569, 32
      %v1604 = vpop.permute.xlu0 %1603
      %1605 = vrot.lane.b32.xlu0 %v1570, 32
      %v1606 = vpop.permute.xlu0 %1605
      %1607 = vrot.lane.b32.xlu0 %v1571, 32
      %v1608 = vpop.permute.xlu0 %1607
      %1609 = vrot.lane.b32.xlu0 %v1572, 32
      %v1610 = vpop.permute.xlu0 %1609
      %1611 = vrot.lane.b32.xlu0 %v1573, 32
      %v1612 = vpop.permute.xlu0 %1611
      %1613 = vrot.lane.b32.xlu0 %v1574, 32
      %v1614 = vpop.permute.xlu0 %1613
      %1615 = vrot.lane.b32.xlu0 %v1575, 32
      %v1616 = vpop.permute.xlu0 %1615
      %1617 = vrot.lane.b32.xlu0 %v1576, 32
      %v1618 = vpop.permute.xlu0 %1617
      %1619 = vrot.lane.b32.xlu0 %v1577, 32
      %v1620 = vpop.permute.xlu0 %1619
      %1621 = vrot.lane.b32.xlu0 %v1578, 32
      %v1622 = vpop.permute.xlu0 %1621
      %1623 = vrot.lane.b32.xlu0 %v1579, 32
      %v1624 = vpop.permute.xlu0 %1623
      %1625 = vrot.lane.b32.xlu0 %v1580, 32
      %v1626 = vpop.permute.xlu0 %1625
      %1627 = vrot.lane.b32.xlu0 %v1581, 32
      %v1628 = vpop.permute.xlu0 %1627
      %1629 = vrot.lane.b32.xlu0 %v1582, 32
      %v1630 = vpop.permute.xlu0 %1629
      %vm1647 = vcmask 277760
      %1648 = vst.msk [vmem:[%s194] sm:$0xff] %vm1647, %v1600
      %1649 = vst.msk [vmem:[%s194 + $0x8] sm:$0xff] %vm1647, %v1602
      %1650 = vst.msk [vmem:[%s194 + $0x10] sm:$0xff] %vm1647, %v1604
      %1651 = vst.msk [vmem:[%s194 + $0x18] sm:$0xff] %vm1647, %v1606
      %1652 = vst.msk [vmem:[%s194 + $0x20] sm:$0xff] %vm1647, %v1608
      %1653 = vst.msk [vmem:[%s194 + $0x28] sm:$0xff] %vm1647, %v1610
      %1654 = vst.msk [vmem:[%s194 + $0x30] sm:$0xff] %vm1647, %v1612
      %1655 = vst.msk [vmem:[%s194 + $0x38] sm:$0xff] %vm1647, %v1614
      %1656 = vst.msk [vmem:[%s194 + $0x40] sm:$0xff] %vm1647, %v1616
      %1657 = vst.msk [vmem:[%s194 + $0x48] sm:$0xff] %vm1647, %v1618
      %1658 = vst.msk [vmem:[%s194 + $0x50] sm:$0xff] %vm1647, %v1620
      %1659 = vst.msk [vmem:[%s194 + $0x58] sm:$0xff] %vm1647, %v1622
      %1660 = vst.msk [vmem:[%s194 + $0x60] sm:$0xff] %vm1647, %v1624
      %1661 = vst.msk [vmem:[%s194 + $0x68] sm:$0xff] %vm1647, %v1626
      %1662 = vst.msk [vmem:[%s194 + $0x70] sm:$0xff] %vm1647, %v1628
      %1663 = vst.msk [vmem:[%s194 + $0x78] sm:$0xff] %vm1647, %v1630
      %s1664 = smul.u32 16, %s14
      %p1665 = scmp.lt.s32.totalorder %s1664, 31
      %s1666 = scalar_select %p1665, %s1664, 31
      %s1667 = smul.addr %s1666, 8
      %s1668 = scalar_lea.vmem %s3, %s1667
      // Predicated region
      $region33: #{tpu_custom_call.1} parent=31 // pred_check
        %p1669 = pneg %p105
      $region34: #{tpu_custom_call.1} parent=31 // pred_check_branch
        %1671 = sbr.rel (%p1669) target = $region36
      $region35: #{tpu_custom_call.1} parent=31 // pred_region
        %s1672 = smul.u32 16, %s14
      $region36: #{tpu_custom_call.1} parent=31 // pred_fallthru
        _
    $region32: #{tpu_custom_call.1} parent=5 // pred_fallthru
      _
    %p1673 = scmp.le.s32.totalorder 2, %s9
    // Predicated region
    $region37: #{tpu_custom_call.1} parent=5 // pred_check
      %p1674 = pneg %p1673
    $region38: #{tpu_custom_call.1} parent=5 // pred_check_branch
      %1676 = sbr.rel (%p1674) target = $region40
    $region39: #{tpu_custom_call.1} parent=5 // pred_region
      %s1677 = ssub.s32 %s9, 2
      // Predicated region
      $region41: #{tpu_custom_call.1} parent=39 // pred_check
        %p1678 = pneg %p111
      $region42: #{tpu_custom_call.1} parent=39 // pred_check_branch
        %1680 = sbr.rel (%p1678) target = $region44
      $region43: #{tpu_custom_call.1} parent=39 // pred_region
        %s1681 = smul.u32 16, %s15
        %p1682 = scmp.lt.s32.totalorder %s1681, 31
        %s1683 = scalar_select %p1682, %s1681, 31
        %s1684 = smul.addr %s1683, 8
        %s1685 = scalar_lea.vmem %s3, %s1684
      $region44: #{tpu_custom_call.1} parent=39 // pred_fallthru
        _
    $region40: #{tpu_custom_call.1} parent=5 // pred_fallthru
      _
  $region6: #{tpu_custom_call.1} parent=0 // loop_footer
    %s13 = sadd.s32 1, %s9
  $region7: #{tpu_custom_call.1} parent=0 // loop_footer_branch
    %8 = sbr.rel target = $region3
  $region8: #{tpu_custom_call.1} parent=0 // loop_exit
    _

// kernel: tpu_custom_call.1
$region0: #{tpu_custom_call.1}
  #allocation0 [shape = 'u32[]', space=smem, size = 0x4, offset = 0x4, fixed_abs, tag = 'smem constant byte address 0x4 - core index']
  #allocation1 [shape = 'u32[72,128]{1,0:T(1,128)}', space=vmem, size = 0x9000, scoped, tag = 'internal scratch']
  %s0 = inlined_call_operand.vmem [shape: f32[256,16], index: 0, kind: input, shape index: {}]
  %s1 = inlined_call_operand.vmem [shape: f32[256,1], index: 1, kind: input, shape index: {}]
  %s2 = inlined_call_operand.vmem [shape: f32[224,256], index: 2, kind: input, shape index: {}]
  %s3 = inlined_call_operand.vmem [shape: f32[256,40], index: 3, kind: output, shape index: {}]
  %s4 = sld [smem:[#allocation0]]
  $region45: #{tpu_custom_call.1} parent=0
    _
  %s6 = ssub.s32 1, %s4
  %s7 = scalar_select 0, %s6, %s4
  loop: start=0, step=1, limit=4
  $region2: #{tpu_custom_call.1} parent=0 // loop_pre_header
    _
  $region3: #{tpu_custom_call.1} parent=0 // loop_header
    %s9 = sphi 0, %s13
    %p10 = scmp.ge.s32.totalorder %s9, 4
    %s19 = sphi 0, %s21
    %s22 = sphi 0, %s19
    %s23 = sphi 0, %s22
    %s39 = sphi 0, %s23
    %s45 = sphi 0, %s47
    %s48 = sphi 0, %s45
    %s49 = sphi 0, %s48
    %s65 = sphi 0, %s49
    %s69 = sphi 0, %s69
    %s71 = sphi 0, %s69
    %s72 = sphi 0, %s71
    %s86 = sphi 0, %s72
    %s92 = sphi 0, %s94
    %s95 = sphi 0, %s92
    %s96 = sphi 0, %s95
    %s112 = sphi 0, %s96
  $region4: #{tpu_custom_call.1} parent=0 // loop_header_branch
    %12 = sbr.rel (%p10) target = $region8
  $region5: #{tpu_custom_call.1} parent=0 // loop_body
    %s14 = ssub.s32 %s9, 1
    %s15 = ssub.s32 %s9, 2
    %s16 = sadd.s32 %s9, 1
    %s17 = ssub.s32 %s9, %s16
    %p18 = scmp.eq.s32.totalorder %s17, 0
    %s20 = sadd.s32 %s19, 1
    %s21 = scalar_select %p18, %s19, %s20
    %p24 = pneg %p18
    %p25 = scmp.eq.s32.totalorder %s9, 1
    %p26 = por %p24, %p25
    %p27 = scmp.ne.s32.totalorder %s19, %s22
    %p28 = scmp.eq.s32.totalorder %s9, 0
    %p29 = por %p27, %p28
    %p30 = scmp.ne.s32.totalorder %s19, %s22
    %p31 = scmp.eq.s32.totalorder %s14, 1
    %p32 = por %p30, %p31
    %p33 = scmp.ne.s32.totalorder %s22, %s23
    %p34 = scmp.eq.s32.totalorder %s14, 0
    %p35 = por %p33, %p34
    %p36 = scmp.ne.s32.totalorder %s22, %s23
    %p37 = scmp.eq.s32.totalorder %s15, 1
    %p38 = por %p36, %p37
    %p40 = scmp.ne.s32.totalorder %s23, %s39
    %p41 = scmp.eq.s32.totalorder %s15, 0
    %p42 = por %p40, %p41
    %s43 = ssub.s32 %s9, %s16
    %p44 = scmp.eq.s32.totalorder %s43, 0
    %s46 = sadd.s32 %s45, 1
    %s47 = scalar_select %p44, %s45, %s46
    %p50 = pneg %p44
    %p51 = scmp.eq.s32.totalorder %s9, 1
    %p52 = por %p50, %p51
    %p53 = scmp.ne.s32.totalorder %s45, %s48
    %p54 = scmp.eq.s32.totalorder %s9, 0
    %p55 = por %p53, %p54
    %p56 = scmp.ne.s32.totalorder %s45, %s48
    %p57 = scmp.eq.s32.totalorder %s14, 1
    %p58 = por %p56, %p57
    %p59 = scmp.ne.s32.totalorder %s48, %s49
    %p60 = scmp.eq.s32.totalorder %s14, 0
    %p61 = por %p59, %p60
    %p62 = scmp.ne.s32.totalorder %s48, %s49
    %p63 = scmp.eq.s32.totalorder %s15, 1
    %p64 = por %p62, %p63
    %p66 = scmp.ne.s32.totalorder %s49, %s65
    %p67 = scmp.eq.s32.totalorder %s15, 0
    %p68 = por %p66, %p67
    %s70 = sadd.s32 %s69, 1
    %p73 = scmp.eq.s32.totalorder %s9, 1
    %p74 = scmp.ne.s32.totalorder %s69, %s71
    %p75 = scmp.eq.s32.totalorder %s9, 0
    %p76 = por %p74, %p75
    %p77 = scmp.ne.s32.totalorder %s69, %s71
    %p78 = scmp.eq.s32.totalorder %s14, 1
    %p79 = por %p77, %p78
    %p80 = scmp.ne.s32.totalorder %s71, %s72
    %p81 = scmp.eq.s32.totalorder %s14, 0
    %p82 = por %p80, %p81
    %p83 = scmp.ne.s32.totalorder %s71, %s72
    %p84 = scmp.eq.s32.totalorder %s15, 1
    %p85 = por %p83, %p84
    %p87 = scmp.ne.s32.totalorder %s72, %s86
    %p88 = scmp.eq.s32.totalorder %s15, 0
    %p89 = por %p87, %p88
    %s90 = ssub.s32 %s9, %s16
    %p91 = scmp.eq.s32.totalorder %s90, 0
    %s93 = sadd.s32 %s92, 1
    %s94 = scalar_select %p91, %s92, %s93
    %p97 = pneg %p91
    %p98 = scmp.eq.s32.totalorder %s9, 1
    %p99 = por %p97, %p98
    %p100 = scmp.ne.s32.totalorder %s92, %s95
    %p101 = scmp.eq.s32.totalorder %s9, 0
    %p102 = por %p100, %p101
    %p103 = scmp.ne.s32.totalorder %s92, %s95
    %p104 = scmp.eq.s32.totalorder %s14, 1
    %p105 = por %p103, %p104
    %p106 = scmp.ne.s32.totalorder %s95, %s96
    %p107 = scmp.eq.s32.totalorder %s14, 0
    %p108 = por %p106, %p107
    %p109 = scmp.ne.s32.totalorder %s95, %s96
    %p110 = scmp.eq.s32.totalorder %s15, 1
    %p111 = por %p109, %p110
    %p113 = scmp.ne.s32.totalorder %s96, %s112
    %p114 = scmp.eq.s32.totalorder %s15, 0
    %p115 = por %p113, %p114
    %p116 = scmp.le.s32.totalorder 1, %s9
    %p117 = scmp.lt.s32.totalorder %s9, 3
    %p118 = pnand %p116, %p117
    %p119 = pneg %p118
    // Predicated region
    $region9: #{tpu_custom_call.1} parent=5 // pred_check
      _
    $region10: #{tpu_custom_call.1} parent=5 // pred_check_branch
      %121 = sbr.rel (%p118) target = $region12
    $region11: #{tpu_custom_call.1} parent=5 // pred_region
      %s122 = ssub.s32 %s9, 1
      // Predicated region
      $region13: #{tpu_custom_call.1} parent=11 // pred_check
        %p123 = pneg %p82
      $region14: #{tpu_custom_call.1} parent=11 // pred_check_branch
        %125 = sbr.rel (%p123) target = $region16
      $region15: #{tpu_custom_call.1} parent=11 // pred_region
        _
      $region16: #{tpu_custom_call.1} parent=11 // pred_fallthru
        _
    $region12: #{tpu_custom_call.1} parent=5 // pred_fallthru
      _
    %p126 = scmp.lt.s32.totalorder %s9, 2
    // Predicated region
    $region17: #{tpu_custom_call.1} parent=5 // pred_check
      %p127 = pneg %p126
    $region18: #{tpu_custom_call.1} parent=5 // pred_check_branch
      %129 = sbr.rel (%p127) target = $region20
    $region19: #{tpu_custom_call.1} parent=5 // pred_region
      // Predicated region
      $region21: #{tpu_custom_call.1} parent=19 // pred_check
        %p130 = pneg %p29
      $region22: #{tpu_custom_call.1} parent=19 // pred_check_branch
        %132 = sbr.rel (%p130) target = $region24
      $region23: #{tpu_custom_call.1} parent=19 // pred_region
        %s133 = smul.u32 16, %s9
        %p134 = scmp.lt.s32.totalorder %s133, 31
        %s135 = scalar_select %p134, %s133, 31
        %s136 = smul.addr %s135, 8
        %s137 = scalar_lea.vmem %s0, %s136
        %s138 = smul.u32 16, %s9
      $region24: #{tpu_custom_call.1} parent=19 // pred_fallthru
        _
      // Predicated region
      $region25: #{tpu_custom_call.1} parent=19 // pred_check
        %p139 = pneg %p55
      $region26: #{tpu_custom_call.1} parent=19 // pred_check_branch
        %141 = sbr.rel (%p139) target = $region28
      $region27: #{tpu_custom_call.1} parent=19 // pred_region
        %s142 = smul.u32 16, %s9
        %p143 = scmp.lt.s32.totalorder %s142, 31
        %s144 = scalar_select %p143, %s142, 31
        %s145 = smul.addr %s144, 8
        %s146 = scalar_lea.vmem %s1, %s145
        %s147 = smul.u32 16, %s9
      $region28: #{tpu_custom_call.1} parent=19 // pred_fallthru
        _
    $region20: #{tpu_custom_call.1} parent=5 // pred_fallthru
      _
    %p148 = scmp.le.s32.totalorder 1, %s9
    %p149 = scmp.lt.s32.totalorder %s9, 3
    %p150 = pnand %p148, %p149
    %p151 = pneg %p150
    // Predicated region
    $region29: #{tpu_custom_call.1} parent=5 // pred_check
      _
    $region30: #{tpu_custom_call.1} parent=5 // pred_check_branch
      %153 = sbr.rel (%p150) target = $region32
    $region31: #{tpu_custom_call.1} parent=5 // pred_region
      %s154 = ssub.s32 %s9, 1
      %s155 = smul.u32 16, %s14
      %p156 = scmp.lt.s32.totalorder %s155, 31
      %s157 = scalar_select %p156, %s155, 31
      %s158 = smul.addr %s157, 8
      %s159 = scalar_lea.vmem %s0, %s158
      %p160 = pneg %p35
      %p161 = pneg %p32
      %s162 = smul.u32 16, %s14
      %p163 = scmp.lt.s32.totalorder %s162, 31
      %s164 = scalar_select %p163, %s162, 31
      %s165 = smul.addr %s164, 8
      %s166 = scalar_lea.vmem %s1, %s165
      %p167 = pneg %p61
      %p168 = pneg %p58
      %p169 = pneg %p82
      %p170 = pneg %p79
      %p171 = pneg %p108
      %p172 = pneg %p105
      %s173 = smul.u32 16, %s14
      %p174 = scmp.lt.s32.totalorder %s173, 31
      %s175 = scalar_select %p174, %s173, 31
      %s176 = smul.addr %s175, 8
      %s177 = scalar_lea.vmem %s3, %s176
      %s178 = smul.u32 16, %s14
      %p179 = scmp.lt.s32.totalorder %s178, 31
      %s180 = scalar_select %p179, %s178, 31
      %s181 = smul.addr %s180, 8
      %s182 = scalar_lea.vmem %s0, %s181
      %s183 = smul.u32 16, %s14
      %s184 = smul.u32 16, %s14
      %p185 = scmp.lt.s32.totalorder %s184, 31
      %s186 = scalar_select %p185, %s184, 31
      %s187 = smul.addr %s186, 8
      %s188 = scalar_lea.vmem %s1, %s187
      %s189 = smul.u32 16, %s14
      %s190 = smul.u32 16, %s14
      %p191 = scmp.lt.s32.totalorder %s190, 31
      %s192 = scalar_select %p191, %s190, 31
      %s193 = smul.addr %s192, 8
      %s194 = scalar_lea.vmem %s3, %s193
      %s195 = smul.u32 16, %s14
      %v196 = vld [vmem:[%s182] sm:$0xff]
      %v197 = vld [vmem:[%s182 + $0x8] sm:$0xff]
      %v198 = vld [vmem:[%s182 + $0x10] sm:$0xff]
      %v199 = vld [vmem:[%s182 + $0x18] sm:$0xff]
      %v200 = vld [vmem:[%s182 + $0x20] sm:$0xff]
      %v201 = vld [vmem:[%s182 + $0x28] sm:$0xff]
      %v202 = vld [vmem:[%s182 + $0x30] sm:$0xff]
      %v203 = vld [vmem:[%s182 + $0x38] sm:$0xff]
      %v204 = vld [vmem:[%s182 + $0x40] sm:$0xff]
      %v205 = vld [vmem:[%s182 + $0x48] sm:$0xff]
      %v206 = vld [vmem:[%s182 + $0x50] sm:$0xff]
      %v207 = vld [vmem:[%s182 + $0x58] sm:$0xff]
      %v208 = vld [vmem:[%s182 + $0x60] sm:$0xff]
      %v209 = vld [vmem:[%s182 + $0x68] sm:$0xff]
      %v210 = vld [vmem:[%s182 + $0x70] sm:$0xff]
      %v211 = vld [vmem:[%s182 + $0x78] sm:$0xff]
      %v212 = vld [vmem:[%s188] sm:$0xff]
      %v213 = vld [vmem:[%s188 + $0x8] sm:$0xff]
      %v214 = vld [vmem:[%s188 + $0x10] sm:$0xff]
      %v215 = vld [vmem:[%s188 + $0x18] sm:$0xff]
      %v216 = vld [vmem:[%s188 + $0x20] sm:$0xff]
      %v217 = vld [vmem:[%s188 + $0x28] sm:$0xff]
      %v218 = vld [vmem:[%s188 + $0x30] sm:$0xff]
      %v219 = vld [vmem:[%s188 + $0x38] sm:$0xff]
      %v220 = vld [vmem:[%s188 + $0x40] sm:$0xff]
      %v221 = vld [vmem:[%s188 + $0x48] sm:$0xff]
      %v222 = vld [vmem:[%s188 + $0x50] sm:$0xff]
      %v223 = vld [vmem:[%s188 + $0x58] sm:$0xff]
      %v224 = vld [vmem:[%s188 + $0x60] sm:$0xff]
      %v225 = vld [vmem:[%s188 + $0x68] sm:$0xff]
      %v226 = vld [vmem:[%s188 + $0x70] sm:$0xff]
      %v227 = vld [vmem:[%s188 + $0x78] sm:$0xff]
      %s228 = scalar_lea.vmem %s2, 288
      %v229 = vld [vmem:[%s228] ss:$8 sm:$0x3]
      %s230 = scalar_lea.vmem %s2, 320
      %v231 = vld [vmem:[%s230] ss:$8 sm:$0x3]
      %s232 = scalar_lea.vmem %s2, 352
      %v233 = vld [vmem:[%s232] ss:$8 sm:$0x3]
      %s234 = scalar_lea.vmem %s2, 384
      %v235 = vld [vmem:[%s234] ss:$8 sm:$0x3]
      %v236 = vld [vmem:[%s2 + $0x1a0] ss:$0 sm:$0xff]
      %v237 = vld [vmem:[%s2] sm:$0xff]
      %v238 = vld [vmem:[%s2 + $0x8] sm:$0xff]
      %v239 = vld [vmem:[%s2 + $0x10] sm:$0xff]
      %v240 = vld [vmem:[%s2 + $0x18] sm:$0xff]
      %vm241 = vcmask 130048
      %v243 = vsel %vm241, %v196, 0
      %v246 = vsel %vm241, %v197, 0
      %v249 = vsel %vm241, %v198, 0
      %v252 = vsel %vm241, %v199, 0
      %v255 = vsel %vm241, %v200, 0
      %v258 = vsel %vm241, %v201, 0
      %v261 = vsel %vm241, %v202, 0
      %v264 = vsel %vm241, %v203, 0
      %v267 = vsel %vm241, %v204, 0
      %v270 = vsel %vm241, %v205, 0
      %v273 = vsel %vm241, %v206, 0
      %v276 = vsel %vm241, %v207, 0
      %v279 = vsel %vm241, %v208, 0
      %v282 = vsel %vm241, %v209, 0
      %v285 = vsel %vm241, %v210, 0
      %v288 = vsel %vm241, %v211, 0
      %290 = vmatpush.msra.mxu0 0.0
      %291 = vmatpush.msra.mxu0 0.0
      %292 = vmatpush.msra.mxu0 0.0
      %293 = vmatpush.msra.mxu0 0.0
      %294 = vmatpush.msra.mxu0 0.0
      %295 = vmatpush.msra.mxu0 0.0
      %296 = vmatpush.msra.mxu0 0.0
      %297 = vmatpush.msra.mxu0 0.0
      %298 = vmatpush.msra.mxu0 0.0
      %299 = vmatpush.msra.mxu0 0.0
      %300 = vmatpush.msra.mxu0 0.0
      %301 = vmatpush.msra.mxu0 0.0
      %302 = vmatpush.msra.mxu0 0.0
      %303 = vmatpush.msra.mxu0 0.0
      %304 = vmatpush.msra.mxu0 %v239
      %305 = vmatpush.msra.mxu0 %v237
      %306 = vmatmul.f32.gmra.mxu0 %v243
      %v307 = vpop.f32.mrf.mxu0
      %v308 = vadd.f32 0.0, %v307
      %309 = vmatmul.f32.gmra.mxu0 %v246
      %v310 = vpop.f32.mrf.mxu0
      %v311 = vadd.f32 0.0, %v310
      %312 = vmatmul.f32.gmra.mxu0 %v249
      %v313 = vpop.f32.mrf.mxu0
      %v314 = vadd.f32 0.0, %v313
      %315 = vmatmul.f32.gmra.mxu0 %v252
      %v316 = vpop.f32.mrf.mxu0
      %v317 = vadd.f32 0.0, %v316
      %318 = vmatmul.f32.gmra.mxu0 %v255
      %v319 = vpop.f32.mrf.mxu0
      %v320 = vadd.f32 0.0, %v319
      %321 = vmatmul.f32.gmra.mxu0 %v258
      %v322 = vpop.f32.mrf.mxu0
      %v323 = vadd.f32 0.0, %v322
      %324 = vmatmul.f32.gmra.mxu0 %v261
      %v325 = vpop.f32.mrf.mxu0
      %v326 = vadd.f32 0.0, %v325
      %327 = vmatmul.f32.gmra.mxu0 %v264
      %v328 = vpop.f32.mrf.mxu0
      %v329 = vadd.f32 0.0, %v328
      %330 = vmatmul.f32.gmra.mxu0 %v267
      %v331 = vpop.f32.mrf.mxu0
      %v332 = vadd.f32 0.0, %v331
      %333 = vmatmul.f32.gmra.mxu0 %v270
      %v334 = vpop.f32.mrf.mxu0
      %v335 = vadd.f32 0.0, %v334
      %336 = vmatmul.f32.gmra.mxu0 %v273
      %v337 = vpop.f32.mrf.mxu0
      %v338 = vadd.f32 0.0, %v337
      %339 = vmatmul.f32.gmra.mxu0 %v276
      %v340 = vpop.f32.mrf.mxu0
      %v341 = vadd.f32 0.0, %v340
      %342 = vmatmul.f32.gmra.mxu0 %v279
      %v343 = vpop.f32.mrf.mxu0
      %v344 = vadd.f32 0.0, %v343
      %345 = vmatmul.f32.gmra.mxu0 %v282
      %v346 = vpop.f32.mrf.mxu0
      %v347 = vadd.f32 0.0, %v346
      %348 = vmatmul.f32.gmra.mxu0 %v285
      %v349 = vpop.f32.mrf.mxu0
      %v350 = vadd.f32 0.0, %v349
      %351 = vmatmul.f32.gmra.mxu0 %v288
      %v352 = vpop.f32.mrf.mxu0
      %v353 = vadd.f32 0.0, %v352
      %354 = vdwg.mxu0
      %355 = vmatpush.msra.mxu0 0.0
      %356 = vmatpush.msra.mxu0 0.0
      %357 = vmatpush.msra.mxu0 0.0
      %358 = vmatpush.msra.mxu0 0.0
      %359 = vmatpush.msra.mxu0 0.0
      %360 = vmatpush.msra.mxu0 0.0
      %361 = vmatpush.msra.mxu0 0.0
      %362 = vmatpush.msra.mxu0 0.0
      %363 = vmatpush.msra.mxu0 0.0
      %364 = vmatpush.msra.mxu0 0.0
      %365 = vmatpush.msra.mxu0 0.0
      %366 = vmatpush.msra.mxu0 0.0
      %367 = vmatpush.msra.mxu0 0.0
      %368 = vmatpush.msra.mxu0 0.0
      %369 = vmatpush.msra.mxu0 %v240
      %370 = vmatpush.msra.mxu0 %v238
      %371 = vmatmul.f32.gmra.mxu0 %v243
      %v372 = vpop.f32.mrf.mxu0
      %v373 = vadd.f32 0.0, %v372
      %374 = vmatmul.f32.gmra.mxu0 %v246
      %v375 = vpop.f32.mrf.mxu0
      %v376 = vadd.f32 0.0, %v375
      %377 = vmatmul.f32.gmra.mxu0 %v249
      %v378 = vpop.f32.mrf.mxu0
      %v379 = vadd.f32 0.0, %v378
      %380 = vmatmul.f32.gmra.mxu0 %v252
      %v381 = vpop.f32.mrf.mxu0
      %v382 = vadd.f32 0.0, %v381
      %383 = vmatmul.f32.gmra.mxu0 %v255
      %v384 = vpop.f32.mrf.mxu0
      %v385 = vadd.f32 0.0, %v384
      %386 = vmatmul.f32.gmra.mxu0 %v258
      %v387 = vpop.f32.mrf.mxu0
      %v388 = vadd.f32 0.0, %v387
      %389 = vmatmul.f32.gmra.mxu0 %v261
      %v390 = vpop.f32.mrf.mxu0
      %v391 = vadd.f32 0.0, %v390
      %392 = vmatmul.f32.gmra.mxu0 %v264
      %v393 = vpop.f32.mrf.mxu0
      %v394 = vadd.f32 0.0, %v393
      %395 = vmatmul.f32.gmra.mxu0 %v267
      %v396 = vpop.f32.mrf.mxu0
      %v397 = vadd.f32 0.0, %v396
      %398 = vmatmul.f32.gmra.mxu0 %v270
      %v399 = vpop.f32.mrf.mxu0
      %v400 = vadd.f32 0.0, %v399
      %401 = vmatmul.f32.gmra.mxu0 %v273
      %v402 = vpop.f32.mrf.mxu0
      %v403 = vadd.f32 0.0, %v402
      %404 = vmatmul.f32.gmra.mxu0 %v276
      %v405 = vpop.f32.mrf.mxu0
      %v406 = vadd.f32 0.0, %v405
      %407 = vmatmul.f32.gmra.mxu0 %v279
      %v408 = vpop.f32.mrf.mxu0
      %v409 = vadd.f32 0.0, %v408
      %410 = vmatmul.f32.gmra.mxu0 %v282
      %v411 = vpop.f32.mrf.mxu0
      %v412 = vadd.f32 0.0, %v411
      %413 = vmatmul.f32.gmra.mxu0 %v285
      %v414 = vpop.f32.mrf.mxu0
      %v415 = vadd.f32 0.0, %v414
      %416 = vmatmul.f32.gmra.mxu0 %v288
      %v417 = vpop.f32.mrf.mxu0
      %v418 = vadd.f32 0.0, %v417
      %419 = vdwg.mxu0
      %v421 = vperm.slane %v229, 0
      %v423 = vadd.f32 %v308, %v421
      %v424 = vadd.f32 %v311, %v421
      %v425 = vadd.f32 %v314, %v421
      %v426 = vadd.f32 %v317, %v421
      %v427 = vadd.f32 %v320, %v421
      %v428 = vadd.f32 %v323, %v421
      %v429 = vadd.f32 %v326, %v421
      %v430 = vadd.f32 %v329, %v421
      %v431 = vadd.f32 %v332, %v421
      %v432 = vadd.f32 %v335, %v421
      %v433 = vadd.f32 %v338, %v421
      %v434 = vadd.f32 %v341, %v421
      %v435 = vadd.f32 %v344, %v421
      %v436 = vadd.f32 %v347, %v421
      %v437 = vadd.f32 %v350, %v421
      %v438 = vadd.f32 %v353, %v421
      %v439 = vmax.f32 %v423, 0.0
      %v440 = vmax.f32 %v424, 0.0
      %v441 = vmax.f32 %v425, 0.0
      %v442 = vmax.f32 %v426, 0.0
      %v443 = vmax.f32 %v427, 0.0
      %v444 = vmax.f32 %v428, 0.0
      %v445 = vmax.f32 %v429, 0.0
      %v446 = vmax.f32 %v430, 0.0
      %v447 = vmax.f32 %v431, 0.0
      %v448 = vmax.f32 %v432, 0.0
      %v449 = vmax.f32 %v433, 0.0
      %v450 = vmax.f32 %v434, 0.0
      %v451 = vmax.f32 %v435, 0.0
      %v452 = vmax.f32 %v436, 0.0
      %v453 = vmax.f32 %v437, 0.0
      %v454 = vmax.f32 %v438, 0.0
      %v455 = vld [vmem:[%s2 + $0xa0] sm:$0xff]
      %v456 = vld [vmem:[%s2 + $0xb0] sm:$0xff]
      %v457 = vld [vmem:[%s2 + $0xc0] sm:$0xff]
      %v458 = vld [vmem:[%s2 + $0xd0] sm:$0xff]
      %459 = vrot.lane.b32.xlu0 %v421, 96
      %v460 = vpop.permute.xlu0 %459
      %vm462 = vcmask 261120
      %v464 = vsel %vm462, %v439, 0
      %v467 = vsel %vm462, %v440, 0
      %v470 = vsel %vm462, %v441, 0
      %v473 = vsel %vm462, %v442, 0
      %v476 = vsel %vm462, %v443, 0
      %v479 = vsel %vm462, %v444, 0
      %v482 = vsel %vm462, %v445, 0
      %v485 = vsel %vm462, %v446, 0
      %v488 = vsel %vm462, %v447, 0
      %v491 = vsel %vm462, %v448, 0
      %v494 = vsel %vm462, %v449, 0
      %v497 = vsel %vm462, %v450, 0
      %v500 = vsel %vm462, %v451, 0
      %v503 = vsel %vm462, %v452, 0
      %v506 = vsel %vm462, %v453, 0
      %v509 = vsel %vm462, %v454, 0
      %511 = vmatpush.msra.mxu0 0.0
      %512 = vmatpush.msra.mxu0 0.0
      %513 = vmatpush.msra.mxu0 0.0
      %514 = vmatpush.msra.mxu0 0.0
      %515 = vmatpush.msra.mxu0 0.0
      %516 = vmatpush.msra.mxu0 0.0
      %517 = vmatpush.msra.mxu0 0.0
      %518 = vmatpush.msra.mxu0 0.0
      %519 = vmatpush.msra.mxu0 0.0
      %520 = vmatpush.msra.mxu0 0.0
      %521 = vmatpush.msra.mxu0 0.0
      %522 = vmatpush.msra.mxu0 0.0
      %523 = vmatpush.msra.mxu0 %v458
      %524 = vmatpush.msra.mxu0 %v457
      %525 = vmatpush.msra.mxu0 %v456
      %526 = vmatpush.msra.mxu0 %v455
      %527 = vmatmul.f32.gmra.mxu0 %v464
      %v528 = vpop.f32.mrf.mxu0
      %v529 = vadd.f32 %v460, %v528
      %530 = vmatmul.f32.gmra.mxu0 %v467
      %v531 = vpop.f32.mrf.mxu0
      %v532 = vadd.f32 %v460, %v531
      %533 = vmatmul.f32.gmra.mxu0 %v470
      %v534 = vpop.f32.mrf.mxu0
      %v535 = vadd.f32 %v460, %v534
      %536 = vmatmul.f32.gmra.mxu0 %v473
      %v537 = vpop.f32.mrf.mxu0
      %v538 = vadd.f32 %v460, %v537
      %539 = vmatmul.f32.gmra.mxu0 %v476
      %v540 = vpop.f32.mrf.mxu0
      %v541 = vadd.f32 %v460, %v540
      %542 = vmatmul.f32.gmra.mxu0 %v479
      %v543 = vpop.f32.mrf.mxu0
      %v544 = vadd.f32 %v460, %v543
      %545 = vmatmul.f32.gmra.mxu0 %v482
      %v546 = vpop.f32.mrf.mxu0
      %v547 = vadd.f32 %v460, %v546
      %548 = vmatmul.f32.gmra.mxu0 %v485
      %v549 = vpop.f32.mrf.mxu0
      %v550 = vadd.f32 %v460, %v549
      %551 = vmatmul.f32.gmra.mxu0 %v488
      %v552 = vpop.f32.mrf.mxu0
      %v553 = vadd.f32 %v460, %v552
      %554 = vmatmul.f32.gmra.mxu0 %v491
      %v555 = vpop.f32.mrf.mxu0
      %v556 = vadd.f32 %v460, %v555
      %557 = vmatmul.f32.gmra.mxu0 %v494
      %v558 = vpop.f32.mrf.mxu0
      %v559 = vadd.f32 %v460, %v558
      %560 = vmatmul.f32.gmra.mxu0 %v497
      %v561 = vpop.f32.mrf.mxu0
      %v562 = vadd.f32 %v460, %v561
      %563 = vmatmul.f32.gmra.mxu0 %v500
      %v564 = vpop.f32.mrf.mxu0
      %v565 = vadd.f32 %v460, %v564
      %566 = vmatmul.f32.gmra.mxu0 %v503
      %v567 = vpop.f32.mrf.mxu0
      %v568 = vadd.f32 %v460, %v567
      %569 = vmatmul.f32.gmra.mxu0 %v506
      %v570 = vpop.f32.mrf.mxu0
      %v571 = vadd.f32 %v460, %v570
      %572 = vmatmul.f32.gmra.mxu0 %v509
      %v573 = vpop.f32.mrf.mxu0
      %v574 = vadd.f32 %v460, %v573
      %575 = vdwg.mxu0
      %v576 = vld [vmem:[%s2 + $0x20] sm:$0xff]
      %v577 = vld [vmem:[%s2 + $0x28] sm:$0xff]
      %v578 = vld [vmem:[%s2 + $0x30] sm:$0xff]
      %v579 = vld [vmem:[%s2 + $0x38] sm:$0xff]
      %v580 = vld [vmem:[%s2 + $0x40] sm:$0xff]
      %v581 = vld [vmem:[%s2 + $0x48] sm:$0xff]
      %v582 = vld [vmem:[%s2 + $0x50] sm:$0xff]
      %v583 = vld [vmem:[%s2 + $0x58] sm:$0xff]
      %v585 = vsel %vm462, %v529, 0
      %v588 = vsel %vm462, %v532, 0
      %v591 = vsel %vm462, %v535, 0
      %v594 = vsel %vm462, %v538, 0
      %v597 = vsel %vm462, %v541, 0
      %v600 = vsel %vm462, %v544, 0
      %v603 = vsel %vm462, %v547, 0
      %v606 = vsel %vm462, %v550, 0
      %v609 = vsel %vm462, %v553, 0
      %v612 = vsel %vm462, %v556, 0
      %v615 = vsel %vm462, %v559, 0
      %v618 = vsel %vm462, %v562, 0
      %v621 = vsel %vm462, %v565, 0
      %v624 = vsel %vm462, %v568, 0
      %v627 = vsel %vm462, %v571, 0
      %v630 = vsel %vm462, %v574, 0
      %632 = vmatpush.msra.mxu0 0.0
      %633 = vmatpush.msra.mxu0 0.0
      %634 = vmatpush.msra.mxu0 0.0
      %635 = vmatpush.msra.mxu0 0.0
      %636 = vmatpush.msra.mxu0 0.0
      %637 = vmatpush.msra.mxu0 0.0
      %638 = vmatpush.msra.mxu0 0.0
      %639 = vmatpush.msra.mxu0 0.0
      %640 = vmatpush.msra.mxu0 0.0
      %641 = vmatpush.msra.mxu0 0.0
      %642 = vmatpush.msra.mxu0 0.0
      %643 = vmatpush.msra.mxu0 0.0
      %644 = vmatpush.msra.mxu0 %v582
      %645 = vmatpush.msra.mxu0 %v580
      %646 = vmatpush.msra.mxu0 %v578
      %647 = vmatpush.msra.mxu0 %v576
      %648 = vmatmul.f32.gmra.mxu0 %v585
      %v649 = vpop.f32.mrf.mxu0
      %v650 = vadd.f32 0.0, %v649
      %651 = vmatmul.f32.gmra.mxu0 %v588
      %v652 = vpop.f32.mrf.mxu0
      %v653 = vadd.f32 0.0, %v652
      %654 = vmatmul.f32.gmra.mxu0 %v591
      %v655 = vpop.f32.mrf.mxu0
      %v656 = vadd.f32 0.0, %v655
      %657 = vmatmul.f32.gmra.mxu0 %v594
      %v658 = vpop.f32.mrf.mxu0
      %v659 = vadd.f32 0.0, %v658
      %660 = vmatmul.f32.gmra.mxu0 %v597
      %v661 = vpop.f32.mrf.mxu0
      %v662 = vadd.f32 0.0, %v661
      %663 = vmatmul.f32.gmra.mxu0 %v600
      %v664 = vpop.f32.mrf.mxu0
      %v665 = vadd.f32 0.0, %v664
      %666 = vmatmul.f32.gmra.mxu0 %v603
      %v667 = vpop.f32.mrf.mxu0
      %v668 = vadd.f32 0.0, %v667
      %669 = vmatmul.f32.gmra.mxu0 %v606
      %v670 = vpop.f32.mrf.mxu0
      %v671 = vadd.f32 0.0, %v670
      %672 = vmatmul.f32.gmra.mxu0 %v609
      %v673 = vpop.f32.mrf.mxu0
      %v674 = vadd.f32 0.0, %v673
      %675 = vmatmul.f32.gmra.mxu0 %v612
      %v676 = vpop.f32.mrf.mxu0
      %v677 = vadd.f32 0.0, %v676
      %678 = vmatmul.f32.gmra.mxu0 %v615
      %v679 = vpop.f32.mrf.mxu0
      %v680 = vadd.f32 0.0, %v679
      %681 = vmatmul.f32.gmra.mxu0 %v618
      %v682 = vpop.f32.mrf.mxu0
      %v683 = vadd.f32 0.0, %v682
      %684 = vmatmul.f32.gmra.mxu0 %v621
      %v685 = vpop.f32.mrf.mxu0
      %v686 = vadd.f32 0.0, %v685
      %687 = vmatmul.f32.gmra.mxu0 %v624
      %v688 = vpop.f32.mrf.mxu0
      %v689 = vadd.f32 0.0, %v688
      %690 = vmatmul.f32.gmra.mxu0 %v627
      %v691 = vpop.f32.mrf.mxu0
      %v692 = vadd.f32 0.0, %v691
      %693 = vmatmul.f32.gmra.mxu0 %v630
      %v694 = vpop.f32.mrf.mxu0
      %v695 = vadd.f32 0.0, %v694
      %696 = vdwg.mxu0
      %697 = vmatpush.msra.mxu0 0.0
      %698 = vmatpush.msra.mxu0 0.0
      %699 = vmatpush.msra.mxu0 0.0
      %700 = vmatpush.msra.mxu0 0.0
      %701 = vmatpush.msra.mxu0 0.0
      %702 = vmatpush.msra.mxu0 0.0
      %703 = vmatpush.msra.mxu0 0.0
      %704 = vmatpush.msra.mxu0 0.0
      %705 = vmatpush.msra.mxu0 0.0
      %706 = vmatpush.msra.mxu0 0.0
      %707 = vmatpush.msra.mxu0 0.0
      %708 = vmatpush.msra.mxu0 0.0
      %709 = vmatpush.msra.mxu0 %v583
      %710 = vmatpush.msra.mxu0 %v581
      %711 = vmatpush.msra.mxu0 %v579
      %712 = vmatpush.msra.mxu0 %v577
      %713 = vmatmul.f32.gmra.mxu0 %v585
      %v714 = vpop.f32.mrf.mxu0
      %v715 = vadd.f32 0.0, %v714
      %716 = vmatmul.f32.gmra.mxu0 %v588
      %v717 = vpop.f32.mrf.mxu0
      %v718 = vadd.f32 0.0, %v717
      %719 = vmatmul.f32.gmra.mxu0 %v591
      %v720 = vpop.f32.mrf.mxu0
      %v721 = vadd.f32 0.0, %v720
      %722 = vmatmul.f32.gmra.mxu0 %v594
      %v723 = vpop.f32.mrf.mxu0
      %v724 = vadd.f32 0.0, %v723
      %725 = vmatmul.f32.gmra.mxu0 %v597
      %v726 = vpop.f32.mrf.mxu0
      %v727 = vadd.f32 0.0, %v726
      %728 = vmatmul.f32.gmra.mxu0 %v600
      %v729 = vpop.f32.mrf.mxu0
      %v730 = vadd.f32 0.0, %v729
      %731 = vmatmul.f32.gmra.mxu0 %v603
      %v732 = vpop.f32.mrf.mxu0
      %v733 = vadd.f32 0.0, %v732
      %734 = vmatmul.f32.gmra.mxu0 %v606
      %v735 = vpop.f32.mrf.mxu0
      %v736 = vadd.f32 0.0, %v735
      %737 = vmatmul.f32.gmra.mxu0 %v609
      %v738 = vpop.f32.mrf.mxu0
      %v739 = vadd.f32 0.0, %v738
      %740 = vmatmul.f32.gmra.mxu0 %v612
      %v741 = vpop.f32.mrf.mxu0
      %v742 = vadd.f32 0.0, %v741
      %743 = vmatmul.f32.gmra.mxu0 %v615
      %v744 = vpop.f32.mrf.mxu0
      %v745 = vadd.f32 0.0, %v744
      %746 = vmatmul.f32.gmra.mxu0 %v618
      %v747 = vpop.f32.mrf.mxu0
      %v748 = vadd.f32 0.0, %v747
      %749 = vmatmul.f32.gmra.mxu0 %v621
      %v750 = vpop.f32.mrf.mxu0
      %v751 = vadd.f32 0.0, %v750
      %752 = vmatmul.f32.gmra.mxu0 %v624
      %v753 = vpop.f32.mrf.mxu0
      %v754 = vadd.f32 0.0, %v753
      %755 = vmatmul.f32.gmra.mxu0 %v627
      %v756 = vpop.f32.mrf.mxu0
      %v757 = vadd.f32 0.0, %v756
      %758 = vmatmul.f32.gmra.mxu0 %v630
      %v759 = vpop.f32.mrf.mxu0
      %v760 = vadd.f32 0.0, %v759
      %761 = vdwg.mxu0
      %763 = vset.pattern.permute.xlu0 0
      %764 = vperm.xlu0 %763, %v212
      %v765 = vpop.permute.xlu0 %764
      %768 = vset.pattern.permute.xlu0 0
      %769 = vperm.xlu0 %768, %v213
      %v770 = vpop.permute.xlu0 %769
      %773 = vset.pattern.permute.xlu0 0
      %774 = vperm.xlu0 %773, %v214
      %v775 = vpop.permute.xlu0 %774
      %778 = vset.pattern.permute.xlu0 0
      %779 = vperm.xlu0 %778, %v215
      %v780 = vpop.permute.xlu0 %779
      %783 = vset.pattern.permute.xlu0 0
      %784 = vperm.xlu0 %783, %v216
      %v785 = vpop.permute.xlu0 %784
      %788 = vset.pattern.permute.xlu0 0
      %789 = vperm.xlu0 %788, %v217
      %v790 = vpop.permute.xlu0 %789
      %793 = vset.pattern.permute.xlu0 0
      %794 = vperm.xlu0 %793, %v218
      %v795 = vpop.permute.xlu0 %794
      %798 = vset.pattern.permute.xlu0 0
      %799 = vperm.xlu0 %798, %v219
      %v800 = vpop.permute.xlu0 %799
      %803 = vset.pattern.permute.xlu0 0
      %804 = vperm.xlu0 %803, %v220
      %v805 = vpop.permute.xlu0 %804
      %808 = vset.pattern.permute.xlu0 0
      %809 = vperm.xlu0 %808, %v221
      %v810 = vpop.permute.xlu0 %809
      %813 = vset.pattern.permute.xlu0 0
      %814 = vperm.xlu0 %813, %v222
      %v815 = vpop.permute.xlu0 %814
      %818 = vset.pattern.permute.xlu0 0
      %819 = vperm.xlu0 %818, %v223
      %v820 = vpop.permute.xlu0 %819
      %823 = vset.pattern.permute.xlu0 0
      %824 = vperm.xlu0 %823, %v224
      %v825 = vpop.permute.xlu0 %824
      %828 = vset.pattern.permute.xlu0 0
      %829 = vperm.xlu0 %828, %v225
      %v830 = vpop.permute.xlu0 %829
      %833 = vset.pattern.permute.xlu0 0
      %834 = vperm.xlu0 %833, %v226
      %v835 = vpop.permute.xlu0 %834
      %838 = vset.pattern.permute.xlu0 0
      %839 = vperm.xlu0 %838, %v227
      %v840 = vpop.permute.xlu0 %839
      %v842 = vmul.f32 %v765, %v650
      %v843 = vmul.f32 %v770, %v653
      %v844 = vmul.f32 %v775, %v656
      %v845 = vmul.f32 %v780, %v659
      %v846 = vmul.f32 %v785, %v662
      %v847 = vmul.f32 %v790, %v665
      %v848 = vmul.f32 %v795, %v668
      %v849 = vmul.f32 %v800, %v671
      %v850 = vmul.f32 %v805, %v674
      %v851 = vmul.f32 %v810, %v677
      %v852 = vmul.f32 %v815, %v680
      %v853 = vmul.f32 %v820, %v683
      %v854 = vmul.f32 %v825, %v686
      %v855 = vmul.f32 %v830, %v689
      %v856 = vmul.f32 %v835, %v692
      %v857 = vmul.f32 %v840, %v695
      %858 = vrot.lane.b32.xlu0 %v421, 64
      %v859 = vpop.permute.xlu0 %858
      %v861 = vadd.f32 %v842, %v859
      %v862 = vadd.f32 %v843, %v859
      %v863 = vadd.f32 %v844, %v859
      %v864 = vadd.f32 %v845, %v859
      %v865 = vadd.f32 %v846, %v859
      %v866 = vadd.f32 %v847, %v859
      %v867 = vadd.f32 %v848, %v859
      %v868 = vadd.f32 %v849, %v859
      %v869 = vadd.f32 %v850, %v859
      %v870 = vadd.f32 %v851, %v859
      %v871 = vadd.f32 %v852, %v859
      %v872 = vadd.f32 %v853, %v859
      %v873 = vadd.f32 %v854, %v859
      %v874 = vadd.f32 %v855, %v859
      %v875 = vadd.f32 %v856, %v859
      %v876 = vadd.f32 %v857, %v859
      %v877 = vmax.f32 %v861, 0.0
      %v878 = vmax.f32 %v862, 0.0
      %v879 = vmax.f32 %v863, 0.0
      %v880 = vmax.f32 %v864, 0.0
      %v881 = vmax.f32 %v865, 0.0
      %v882 = vmax.f32 %v866, 0.0
      %v883 = vmax.f32 %v867, 0.0
      %v884 = vmax.f32 %v868, 0.0
      %v885 = vmax.f32 %v869, 0.0
      %v886 = vmax.f32 %v870, 0.0
      %v887 = vmax.f32 %v871, 0.0
      %v888 = vmax.f32 %v872, 0.0
      %v889 = vmax.f32 %v873, 0.0
      %v890 = vmax.f32 %v874, 0.0
      %v891 = vmax.f32 %v875, 0.0
      %v892 = vmax.f32 %v876, 0.0
      %v893 = vld [vmem:[%s2 + $0xe0] sm:$0xff]
      %v894 = vld [vmem:[%s2 + $0xf0] sm:$0xff]
      %v895 = vld [vmem:[%s2 + $0x100] sm:$0xff]
      %v896 = vld [vmem:[%s2 + $0x110] sm:$0xff]
      %897 = vrot.lane.b32.xlu0 %v421, 32
      %v898 = vpop.permute.xlu0 %897
      %v901 = vsel %vm462, %v877, 0
      %v904 = vsel %vm462, %v878, 0
      %v907 = vsel %vm462, %v879, 0
      %v910 = vsel %vm462, %v880, 0
      %v913 = vsel %vm462, %v881, 0
      %v916 = vsel %vm462, %v882, 0
      %v919 = vsel %vm462, %v883, 0
      %v922 = vsel %vm462, %v884, 0
      %v925 = vsel %vm462, %v885, 0
      %v928 = vsel %vm462, %v886, 0
      %v931 = vsel %vm462, %v887, 0
      %v934 = vsel %vm462, %v888, 0
      %v937 = vsel %vm462, %v889, 0
      %v940 = vsel %vm462, %v890, 0
      %v943 = vsel %vm462, %v891, 0
      %v946 = vsel %vm462, %v892, 0
      %948 = vmatpush.msra.mxu0 0.0
      %949 = vmatpush.msra.mxu0 0.0
      %950 = vmatpush.msra.mxu0 0.0
      %951 = vmatpush.msra.mxu0 0.0
      %952 = vmatpush.msra.mxu0 0.0
      %953 = vmatpush.msra.mxu0 0.0
      %954 = vmatpush.msra.mxu0 0.0
      %955 = vmatpush.msra.mxu0 0.0
      %956 = vmatpush.msra.mxu0 0.0
      %957 = vmatpush.msra.mxu0 0.0
      %958 = vmatpush.msra.mxu0 0.0
      %959 = vmatpush.msra.mxu0 0.0
      %960 = vmatpush.msra.mxu0 %v896
      %961 = vmatpush.msra.mxu0 %v895
      %962 = vmatpush.msra.mxu0 %v894
      %963 = vmatpush.msra.mxu0 %v893
      %964 = vmatmul.f32.gmra.mxu0 %v901
      %v965 = vpop.f32.mrf.mxu0
      %v966 = vadd.f32 %v898, %v965
      %967 = vmatmul.f32.gmra.mxu0 %v904
      %v968 = vpop.f32.mrf.mxu0
      %v969 = vadd.f32 %v898, %v968
      %970 = vmatmul.f32.gmra.mxu0 %v907
      %v971 = vpop.f32.mrf.mxu0
      %v972 = vadd.f32 %v898, %v971
      %973 = vmatmul.f32.gmra.mxu0 %v910
      %v974 = vpop.f32.mrf.mxu0
      %v975 = vadd.f32 %v898, %v974
      %976 = vmatmul.f32.gmra.mxu0 %v913
      %v977 = vpop.f32.mrf.mxu0
      %v978 = vadd.f32 %v898, %v977
      %979 = vmatmul.f32.gmra.mxu0 %v916
      %v980 = vpop.f32.mrf.mxu0
      %v981 = vadd.f32 %v898, %v980
      %982 = vmatmul.f32.gmra.mxu0 %v919
      %v983 = vpop.f32.mrf.mxu0
      %v984 = vadd.f32 %v898, %v983
      %985 = vmatmul.f32.gmra.mxu0 %v922
      %v986 = vpop.f32.mrf.mxu0
      %v987 = vadd.f32 %v898, %v986
      %988 = vmatmul.f32.gmra.mxu0 %v925
      %v989 = vpop.f32.mrf.mxu0
      %v990 = vadd.f32 %v898, %v989
      %991 = vmatmul.f32.gmra.mxu0 %v928
      %v992 = vpop.f32.mrf.mxu0
      %v993 = vadd.f32 %v898, %v992
      %994 = vmatmul.f32.gmra.mxu0 %v931
      %v995 = vpop.f32.mrf.mxu0
      %v996 = vadd.f32 %v898, %v995
      %997 = vmatmul.f32.gmra.mxu0 %v934
      %v998 = vpop.f32.mrf.mxu0
      %v999 = vadd.f32 %v898, %v998
      %1000 = vmatmul.f32.gmra.mxu0 %v937
      %v1001 = vpop.f32.mrf.mxu0
      %v1002 = vadd.f32 %v898, %v1001
      %1003 = vmatmul.f32.gmra.mxu0 %v940
      %v1004 = vpop.f32.mrf.mxu0
      %v1005 = vadd.f32 %v898, %v1004
      %1006 = vmatmul.f32.gmra.mxu0 %v943
      %v1007 = vpop.f32.mrf.mxu0
      %v1008 = vadd.f32 %v898, %v1007
      %1009 = vmatmul.f32.gmra.mxu0 %v946
      %v1010 = vpop.f32.mrf.mxu0
      %v1011 = vadd.f32 %v898, %v1010
      %1012 = vdwg.mxu0
      %v1013 = vmax.f32 %v966, 0.0
      %v1014 = vmax.f32 %v969, 0.0
      %v1015 = vmax.f32 %v972, 0.0
      %v1016 = vmax.f32 %v975, 0.0
      %v1017 = vmax.f32 %v978, 0.0
      %v1018 = vmax.f32 %v981, 0.0
      %v1019 = vmax.f32 %v984, 0.0
      %v1020 = vmax.f32 %v987, 0.0
      %v1021 = vmax.f32 %v990, 0.0
      %v1022 = vmax.f32 %v993, 0.0
      %v1023 = vmax.f32 %v996, 0.0
      %v1024 = vmax.f32 %v999, 0.0
      %v1025 = vmax.f32 %v1002, 0.0
      %v1026 = vmax.f32 %v1005, 0.0
      %v1027 = vmax.f32 %v1008, 0.0
      %v1028 = vmax.f32 %v1011, 0.0
      %v1029 = vadd.f32 %v308, %v650
      %v1030 = vadd.f32 %v373, %v715
      %v1031 = vadd.f32 %v311, %v653
      %v1032 = vadd.f32 %v376, %v718
      %v1033 = vadd.f32 %v314, %v656
      %v1034 = vadd.f32 %v379, %v721
      %v1035 = vadd.f32 %v317, %v659
      %v1036 = vadd.f32 %v382, %v724
      %v1037 = vadd.f32 %v320, %v662
      %v1038 = vadd.f32 %v385, %v727
      %v1039 = vadd.f32 %v323, %v665
      %v1040 = vadd.f32 %v388, %v730
      %v1041 = vadd.f32 %v326, %v668
      %v1042 = vadd.f32 %v391, %v733
      %v1043 = vadd.f32 %v329, %v671
      %v1044 = vadd.f32 %v394, %v736
      %v1045 = vadd.f32 %v332, %v674
      %v1046 = vadd.f32 %v397, %v739
      %v1047 = vadd.f32 %v335, %v677
      %v1048 = vadd.f32 %v400, %v742
      %v1049 = vadd.f32 %v338, %v680
      %v1050 = vadd.f32 %v403, %v745
      %v1051 = vadd.f32 %v341, %v683
      %v1052 = vadd.f32 %v406, %v748
      %v1053 = vadd.f32 %v344, %v686
      %v1054 = vadd.f32 %v409, %v751
      %v1055 = vadd.f32 %v347, %v689
      %v1056 = vadd.f32 %v412, %v754
      %v1057 = vadd.f32 %v350, %v692
      %v1058 = vadd.f32 %v415, %v757
      %v1059 = vadd.f32 %v353, %v695
      %v1060 = vadd.f32 %v418, %v760
      %v1061 = vld [vmem:[%s2 + $0x60] sm:$0xff]
      %v1062 = vld [vmem:[%s2 + $0x68] sm:$0xff]
      %v1063 = vld [vmem:[%s2 + $0x70] sm:$0xff]
      %v1064 = vld [vmem:[%s2 + $0x78] sm:$0xff]
      %v1065 = vld [vmem:[%s2 + $0x80] sm:$0xff]
      %v1066 = vld [vmem:[%s2 + $0x88] sm:$0xff]
      %v1067 = vld [vmem:[%s2 + $0x90] sm:$0xff]
      %v1068 = vld [vmem:[%s2 + $0x98] sm:$0xff]
      %v1070 = vsel %vm462, %v1013, 0
      %v1073 = vsel %vm462, %v1014, 0
      %v1076 = vsel %vm462, %v1015, 0
      %v1079 = vsel %vm462, %v1016, 0
      %v1082 = vsel %vm462, %v1017, 0
      %v1085 = vsel %vm462, %v1018, 0
      %v1088 = vsel %vm462, %v1019, 0
      %v1091 = vsel %vm462, %v1020, 0
      %v1094 = vsel %vm462, %v1021, 0
      %v1097 = vsel %vm462, %v1022, 0
      %v1100 = vsel %vm462, %v1023, 0
      %v1103 = vsel %vm462, %v1024, 0
      %v1106 = vsel %vm462, %v1025, 0
      %v1109 = vsel %vm462, %v1026, 0
      %v1112 = vsel %vm462, %v1027, 0
      %v1115 = vsel %vm462, %v1028, 0
      %1117 = vmatpush.msra.mxu0 0.0
      %1118 = vmatpush.msra.mxu0 0.0
      %1119 = vmatpush.msra.mxu0 0.0
      %1120 = vmatpush.msra.mxu0 0.0
      %1121 = vmatpush.msra.mxu0 0.0
      %1122 = vmatpush.msra.mxu0 0.0
      %1123 = vmatpush.msra.mxu0 0.0
      %1124 = vmatpush.msra.mxu0 0.0
      %1125 = vmatpush.msra.mxu0 0.0
      %1126 = vmatpush.msra.mxu0 0.0
      %1127 = vmatpush.msra.mxu0 0.0
      %1128 = vmatpush.msra.mxu0 0.0
      %1129 = vmatpush.msra.mxu0 %v1067
      %1130 = vmatpush.msra.mxu0 %v1065
      %1131 = vmatpush.msra.mxu0 %v1063
      %1132 = vmatpush.msra.mxu0 %v1061
      %1133 = vmatmul.f32.gmra.mxu0 %v1070
      %v1134 = vpop.f32.mrf.mxu0
      %v1135 = vadd.f32 0.0, %v1134
      %1136 = vmatmul.f32.gmra.mxu0 %v1073
      %v1137 = vpop.f32.mrf.mxu0
      %v1138 = vadd.f32 0.0, %v1137
      %1139 = vmatmul.f32.gmra.mxu0 %v1076
      %v1140 = vpop.f32.mrf.mxu0
      %v1141 = vadd.f32 0.0, %v1140
      %1142 = vmatmul.f32.gmra.mxu0 %v1079
      %v1143 = vpop.f32.mrf.mxu0
      %v1144 = vadd.f32 0.0, %v1143
      %1145 = vmatmul.f32.gmra.mxu0 %v1082
      %v1146 = vpop.f32.mrf.mxu0
      %v1147 = vadd.f32 0.0, %v1146
      %1148 = vmatmul.f32.gmra.mxu0 %v1085
      %v1149 = vpop.f32.mrf.mxu0
      %v1150 = vadd.f32 0.0, %v1149
      %1151 = vmatmul.f32.gmra.mxu0 %v1088
      %v1152 = vpop.f32.mrf.mxu0
      %v1153 = vadd.f32 0.0, %v1152
      %1154 = vmatmul.f32.gmra.mxu0 %v1091
      %v1155 = vpop.f32.mrf.mxu0
      %v1156 = vadd.f32 0.0, %v1155
      %1157 = vmatmul.f32.gmra.mxu0 %v1094
      %v1158 = vpop.f32.mrf.mxu0
      %v1159 = vadd.f32 0.0, %v1158
      %1160 = vmatmul.f32.gmra.mxu0 %v1097
      %v1161 = vpop.f32.mrf.mxu0
      %v1162 = vadd.f32 0.0, %v1161
      %1163 = vmatmul.f32.gmra.mxu0 %v1100
      %v1164 = vpop.f32.mrf.mxu0
      %v1165 = vadd.f32 0.0, %v1164
      %1166 = vmatmul.f32.gmra.mxu0 %v1103
      %v1167 = vpop.f32.mrf.mxu0
      %v1168 = vadd.f32 0.0, %v1167
      %1169 = vmatmul.f32.gmra.mxu0 %v1106
      %v1170 = vpop.f32.mrf.mxu0
      %v1171 = vadd.f32 0.0, %v1170
      %1172 = vmatmul.f32.gmra.mxu0 %v1109
      %v1173 = vpop.f32.mrf.mxu0
      %v1174 = vadd.f32 0.0, %v1173
      %1175 = vmatmul.f32.gmra.mxu0 %v1112
      %v1176 = vpop.f32.mrf.mxu0
      %v1177 = vadd.f32 0.0, %v1176
      %1178 = vmatmul.f32.gmra.mxu0 %v1115
      %v1179 = vpop.f32.mrf.mxu0
      %v1180 = vadd.f32 0.0, %v1179
      %1181 = vdwg.mxu0
      %1182 = vmatpush.msra.mxu0 0.0
      %1183 = vmatpush.msra.mxu0 0.0
      %1184 = vmatpush.msra.mxu0 0.0
      %1185 = vmatpush.msra.mxu0 0.0
      %1186 = vmatpush.msra.mxu0 0.0
      %1187 = vmatpush.msra.mxu0 0.0
      %1188 = vmatpush.msra.mxu0 0.0
      %1189 = vmatpush.msra.mxu0 0.0
      %1190 = vmatpush.msra.mxu0 0.0
      %1191 = vmatpush.msra.mxu0 0.0
      %1192 = vmatpush.msra.mxu0 0.0
      %1193 = vmatpush.msra.mxu0 0.0
      %1194 = vmatpush.msra.mxu0 %v1068
      %1195 = vmatpush.msra.mxu0 %v1066
      %1196 = vmatpush.msra.mxu0 %v1064
      %1197 = vmatpush.msra.mxu0 %v1062
      %1198 = vmatmul.f32.gmra.mxu0 %v1070
      %v1199 = vpop.f32.mrf.mxu0
      %v1200 = vadd.f32 0.0, %v1199
      %1201 = vmatmul.f32.gmra.mxu0 %v1073
      %v1202 = vpop.f32.mrf.mxu0
      %v1203 = vadd.f32 0.0, %v1202
      %1204 = vmatmul.f32.gmra.mxu0 %v1076
      %v1205 = vpop.f32.mrf.mxu0
      %v1206 = vadd.f32 0.0, %v1205
      %1207 = vmatmul.f32.gmra.mxu0 %v1079
      %v1208 = vpop.f32.mrf.mxu0
      %v1209 = vadd.f32 0.0, %v1208
      %1210 = vmatmul.f32.gmra.mxu0 %v1082
      %v1211 = vpop.f32.mrf.mxu0
      %v1212 = vadd.f32 0.0, %v1211
      %1213 = vmatmul.f32.gmra.mxu0 %v1085
      %v1214 = vpop.f32.mrf.mxu0
      %v1215 = vadd.f32 0.0, %v1214
      %1216 = vmatmul.f32.gmra.mxu0 %v1088
      %v1217 = vpop.f32.mrf.mxu0
      %v1218 = vadd.f32 0.0, %v1217
      %1219 = vmatmul.f32.gmra.mxu0 %v1091
      %v1220 = vpop.f32.mrf.mxu0
      %v1221 = vadd.f32 0.0, %v1220
      %1222 = vmatmul.f32.gmra.mxu0 %v1094
      %v1223 = vpop.f32.mrf.mxu0
      %v1224 = vadd.f32 0.0, %v1223
      %1225 = vmatmul.f32.gmra.mxu0 %v1097
      %v1226 = vpop.f32.mrf.mxu0
      %v1227 = vadd.f32 0.0, %v1226
      %1228 = vmatmul.f32.gmra.mxu0 %v1100
      %v1229 = vpop.f32.mrf.mxu0
      %v1230 = vadd.f32 0.0, %v1229
      %1231 = vmatmul.f32.gmra.mxu0 %v1103
      %v1232 = vpop.f32.mrf.mxu0
      %v1233 = vadd.f32 0.0, %v1232
      %1234 = vmatmul.f32.gmra.mxu0 %v1106
      %v1235 = vpop.f32.mrf.mxu0
      %v1236 = vadd.f32 0.0, %v1235
      %1237 = vmatmul.f32.gmra.mxu0 %v1109
      %v1238 = vpop.f32.mrf.mxu0
      %v1239 = vadd.f32 0.0, %v1238
      %1240 = vmatmul.f32.gmra.mxu0 %v1112
      %v1241 = vpop.f32.mrf.mxu0
      %v1242 = vadd.f32 0.0, %v1241
      %1243 = vmatmul.f32.gmra.mxu0 %v1115
      %v1244 = vpop.f32.mrf.mxu0
      %v1245 = vadd.f32 0.0, %v1244
      %1246 = vdwg.mxu0
      %v1247 = vadd.f32 %v1029, %v1135
      %v1248 = vadd.f32 %v1030, %v1200
      %v1249 = vadd.f32 %v1031, %v1138
      %v1250 = vadd.f32 %v1032, %v1203
      %v1251 = vadd.f32 %v1033, %v1141
      %v1252 = vadd.f32 %v1034, %v1206
      %v1253 = vadd.f32 %v1035, %v1144
      %v1254 = vadd.f32 %v1036, %v1209
      %v1255 = vadd.f32 %v1037, %v1147
      %v1256 = vadd.f32 %v1038, %v1212
      %v1257 = vadd.f32 %v1039, %v1150
      %v1258 = vadd.f32 %v1040, %v1215
      %v1259 = vadd.f32 %v1041, %v1153
      %v1260 = vadd.f32 %v1042, %v1218
      %v1261 = vadd.f32 %v1043, %v1156
      %v1262 = vadd.f32 %v1044, %v1221
      %v1263 = vadd.f32 %v1045, %v1159
      %v1264 = vadd.f32 %v1046, %v1224
      %v1265 = vadd.f32 %v1047, %v1162
      %v1266 = vadd.f32 %v1048, %v1227
      %v1267 = vadd.f32 %v1049, %v1165
      %v1268 = vadd.f32 %v1050, %v1230
      %v1269 = vadd.f32 %v1051, %v1168
      %v1270 = vadd.f32 %v1052, %v1233
      %v1271 = vadd.f32 %v1053, %v1171
      %v1272 = vadd.f32 %v1054, %v1236
      %v1273 = vadd.f32 %v1055, %v1174
      %v1274 = vadd.f32 %v1056, %v1239
      %v1275 = vadd.f32 %v1057, %v1177
      %v1276 = vadd.f32 %v1058, %v1242
      %v1277 = vadd.f32 %v1059, %v1180
      %v1278 = vadd.f32 %v1060, %v1245
      %v1280 = vperm.slane %v231, 0
      %v1281 = vperm.slane %v231, 1
      %v1284 = vadd.f32 %v1247, %v1280
      %v1285 = vadd.f32 %v1248, %v1281
      %v1286 = vadd.f32 %v1249, %v1280
      %v1287 = vadd.f32 %v1250, %v1281
      %v1288 = vadd.f32 %v1251, %v1280
      %v1289 = vadd.f32 %v1252, %v1281
      %v1290 = vadd.f32 %v1253, %v1280
      %v1291 = vadd.f32 %v1254, %v1281
      %v1292 = vadd.f32 %v1255, %v1280
      %v1293 = vadd.f32 %v1256, %v1281
      %v1294 = vadd.f32 %v1257, %v1280
      %v1295 = vadd.f32 %v1258, %v1281
      %v1296 = vadd.f32 %v1259, %v1280
      %v1297 = vadd.f32 %v1260, %v1281
      %v1298 = vadd.f32 %v1261, %v1280
      %v1299 = vadd.f32 %v1262, %v1281
      %v1300 = vadd.f32 %v1263, %v1280
      %v1301 = vadd.f32 %v1264, %v1281
      %v1302 = vadd.f32 %v1265, %v1280
      %v1303 = vadd.f32 %v1266, %v1281
      %v1304 = vadd.f32 %v1267, %v1280
      %v1305 = vadd.f32 %v1268, %v1281
      %v1306 = vadd.f32 %v1269, %v1280
      %v1307 = vadd.f32 %v1270, %v1281
      %v1308 = vadd.f32 %v1271, %v1280
      %v1309 = vadd.f32 %v1272, %v1281
      %v1310 = vadd.f32 %v1273, %v1280
      %v1311 = vadd.f32 %v1274, %v1281
      %v1312 = vadd.f32 %v1275, %v1280
      %v1313 = vadd.f32 %v1276, %v1281
      %v1314 = vadd.f32 %v1277, %v1280
      %v1315 = vadd.f32 %v1278, %v1281
      %v1316 = vmax.f32 %v1284, 0.0
      %v1317 = vmax.f32 %v1285, 0.0
      %v1318 = vmax.f32 %v1286, 0.0
      %v1319 = vmax.f32 %v1287, 0.0
      %v1320 = vmax.f32 %v1288, 0.0
      %v1321 = vmax.f32 %v1289, 0.0
      %v1322 = vmax.f32 %v1290, 0.0
      %v1323 = vmax.f32 %v1291, 0.0
      %v1324 = vmax.f32 %v1292, 0.0
      %v1325 = vmax.f32 %v1293, 0.0
      %v1326 = vmax.f32 %v1294, 0.0
      %v1327 = vmax.f32 %v1295, 0.0
      %v1328 = vmax.f32 %v1296, 0.0
      %v1329 = vmax.f32 %v1297, 0.0
      %v1330 = vmax.f32 %v1298, 0.0
      %v1331 = vmax.f32 %v1299, 0.0
      %v1332 = vmax.f32 %v1300, 0.0
      %v1333 = vmax.f32 %v1301, 0.0
      %v1334 = vmax.f32 %v1302, 0.0
      %v1335 = vmax.f32 %v1303, 0.0
      %v1336 = vmax.f32 %v1304, 0.0
      %v1337 = vmax.f32 %v1305, 0.0
      %v1338 = vmax.f32 %v1306, 0.0
      %v1339 = vmax.f32 %v1307, 0.0
      %v1340 = vmax.f32 %v1308, 0.0
      %v1341 = vmax.f32 %v1309, 0.0
      %v1342 = vmax.f32 %v1310, 0.0
      %v1343 = vmax.f32 %v1311, 0.0
      %v1344 = vmax.f32 %v1312, 0.0
      %v1345 = vmax.f32 %v1313, 0.0
      %v1346 = vmax.f32 %v1314, 0.0
      %v1347 = vmax.f32 %v1315, 0.0
      %v1349 = vperm.slane %v233, 0
      %v1350 = vperm.slane %v233, 1
      %v1353 = vmul.f32 %v1316, %v1349
      %v1354 = vmul.f32 %v1317, %v1350
      %v1355 = vmul.f32 %v1318, %v1349
      %v1356 = vmul.f32 %v1319, %v1350
      %v1357 = vmul.f32 %v1320, %v1349
      %v1358 = vmul.f32 %v1321, %v1350
      %v1359 = vmul.f32 %v1322, %v1349
      %v1360 = vmul.f32 %v1323, %v1350
      %v1361 = vmul.f32 %v1324, %v1349
      %v1362 = vmul.f32 %v1325, %v1350
      %v1363 = vmul.f32 %v1326, %v1349
      %v1364 = vmul.f32 %v1327, %v1350
      %v1365 = vmul.f32 %v1328, %v1349
      %v1366 = vmul.f32 %v1329, %v1350
      %v1367 = vmul.f32 %v1330, %v1349
      %v1368 = vmul.f32 %v1331, %v1350
      %v1369 = vmul.f32 %v1332, %v1349
      %v1370 = vmul.f32 %v1333, %v1350
      %v1371 = vmul.f32 %v1334, %v1349
      %v1372 = vmul.f32 %v1335, %v1350
      %v1373 = vmul.f32 %v1336, %v1349
      %v1374 = vmul.f32 %v1337, %v1350
      %v1375 = vmul.f32 %v1338, %v1349
      %v1376 = vmul.f32 %v1339, %v1350
      %v1377 = vmul.f32 %v1340, %v1349
      %v1378 = vmul.f32 %v1341, %v1350
      %v1379 = vmul.f32 %v1342, %v1349
      %v1380 = vmul.f32 %v1343, %v1350
      %v1381 = vmul.f32 %v1344, %v1349
      %v1382 = vmul.f32 %v1345, %v1350
      %v1383 = vmul.f32 %v1346, %v1349
      %v1384 = vmul.f32 %v1347, %v1350
      %v1385 = vadd.f32 %v1353, %v1354
      %1386 = vadd.xlane.f32.xlu0 %v1385
      %v1387 = vpop.xlane.xlu0 %1386
      %v1388 = vadd.f32 %v1355, %v1356
      %1389 = vadd.xlane.f32.xlu0 %v1388
      %v1390 = vpop.xlane.xlu0 %1389
      %v1391 = vadd.f32 %v1357, %v1358
      %1392 = vadd.xlane.f32.xlu0 %v1391
      %v1393 = vpop.xlane.xlu0 %1392
      %v1394 = vadd.f32 %v1359, %v1360
      %1395 = vadd.xlane.f32.xlu0 %v1394
      %v1396 = vpop.xlane.xlu0 %1395
      %v1397 = vadd.f32 %v1361, %v1362
      %1398 = vadd.xlane.f32.xlu0 %v1397
      %v1399 = vpop.xlane.xlu0 %1398
      %v1400 = vadd.f32 %v1363, %v1364
      %1401 = vadd.xlane.f32.xlu0 %v1400
      %v1402 = vpop.xlane.xlu0 %1401
      %v1403 = vadd.f32 %v1365, %v1366
      %1404 = vadd.xlane.f32.xlu0 %v1403
      %v1405 = vpop.xlane.xlu0 %1404
      %v1406 = vadd.f32 %v1367, %v1368
      %1407 = vadd.xlane.f32.xlu0 %v1406
      %v1408 = vpop.xlane.xlu0 %1407
      %v1409 = vadd.f32 %v1369, %v1370
      %1410 = vadd.xlane.f32.xlu0 %v1409
      %v1411 = vpop.xlane.xlu0 %1410
      %v1412 = vadd.f32 %v1371, %v1372
      %1413 = vadd.xlane.f32.xlu0 %v1412
      %v1414 = vpop.xlane.xlu0 %1413
      %v1415 = vadd.f32 %v1373, %v1374
      %1416 = vadd.xlane.f32.xlu0 %v1415
      %v1417 = vpop.xlane.xlu0 %1416
      %v1418 = vadd.f32 %v1375, %v1376
      %1419 = vadd.xlane.f32.xlu0 %v1418
      %v1420 = vpop.xlane.xlu0 %1419
      %v1421 = vadd.f32 %v1377, %v1378
      %1422 = vadd.xlane.f32.xlu0 %v1421
      %v1423 = vpop.xlane.xlu0 %1422
      %v1424 = vadd.f32 %v1379, %v1380
      %1425 = vadd.xlane.f32.xlu0 %v1424
      %v1426 = vpop.xlane.xlu0 %1425
      %v1427 = vadd.f32 %v1381, %v1382
      %1428 = vadd.xlane.f32.xlu0 %v1427
      %v1429 = vpop.xlane.xlu0 %1428
      %v1430 = vadd.f32 %v1383, %v1384
      %1431 = vadd.xlane.f32.xlu0 %v1430
      %v1432 = vpop.xlane.xlu0 %1431
      %v1433 = vadd.f32 %v1387, %v236
      %v1434 = vadd.f32 %v1390, %v236
      %v1435 = vadd.f32 %v1393, %v236
      %v1436 = vadd.f32 %v1396, %v236
      %v1437 = vadd.f32 %v1399, %v236
      %v1438 = vadd.f32 %v1402, %v236
      %v1439 = vadd.f32 %v1405, %v236
      %v1440 = vadd.f32 %v1408, %v236
      %v1441 = vadd.f32 %v1411, %v236
      %v1442 = vadd.f32 %v1414, %v236
      %v1443 = vadd.f32 %v1417, %v236
      %v1444 = vadd.f32 %v1420, %v236
      %v1445 = vadd.f32 %v1423, %v236
      %v1446 = vadd.f32 %v1426, %v236
      %v1447 = vadd.f32 %v1429, %v236
      %v1448 = vadd.f32 %v1432, %v236
      %v1450 = vperm.slane %v235, 0
      %v1451 = vperm.slane %v235, 1
      %v1454 = vmul.f32 %v1316, %v1450
      %v1455 = vmul.f32 %v1317, %v1451
      %v1456 = vmul.f32 %v1318, %v1450
      %v1457 = vmul.f32 %v1319, %v1451
      %v1458 = vmul.f32 %v1320, %v1450
      %v1459 = vmul.f32 %v1321, %v1451
      %v1460 = vmul.f32 %v1322, %v1450
      %v1461 = vmul.f32 %v1323, %v1451
      %v1462 = vmul.f32 %v1324, %v1450
      %v1463 = vmul.f32 %v1325, %v1451
      %v1464 = vmul.f32 %v1326, %v1450
      %v1465 = vmul.f32 %v1327, %v1451
      %v1466 = vmul.f32 %v1328, %v1450
      %v1467 = vmul.f32 %v1329, %v1451
      %v1468 = vmul.f32 %v1330, %v1450
      %v1469 = vmul.f32 %v1331, %v1451
      %v1470 = vmul.f32 %v1332, %v1450
      %v1471 = vmul.f32 %v1333, %v1451
      %v1472 = vmul.f32 %v1334, %v1450
      %v1473 = vmul.f32 %v1335, %v1451
      %v1474 = vmul.f32 %v1336, %v1450
      %v1475 = vmul.f32 %v1337, %v1451
      %v1476 = vmul.f32 %v1338, %v1450
      %v1477 = vmul.f32 %v1339, %v1451
      %v1478 = vmul.f32 %v1340, %v1450
      %v1479 = vmul.f32 %v1341, %v1451
      %v1480 = vmul.f32 %v1342, %v1450
      %v1481 = vmul.f32 %v1343, %v1451
      %v1482 = vmul.f32 %v1344, %v1450
      %v1483 = vmul.f32 %v1345, %v1451
      %v1484 = vmul.f32 %v1346, %v1450
      %v1485 = vmul.f32 %v1347, %v1451
      %v1486 = vadd.f32 %v1454, %v1455
      %1487 = vadd.xlane.f32.xlu0 %v1486
      %v1488 = vpop.xlane.xlu0 %1487
      %v1489 = vadd.f32 %v1456, %v1457
      %1490 = vadd.xlane.f32.xlu0 %v1489
      %v1491 = vpop.xlane.xlu0 %1490
      %v1492 = vadd.f32 %v1458, %v1459
      %1493 = vadd.xlane.f32.xlu0 %v1492
      %v1494 = vpop.xlane.xlu0 %1493
      %v1495 = vadd.f32 %v1460, %v1461
      %1496 = vadd.xlane.f32.xlu0 %v1495
      %v1497 = vpop.xlane.xlu0 %1496
      %v1498 = vadd.f32 %v1462, %v1463
      %1499 = vadd.xlane.f32.xlu0 %v1498
      %v1500 = vpop.xlane.xlu0 %1499
      %v1501 = vadd.f32 %v1464, %v1465
      %1502 = vadd.xlane.f32.xlu0 %v1501
      %v1503 = vpop.xlane.xlu0 %1502
      %v1504 = vadd.f32 %v1466, %v1467
      %1505 = vadd.xlane.f32.xlu0 %v1504
      %v1506 = vpop.xlane.xlu0 %1505
      %v1507 = vadd.f32 %v1468, %v1469
      %1508 = vadd.xlane.f32.xlu0 %v1507
      %v1509 = vpop.xlane.xlu0 %1508
      %v1510 = vadd.f32 %v1470, %v1471
      %1511 = vadd.xlane.f32.xlu0 %v1510
      %v1512 = vpop.xlane.xlu0 %1511
      %v1513 = vadd.f32 %v1472, %v1473
      %1514 = vadd.xlane.f32.xlu0 %v1513
      %v1515 = vpop.xlane.xlu0 %1514
      %v1516 = vadd.f32 %v1474, %v1475
      %1517 = vadd.xlane.f32.xlu0 %v1516
      %v1518 = vpop.xlane.xlu0 %1517
      %v1519 = vadd.f32 %v1476, %v1477
      %1520 = vadd.xlane.f32.xlu0 %v1519
      %v1521 = vpop.xlane.xlu0 %1520
      %v1522 = vadd.f32 %v1478, %v1479
      %1523 = vadd.xlane.f32.xlu0 %v1522
      %v1524 = vpop.xlane.xlu0 %1523
      %v1525 = vadd.f32 %v1480, %v1481
      %1526 = vadd.xlane.f32.xlu0 %v1525
      %v1527 = vpop.xlane.xlu0 %1526
      %v1528 = vadd.f32 %v1482, %v1483
      %1529 = vadd.xlane.f32.xlu0 %v1528
      %v1530 = vpop.xlane.xlu0 %1529
      %v1531 = vadd.f32 %v1484, %v1485
      %1532 = vadd.xlane.f32.xlu0 %v1531
      %v1533 = vpop.xlane.xlu0 %1532
      %v1534 = vadd.f32 %v1488, %v236
      %v1535 = vadd.f32 %v1491, %v236
      %v1536 = vadd.f32 %v1494, %v236
      %v1537 = vadd.f32 %v1497, %v236
      %v1538 = vadd.f32 %v1500, %v236
      %v1539 = vadd.f32 %v1503, %v236
      %v1540 = vadd.f32 %v1506, %v236
      %v1541 = vadd.f32 %v1509, %v236
      %v1542 = vadd.f32 %v1512, %v236
      %v1543 = vadd.f32 %v1515, %v236
      %v1544 = vadd.f32 %v1518, %v236
      %v1545 = vadd.f32 %v1521, %v236
      %v1546 = vadd.f32 %v1524, %v236
      %v1547 = vadd.f32 %v1527, %v236
      %v1548 = vadd.f32 %v1530, %v236
      %v1549 = vadd.f32 %v1533, %v236
      %1550 = vst.msk [vmem:[%s194] sm:$0xff] %vm462, %v529
      %1551 = vst.msk [vmem:[%s194 + $0x8] sm:$0xff] %vm462, %v532
      %1552 = vst.msk [vmem:[%s194 + $0x10] sm:$0xff] %vm462, %v535
      %1553 = vst.msk [vmem:[%s194 + $0x18] sm:$0xff] %vm462, %v538
      %1554 = vst.msk [vmem:[%s194 + $0x20] sm:$0xff] %vm462, %v541
      %1555 = vst.msk [vmem:[%s194 + $0x28] sm:$0xff] %vm462, %v544
      %1556 = vst.msk [vmem:[%s194 + $0x30] sm:$0xff] %vm462, %v547
      %1557 = vst.msk [vmem:[%s194 + $0x38] sm:$0xff] %vm462, %v550
      %1558 = vst.msk [vmem:[%s194 + $0x40] sm:$0xff] %vm462, %v553
      %1559 = vst.msk [vmem:[%s194 + $0x48] sm:$0xff] %vm462, %v556
      %1560 = vst.msk [vmem:[%s194 + $0x50] sm:$0xff] %vm462, %v559
      %1561 = vst.msk [vmem:[%s194 + $0x58] sm:$0xff] %vm462, %v562
      %1562 = vst.msk [vmem:[%s194 + $0x60] sm:$0xff] %vm462, %v565
      %1563 = vst.msk [vmem:[%s194 + $0x68] sm:$0xff] %vm462, %v568
      %1564 = vst.msk [vmem:[%s194 + $0x70] sm:$0xff] %vm462, %v571
      %1565 = vst.msk [vmem:[%s194 + $0x78] sm:$0xff] %vm462, %v574
      %vm1566 = vcmask 7168
      %v1567 = vsel %vm1566, %v1433, %v1534
      %v1568 = vsel %vm1566, %v1434, %v1535
      %v1569 = vsel %vm1566, %v1435, %v1536
      %v1570 = vsel %vm1566, %v1436, %v1537
      %v1571 = vsel %vm1566, %v1437, %v1538
      %v1572 = vsel %vm1566, %v1438, %v1539
      %v1573 = vsel %vm1566, %v1439, %v1540
      %v1574 = vsel %vm1566, %v1440, %v1541
      %v1575 = vsel %vm1566, %v1441, %v1542
      %v1576 = vsel %vm1566, %v1442, %v1543
      %v1577 = vsel %vm1566, %v1443, %v1544
      %v1578 = vsel %vm1566, %v1444, %v1545
      %v1579 = vsel %vm1566, %v1445, %v1546
      %v1580 = vsel %vm1566, %v1446, %v1547
      %v1581 = vsel %vm1566, %v1447, %v1548
      %v1582 = vsel %vm1566, %v1448, %v1549
      %1599 = vrot.lane.b32.xlu0 %v1567, 32
      %v1600 = vpop.permute.xlu0 %1599
      %1601 = vrot.lane.b32.xlu0 %v1568, 32
      %v1602 = vpop.permute.xlu0 %1601
      %1603 = vrot.lane.b32.xlu0 %v1569, 32
      %v1604 = vpop.permute.xlu0 %1603
      %1605 = vrot.lane.b32.xlu0 %v1570, 32
      %v1606 = vpop.permute.xlu0 %1605
      %1607 = vrot.lane.b32.xlu0 %v1571, 32
      %v1608 = vpop.permute.xlu0 %1607
      %1609 = vrot.lane.b32.xlu0 %v1572, 32
      %v1610 = vpop.permute.xlu0 %1609
      %1611 = vrot.lane.b32.xlu0 %v1573, 32
      %v1612 = vpop.permute.xlu0 %1611
      %1613 = vrot.lane.b32.xlu0 %v1574, 32
      %v1614 = vpop.permute.xlu0 %1613
      %1615 = vrot.lane.b32.xlu0 %v1575, 32
      %v1616 = vpop.permute.xlu0 %1615
      %1617 = vrot.lane.b32.xlu0 %v1576, 32
      %v1618 = vpop.permute.xlu0 %1617
      %1619 = vrot.lane.b32.xlu0 %v1577, 32
      %v1620 = vpop.permute.xlu0 %1619
      %1621 = vrot.lane.b32.xlu0 %v1578, 32
      %v1622 = vpop.permute.xlu0 %1621
      %1623 = vrot.lane.b32.xlu0 %v1579, 32
      %v1624 = vpop.permute.xlu0 %1623
      %1625 = vrot.lane.b32.xlu0 %v1580, 32
      %v1626 = vpop.permute.xlu0 %1625
      %1627 = vrot.lane.b32.xlu0 %v1581, 32
      %v1628 = vpop.permute.xlu0 %1627
      %1629 = vrot.lane.b32.xlu0 %v1582, 32
      %v1630 = vpop.permute.xlu0 %1629
      %vm1647 = vcmask 277760
      %1648 = vst.msk [vmem:[%s194] sm:$0xff] %vm1647, %v1600
      %1649 = vst.msk [vmem:[%s194 + $0x8] sm:$0xff] %vm1647, %v1602
      %1650 = vst.msk [vmem:[%s194 + $0x10] sm:$0xff] %vm1647, %v1604
      %1651 = vst.msk [vmem:[%s194 + $0x18] sm:$0xff] %vm1647, %v1606
      %1652 = vst.msk [vmem:[%s194 + $0x20] sm:$0xff] %vm1647, %v1608
      %1653 = vst.msk [vmem:[%s194 + $0x28] sm:$0xff] %vm1647, %v1610
      %1654 = vst.msk [vmem:[%s194 + $0x30] sm:$0xff] %vm1647, %v1612
      %1655 = vst.msk [vmem:[%s194 + $0x38] sm:$0xff] %vm1647, %v1614
      %1656 = vst.msk [vmem:[%s194 + $0x40] sm:$0xff] %vm1647, %v1616
      %1657 = vst.msk [vmem:[%s194 + $0x48] sm:$0xff] %vm1647, %v1618
      %1658 = vst.msk [vmem:[%s194 + $0x50] sm:$0xff] %vm1647, %v1620
      %1659 = vst.msk [vmem:[%s194 + $0x58] sm:$0xff] %vm1647, %v1622
      %1660 = vst.msk [vmem:[%s194 + $0x60] sm:$0xff] %vm1647, %v1624
      %1661 = vst.msk [vmem:[%s194 + $0x68] sm:$0xff] %vm1647, %v1626
      %1662 = vst.msk [vmem:[%s194 + $0x70] sm:$0xff] %vm1647, %v1628
      %1663 = vst.msk [vmem:[%s194 + $0x78] sm:$0xff] %vm1647, %v1630
      %s1664 = smul.u32 16, %s14
      %p1665 = scmp.lt.s32.totalorder %s1664, 31
      %s1666 = scalar_select %p1665, %s1664, 31
      %s1667 = smul.addr %s1666, 8
      %s1668 = scalar_lea.vmem %s3, %s1667
      // Predicated region
      $region33: #{tpu_custom_call.1} parent=31 // pred_check
        %p1669 = pneg %p105
      $region34: #{tpu_custom_call.1} parent=31 // pred_check_branch
        %1671 = sbr.rel (%p1669) target = $region36
      $region35: #{tpu_custom_call.1} parent=31 // pred_region
        %s1672 = smul.u32 16, %s14
      $region36: #{tpu_custom_call.1} parent=31 // pred_fallthru
        _
    $region32: #{tpu_custom_call.1} parent=5 // pred_fallthru
      _
    %p1673 = scmp.le.s32.totalorder 2, %s9
    // Predicated region
    $region37: #{tpu_custom_call.1} parent=5 // pred_check
      %p1674 = pneg %p1673
    $region38: #{tpu_custom_call.1} parent=5 // pred_check_branch
      %1676 = sbr.rel (%p1674) target = $region40
    $region39: #{tpu_custom_call.1} parent=5 // pred_region
      %s1677 = ssub.s32 %s9, 2
      // Predicated region
      $region41: #{tpu_custom_call.1} parent=39 // pred_check
        %p1678 = pneg %p111
      $region42: #{tpu_custom_call.1} parent=39 // pred_check_branch
        %1680 = sbr.rel (%p1678) target = $region44
      $region43: #{tpu_custom_call.1} parent=39 // pred_region
        %s1681 = smul.u32 16, %s15
        %p1682 = scmp.lt.s32.totalorder %s1681, 31
        %s1683 = scalar_select %p1682, %s1681, 31
        %s1684 = smul.addr %s1683, 8
        %s1685 = scalar_lea.vmem %s3, %s1684
      $region44: #{tpu_custom_call.1} parent=39 // pred_fallthru
        _
    $region40: #{tpu_custom_call.1} parent=5 // pred_fallthru
      _
  $region6: #{tpu_custom_call.1} parent=0 // loop_footer
    %s13 = sadd.s32 1, %s9
  $region7: #{tpu_custom_call.1} parent=0 // loop_footer_branch
    %8 = sbr.rel target = $region3
  $region8: #{tpu_custom_call.1} parent=0 // loop_exit
    _

</llo_original>
